<compile_context>
chip_gen: v5e
topology: v5e:2x2
jax: 0.10.0
libtpu: 0.0.40
codegen_flags: <defaults>
</compile_context>

<pallas_src>
import functools

import jax
import jax.numpy as jnp
from jax import lax
from jax.experimental import pallas as pl
from jax.experimental.pallas import tpu as pltpu


def _round_up(x, m):
    return ((x + m - 1) // m) * m


def _gru_chunk_body(x_ref, w_ih_ref, w_hh_ref, brz_ref, bin_ref, bhn_ref,
                    gi_ref, h_ref, *, hidden_dim, chunk, batch, seq_len,
                    mask_tail):
    """Runs `chunk` GRU timesteps for the current grid chunk.

    x_ref   : (C*B, E)  bf16  time-major embeddings, rows [t*B, (t+1)*B)
    w_ih_ref: (E, 3H)   bf16  input-projection weight (cols r|z|n)
    w_hh_ref: (H, 3H)   bf16  hidden-projection weight (cols r|z|n)
    brz_ref : (1, 2H)   f32   b_ih[r,z] + b_hh[r,z] (pre-summed)
    bin_ref : (1, H)    f32   b_ih[n]
    bhn_ref : (1, H)    f32   b_hh[n]
    gi_ref  : (C*B, 3H) f32   VMEM scratch, per-chunk input projection
    h_ref   : (B, H)    f32   VMEM scratch, persistent hidden state
    Returns the chunk's final hidden state (B, H) f32.
    """
    c = pl.program_id(0)
    H = hidden_dim
    B = batch

    @pl.when(c == 0)
    def _():
        h_ref[...] = jnp.zeros_like(h_ref)

    # Input projection hoisted out of the serial recurrence: ONE MXU matmul
    # per chunk instead of being folded into every step's dot.
    gi_ref[...] = jnp.dot(x_ref[...], w_ih_ref[...],
                          preferred_element_type=jnp.float32)

    # Hoist bias broadcasts out of the loop (JAX does not CSE broadcast_in_dim).
    b_rz = jnp.broadcast_to(brz_ref[...], (B, 2 * H))
    b_in = jnp.broadcast_to(bin_ref[...], (B, H))
    b_hn = jnp.broadcast_to(bhn_ref[...], (B, H))

    def step(t, h):
        row = pl.multiple_of(t * B, B)
        gi = gi_ref[pl.ds(row, B), :]                               # (B, 3H) f32
        gh = jnp.dot(h.astype(jnp.bfloat16), w_hh_ref[...],
                     preferred_element_type=jnp.float32)            # (B, 3H) f32
        rz = jax.nn.sigmoid(gi[:, :2 * H] + gh[:, :2 * H] + b_rz)
        r, z = rz[:, :H], rz[:, H:]
        n = jnp.tanh(gi[:, 2 * H:] + b_in + r * (gh[:, 2 * H:] + b_hn))
        h_new = n + z * (h - n)             # == (1-z)*n + z*h, one fewer VALU op
        if mask_tail:
            # Steps past the true sequence length (time padding) must be no-ops.
            h_new = jnp.where(c * chunk + t < seq_len, h_new, h)
        return h_new

    h = lax.fori_loop(0, chunk, step, h_ref[...], unroll=True)
    h_ref[...] = h
    return h


def gru_fused_logits_kernel(x_ref, w_ih_ref, w_hh_ref, brz_ref, bin_ref,
                            bhn_ref, w_log_ref, b_log_ref, out_ref,
                            gi_ref, h_ref, *, hidden_dim, chunk, batch,
                            seq_len, mask_tail):
    """Recurrence chunk + fused small-vocab logits projection on the last chunk."""
    h = _gru_chunk_body(x_ref, w_ih_ref, w_hh_ref, brz_ref, bin_ref, bhn_ref,
                        gi_ref, h_ref, hidden_dim=hidden_dim, chunk=chunk,
                        batch=batch, seq_len=seq_len, mask_tail=mask_tail)

    @pl.when(pl.program_id(0) == pl.num_programs(0) - 1)
    def _():
        a = jnp.maximum(h, 0.0).astype(jnp.bfloat16)   # relu == heaviside_activation
        out_ref[...] = (jnp.dot(a, w_log_ref[...],
                                preferred_element_type=jnp.float32)
                        + b_log_ref[...])


def gru_recurrence_kernel(x_ref, w_ih_ref, w_hh_ref, brz_ref, bin_ref, bhn_ref,
                          act_ref, gi_ref, h_ref, *, hidden_dim, chunk, batch,
                          seq_len, mask_tail):
    """Recurrence only; emits relu(h_T) for the separate large-vocab logits call."""
    h = _gru_chunk_body(x_ref, w_ih_ref, w_hh_ref, brz_ref, bin_ref, bhn_ref,
                        gi_ref, h_ref, hidden_dim=hidden_dim, chunk=chunk,
                        batch=batch, seq_len=seq_len, mask_tail=mask_tail)

    @pl.when(pl.program_id(0) == pl.num_programs(0) - 1)
    def _():
        act_ref[...] = jnp.maximum(h, 0.0).astype(act_ref.dtype)


def logits_kernel(a_ref, w_ref, b_ref, out_ref):
    """Per-V-tile projection: out = relu(h) @ W_log_tile + b_tile."""
    out_ref[...] = (jnp.dot(a_ref[...], w_ref[...],
                            preferred_element_type=jnp.float32) + b_ref[...])


def feedforward_pallas(idx, params, *, max_time_chunk=64, vocab_tile=1024,
                       fuse_logits_max_vocab=4096):
    """idx: (B, T) int32 token ids. Returns (logits (B, 1, V), None)."""
    B, T = idx.shape
    wte = params["wte"]                       # (V, E) f32
    E = wte.shape[1]
    w_ih_t = params["w_ih_t"]                 # (E, 3H)
    w_hh_t = params["w_hh_t"]                 # (H, 3H)
    b_ih = params["b_ih"]                     # (1, 3H)
    b_hh = params["b_hh"]                     # (1, 3H)
    w_log_t = params["w_log_t"]               # (H, V)
    b_log = params["b_log"]                   # (1, V)
    H = w_hh_t.shape[0]
    V = w_log_t.shape[1]
    assert H == 256, "forward() hardcodes prev_hidden = zeros(b, 256)"
    assert H % 128 == 0, "gate slices assume lane-aligned H"

    # ---- parameter repacking (cheap one-time XLA glue) ----
    w_ih_bf = w_ih_t.astype(jnp.bfloat16)                          # (E, 3H)
    w_hh_bf = w_hh_t.astype(jnp.bfloat16)                          # (H, 3H)
    b_rz = (b_ih[:, :2 * H] + b_hh[:, :2 * H]).astype(jnp.float32)  # pre-summed
    b_in = b_ih[:, 2 * H:].astype(jnp.float32)
    b_hn = b_hh[:, 2 * H:].astype(jnp.float32)
    w_log_bf = w_log_t.astype(jnp.bfloat16)
    b_log_f = b_log.astype(jnp.float32)

    # ---- time-major embedding gather (no (B,T,E) transpose pass, no E padding)
    # TODO(synk): token-id gather stays as jnp.take glue; a DMA-gather kernel is
    # not warranted at these sizes.
    x_emb = jnp.take(wte, idx.T, axis=0).astype(jnp.bfloat16)      # (T, B, E)

    # Time chunking: pad T up so a prime / awkward T never degrades to C=1.
    C = min(T, max_time_chunk)
    n_chunks = pl.cdiv(T, C)
    T_pad = n_chunks * C
    mask_tail = T_pad != T
    if mask_tail:
        x_emb = jnp.pad(x_emb, ((0, T_pad - T), (0, 0), (0, 0)))
    x_flat = x_emb.reshape(T_pad * B, E)                           # 2-D, lane dim = E

    # Grid-invariant operands: single-buffered (index_map is constant).
    invariant = functools.partial(pl.BlockSpec, pipeline_mode=pl.Buffered(1))

    rec_in_specs = [
        pl.BlockSpec((C * B, E), lambda c: (c, 0)),                # per-chunk x
        invariant((E, 3 * H), lambda c: (0, 0)),                   # W_ih
        invariant((H, 3 * H), lambda c: (0, 0)),                   # W_hh
        invariant((1, 2 * H), lambda c: (0, 0)),
        invariant((1, H), lambda c: (0, 0)),
        invariant((1, H), lambda c: (0, 0)),
    ]
    rec_scratch = [pltpu.VMEM((C * B, 3 * H), jnp.float32),        # chunk input proj
                   pltpu.VMEM((B, H), jnp.float32)]                # hidden state

    kwargs = dict(hidden_dim=H, chunk=C, batch=B, seq_len=T, mask_tail=mask_tail)

    # TODO(synk): on v7x with B >= 16, add a leading size-2 "parallel" grid axis
    # (batch split across the two TensorCores); at B=8 that underfills sublanes.

    if V <= fuse_logits_max_vocab:
        # Small vocab: fuse the logits projection into the last chunk; avoids a
        # second pallas_call and the HBM round-trip of the activation.
        logits = pl.pallas_call(
            functools.partial(gru_fused_logits_kernel, **kwargs),
            out_shape=jax.ShapeDtypeStruct((B, V), jnp.float32),
            grid_spec=pltpu.PrefetchScalarGridSpec(
                num_scalar_prefetch=0,
                grid=(n_chunks,),
                in_specs=rec_in_specs + [
                    invariant((H, V), lambda c: (0, 0)),           # W_logits
                    invariant((1, V), lambda c: (0, 0)),           # b_logits
                ],
                out_specs=pl.BlockSpec((B, V), lambda c: (0, 0)),
                scratch_shapes=rec_scratch,
            ),
            compiler_params=pltpu.CompilerParams(
                dimension_semantics=("arbitrary",),                # sequential recurrence
            ),
        )(x_flat, w_ih_bf, w_hh_bf, b_rz, b_in, b_hn, w_log_bf, b_log_f)
    else:
        act = pl.pallas_call(
            functools.partial(gru_recurrence_kernel, **kwargs),
            out_shape=jax.ShapeDtypeStruct((B, H), jnp.bfloat16),
            grid_spec=pltpu.PrefetchScalarGridSpec(
                num_scalar_prefetch=0,
                grid=(n_chunks,),
                in_specs=rec_in_specs,
                out_specs=pl.BlockSpec((B, H), lambda c: (0, 0)),
                scratch_shapes=rec_scratch,
            ),
            compiler_params=pltpu.CompilerParams(
                dimension_semantics=("arbitrary",),
            ),
        )(x_flat, w_ih_bf, w_hh_bf, b_rz, b_in, b_hn)

        # Large vocab: pad V to a multiple of the tile so every tile is small,
        # VMEM stays bounded (v5e 16 MiB scoped / v7x 64 MiB total), and the V
        # axis stays a real parallel grid axis; slice the pad off afterwards.
        TV = vocab_tile
        Vp = _round_up(V, TV)
        if Vp != V:
            w_log_bf = jnp.pad(w_log_bf, ((0, 0), (0, Vp - V)))
            b_log_f = jnp.pad(b_log_f, ((0, 0), (0, Vp - V)))
        logits = pl.pallas_call(
            logits_kernel,
            out_shape=jax.ShapeDtypeStruct((B, Vp), jnp.float32),
            grid_spec=pltpu.PrefetchScalarGridSpec(
                num_scalar_prefetch=0,
                grid=(Vp // TV,),
                in_specs=[
                    invariant((B, H), lambda v: (0, 0)),           # act invariant over V
                    pl.BlockSpec((H, TV), lambda v: (0, v)),
                    pl.BlockSpec((1, TV), lambda v: (0, v)),
                ],
                out_specs=pl.BlockSpec((B, TV), lambda v: (0, v)),
            ),
            compiler_params=pltpu.CompilerParams(
                dimension_semantics=("parallel",),                 # megacore-shardable
            ),
        )(act, w_log_bf, b_log_f)
        if Vp != V:
            logits = logits[:, :V]

    # NOTE: B=8 uses only 8 MXU rows; batching more sequences per call is the
    # only way to raise MXU utilization for this recurrence (workload permitting).
    return logits.reshape(B, 1, -1), None


def feedforward_reference(idx, params):
    """Pure-JAX f32 reference mirroring the PyTorch forward (for validation)."""
    wte = params["wte"]
    x_emb = jnp.take(wte, idx, axis=0)        # (B, T, E)
    B, T, _ = x_emb.shape
    H = params["w_hh_t"].shape[0]
    h = jnp.zeros((B, H), jnp.float32)
    for t in range(T):
        gi = x_emb[:, t, :] @ params["w_ih_t"] + params["b_ih"]
        gh = h @ params["w_hh_t"] + params["b_hh"]
        i_r, i_z, i_n = jnp.split(gi, 3, axis=1)
        h_r, h_z, h_n = jnp.split(gh, 3, axis=1)
        r = jax.nn.sigmoid(i_r + h_r)
        z = jax.nn.sigmoid(i_z + h_z)
        n = jnp.tanh(i_n + r * h_n)
        h = (1.0 - z) * n + z * h
    a = jnp.maximum(h, 0.0)
    logits = a @ params["w_log_t"] + params["b_log"]
    return logits.reshape(B, 1, -1), None


def make_params(key, vocab_size, n_embd, hidden_dim):
    """Deterministic synthetic parameters matching the module's shapes."""
    ks = jax.random.split(key, 7)
    H, E, V = hidden_dim, n_embd, vocab_size

    def xavier(k, fan_in, fan_out, shape):
        a = jnp.sqrt(6.0 / (fan_in + fan_out))
        return jax.random.uniform(k, shape, jnp.float32, -a, a)

    u = 1.0 / jnp.sqrt(H)
    return {
        "wte": jax.random.normal(ks[0], (V, E), jnp.float32),          # nn.Embedding
        # GRUCell weight_ih (3H, E) default uniform, stored transposed (E, 3H)
        "w_ih_t": jax.random.uniform(ks[1], (E, 3 * H), jnp.float32, -u, u),
        # GRUCell weight_hh (3H, H) xavier-uniform, stored transposed (H, 3H)
        "w_hh_t": xavier(ks[2], H, 3 * H, (H, 3 * H)),
        "b_ih": jax.random.uniform(ks[3], (1, 3 * H), jnp.float32, -u, u),
        "b_hh": jax.random.uniform(ks[4], (1, 3 * H), jnp.float32, -u, u),
        # logits Linear weight (V, H) xavier-uniform, stored transposed (H, V)
        "w_log_t": xavier(ks[5], H, V, (H, V)),
        "b_log": jax.random.uniform(ks[6], (1, V), jnp.float32, -u, u),
    }
    # TODO(synk): fnn1/fnn2 exist in __init__ but are unused in forward(); omitted.


if __name__ == "__main__":
    # hidden_dim must be 256 because forward() hardcodes prev_hidden = zeros(b, 256).
    vocab_size, n_embd, hidden_dim, block_size, batch = 128, 32, 256, 8, 8

    key = jax.random.PRNGKey(0)
    pkey, ikey = jax.random.split(key)
    params = make_params(pkey, vocab_size, n_embd, hidden_dim)
    idx = jax.random.randint(ikey, (batch, block_size), 0, vocab_size, dtype=jnp.int32)

    logits, loss = feedforward_pallas(idx, params)
    logits = jax.block_until_ready(logits)

    ref_logits, _ = feedforward_reference(idx, params)
    assert logits.shape == (batch, 1, vocab_size)
    # bf16 MXU operands => looser tolerance than the pure-f32 reference.
    assert jnp.allclose(logits, ref_logits, atol=5e-2, rtol=5e-2), "mismatch vs reference"

    print("KERNEL_OK")
</pallas_src>

<mosaic_0001>
module attributes {stable_mosaic.version = 11 : i64} {
  func.func @gru_fused_logits_kernel(%arg0: i32, %arg1: memref<64x32xbf16, #tpu.memory_space<vmem>>, %arg2: memref<32x768xbf16, #tpu.memory_space<vmem>>, %arg3: memref<256x768xbf16, #tpu.memory_space<vmem>>, %arg4: memref<1x512xf32, #tpu.memory_space<vmem>>, %arg5: memref<1x256xf32, #tpu.memory_space<vmem>>, %arg6: memref<1x256xf32, #tpu.memory_space<vmem>>, %arg7: memref<256x128xbf16, #tpu.memory_space<vmem>>, %arg8: memref<1x128xf32, #tpu.memory_space<vmem>>, %arg9: memref<8x128xf32, #tpu.memory_space<vmem>>, %arg10: memref<64x768xf32, #tpu.memory_space<vmem>>, %arg11: memref<8x256xf32, #tpu.memory_space<vmem>>) attributes {dimension_semantics = [#tpu.dimension_semantics<arbitrary>], iteration_bounds = array<i64: 1>, scalar_prefetch = 0 : i64, scratch_operands = 2 : i64, tpu.core_type = #tpu.core_type<tc>, window_params = [{transform_indices = @transform_0, window_bounds = array<i64: 64, 32>}, {pipeline_mode = #tpu.pipeline_mode<synchronous>, transform_indices = @transform_1, window_bounds = array<i64: 32, 768>}, {pipeline_mode = #tpu.pipeline_mode<synchronous>, transform_indices = @transform_2, window_bounds = array<i64: 256, 768>}, {pipeline_mode = #tpu.pipeline_mode<synchronous>, transform_indices = @transform_3, window_bounds = array<i64: 1, 512>}, {pipeline_mode = #tpu.pipeline_mode<synchronous>, transform_indices = @transform_4, window_bounds = array<i64: 1, 256>}, {pipeline_mode = #tpu.pipeline_mode<synchronous>, transform_indices = @transform_5, window_bounds = array<i64: 1, 256>}, {pipeline_mode = #tpu.pipeline_mode<synchronous>, transform_indices = @transform_6, window_bounds = array<i64: 256, 128>}, {pipeline_mode = #tpu.pipeline_mode<synchronous>, transform_indices = @transform_7, window_bounds = array<i64: 1, 128>}, {pipeline_mode = #tpu.pipeline_mode<synchronous>, transform_indices = @transform_8, window_bounds = array<i64: 8, 128>}]} {
    %c0_i32 = arith.constant 0 : i32
    %0 = arith.cmpi eq, %arg0, %c0_i32 : i32
    %1 = arith.extui %0 : i1 to i32
    %c0_i32_0 = arith.constant 0 : i32
    %2 = arith.cmpi ne, %1, %c0_i32_0 : i32
    scf.if %2 {
      %cst_67 = arith.constant 0.000000e+00 : f32
      %245 = vector.broadcast %cst_67 : f32 to vector<8x256xf32>
      %c0_68 = arith.constant 0 : index
      %c0_69 = arith.constant 0 : index
      %246 = vector.load %arg11[%c0_68, %c0_69] : memref<8x256xf32, #tpu.memory_space<vmem>>, vector<8x256xf32>
      tpu.vector_store %arg11[%c0_68, %c0_69], %245 {strides = array<i32>} : memref<8x256xf32, #tpu.memory_space<vmem>>, vector<8x256xf32>,
    } else {
    }
    %c0 = arith.constant 0 : index
    %c0_1 = arith.constant 0 : index
    %3 = vector.load %arg1[%c0, %c0_1] : memref<64x32xbf16, #tpu.memory_space<vmem>>, vector<64x32xbf16>
    %c0_2 = arith.constant 0 : index
    %c0_3 = arith.constant 0 : index
    %4 = vector.load %arg2[%c0_2, %c0_3] : memref<32x768xbf16, #tpu.memory_space<vmem>>, vector<32x768xbf16>
    %cst = arith.constant dense<0.000000e+00> : vector<64x768xf32>
    %5 = tpu.matmul %3, %4, %cst {dimension_numbers = #tpu.dot_dimension_numbers<[1], [0], [0], [1], [0, 0, 1, 1], [], []>} : vector<64x32xbf16>, vector<32x768xbf16>, vector<64x768xf32> -> vector<64x768xf32>
    %c0_4 = arith.constant 0 : index
    %c0_5 = arith.constant 0 : index
    %6 = vector.load %arg10[%c0_4, %c0_5] : memref<64x768xf32, #tpu.memory_space<vmem>>, vector<64x768xf32>
    tpu.vector_store %arg10[%c0_4, %c0_5], %5 {strides = array<i32>} : memref<64x768xf32, #tpu.memory_space<vmem>>, vector<64x768xf32>,
    %c0_6 = arith.constant 0 : index
    %c0_7 = arith.constant 0 : index
    %7 = vector.load %arg4[%c0_6, %c0_7] : memref<1x512xf32, #tpu.memory_space<vmem>>, vector<1x512xf32>
    %8 = vector.shape_cast %7 : vector<1x512xf32> to vector<1x512xf32>
    %9 = vector.broadcast %8 : vector<1x512xf32> to vector<8x512xf32>
    %c0_8 = arith.constant 0 : index
    %c0_9 = arith.constant 0 : index
    %10 = vector.load %arg5[%c0_8, %c0_9] : memref<1x256xf32, #tpu.memory_space<vmem>>, vector<1x256xf32>
    %11 = vector.shape_cast %10 : vector<1x256xf32> to vector<1x256xf32>
    %12 = vector.broadcast %11 : vector<1x256xf32> to vector<8x256xf32>
    %c0_10 = arith.constant 0 : index
    %c0_11 = arith.constant 0 : index
    %13 = vector.load %arg6[%c0_10, %c0_11] : memref<1x256xf32, #tpu.memory_space<vmem>>, vector<1x256xf32>
    %14 = vector.shape_cast %13 : vector<1x256xf32> to vector<1x256xf32>
    %15 = vector.broadcast %14 : vector<1x256xf32> to vector<8x256xf32>
    %c0_12 = arith.constant 0 : index
    %c0_13 = arith.constant 0 : index
    %16 = vector.load %arg11[%c0_12, %c0_13] : memref<8x256xf32, #tpu.memory_space<vmem>>, vector<8x256xf32>
    %c0_i32_14 = arith.constant 0 : i32
    %c8_i32 = arith.constant 8 : i32
    %17 = arith.muli %c0_i32_14, %c8_i32 : i32
    %18 = tpu.assume_multiple %17, 8 : i32
    %19 = arith.index_cast %18 : i32 to index
    %c0_15 = arith.constant 0 : index
    %20 = vector.load %arg10[%19, %c0_15] : memref<64x768xf32, #tpu.memory_space<vmem>>, vector<8x768xf32>
    %21 = arith.truncf %16 : vector<8x256xf32> to vector<8x256xbf16>
    %c0_16 = arith.constant 0 : index
    %c0_17 = arith.constant 0 : index
    %22 = vector.load %arg3[%c0_16, %c0_17] : memref<256x768xbf16, #tpu.memory_space<vmem>>, vector<256x768xbf16>
    %cst_18 = arith.constant dense<0.000000e+00> : vector<8x768xf32>
    %23 = tpu.matmul %21, %22, %cst_18 {dimension_numbers = #tpu.dot_dimension_numbers<[1], [0], [0], [1], [0, 0, 1, 1], [], []>} : vector<8x256xbf16>, vector<256x768xbf16>, vector<8x768xf32> -> vector<8x768xf32>
    %24 = vector.extract_strided_slice %20 {offsets = [0, 0], sizes = [8, 512], strides = [1, 1]} : vector<8x768xf32> to vector<8x512xf32>
    %25 = vector.extract_strided_slice %23 {offsets = [0, 0], sizes = [8, 512], strides = [1, 1]} : vector<8x768xf32> to vector<8x512xf32>
    %26 = arith.addf %24, %25 : vector<8x512xf32>
    %27 = arith.addf %26, %9 : vector<8x512xf32>
    %28 = arith.negf %27 : vector<8x512xf32>
    %29 = math.exp %28 : vector<8x512xf32>
    %cst_19 = arith.constant 1.000000e+00 : f32
    %30 = vector.broadcast %cst_19 : f32 to vector<8x512xf32>
    %31 = arith.addf %30, %29 : vector<8x512xf32>
    %32 = arith.divf %30, %31 : vector<8x512xf32>
    %33 = vector.extract_strided_slice %32 {offsets = [0, 0], sizes = [8, 256], strides = [1, 1]} : vector<8x512xf32> to vector<8x256xf32>
    %34 = vector.extract_strided_slice %32 {offsets = [0, 256], sizes = [8, 256], strides = [1, 1]} : vector<8x512xf32> to vector<8x256xf32>
    %35 = vector.extract_strided_slice %20 {offsets = [0, 512], sizes = [8, 256], strides = [1, 1]} : vector<8x768xf32> to vector<8x256xf32>
    %36 = arith.addf %35, %12 : vector<8x256xf32>
    %37 = vector.extract_strided_slice %23 {offsets = [0, 512], sizes = [8, 256], strides = [1, 1]} : vector<8x768xf32> to vector<8x256xf32>
    %38 = arith.addf %37, %15 : vector<8x256xf32>
    %39 = arith.mulf %33, %38 : vector<8x256xf32>
    %40 = arith.addf %36, %39 : vector<8x256xf32>
    %41 = math.tanh %40 : vector<8x256xf32>
    %42 = arith.subf %16, %41 : vector<8x256xf32>
    %43 = arith.mulf %34, %42 : vector<8x256xf32>
    %44 = arith.addf %41, %43 : vector<8x256xf32>
    %c1_i32 = arith.constant 1 : i32
    %c8_i32_20 = arith.constant 8 : i32
    %45 = arith.muli %c1_i32, %c8_i32_20 : i32
    %46 = tpu.assume_multiple %45, 8 : i32
    %47 = arith.index_cast %46 : i32 to index
    %c0_21 = arith.constant 0 : index
    %48 = vector.load %arg10[%47, %c0_21] : memref<64x768xf32, #tpu.memory_space<vmem>>, vector<8x768xf32>
    %49 = arith.truncf %44 : vector<8x256xf32> to vector<8x256xbf16>
    %c0_22 = arith.constant 0 : index
    %c0_23 = arith.constant 0 : index
    %50 = vector.load %arg3[%c0_22, %c0_23] : memref<256x768xbf16, #tpu.memory_space<vmem>>, vector<256x768xbf16>
    %cst_24 = arith.constant dense<0.000000e+00> : vector<8x768xf32>
    %51 = tpu.matmul %49, %50, %cst_24 {dimension_numbers = #tpu.dot_dimension_numbers<[1], [0], [0], [1], [0, 0, 1, 1], [], []>} : vector<8x256xbf16>, vector<256x768xbf16>, vector<8x768xf32> -> vector<8x768xf32>
    %52 = vector.extract_strided_slice %48 {offsets = [0, 0], sizes = [8, 512], strides = [1, 1]} : vector<8x768xf32> to vector<8x512xf32>
    %53 = vector.extract_strided_slice %51 {offsets = [0, 0], sizes = [8, 512], strides = [1, 1]} : vector<8x768xf32> to vector<8x512xf32>
    %54 = arith.addf %52, %53 : vector<8x512xf32>
    %55 = arith.addf %54, %9 : vector<8x512xf32>
    %56 = arith.negf %55 : vector<8x512xf32>
    %57 = math.exp %56 : vector<8x512xf32>
    %cst_25 = arith.constant 1.000000e+00 : f32
    %58 = vector.broadcast %cst_25 : f32 to vector<8x512xf32>
    %59 = arith.addf %58, %57 : vector<8x512xf32>
    %60 = arith.divf %58, %59 : vector<8x512xf32>
    %61 = vector.extract_strided_slice %60 {offsets = [0, 0], sizes = [8, 256], strides = [1, 1]} : vector<8x512xf32> to vector<8x256xf32>
    %62 = vector.extract_strided_slice %60 {offsets = [0, 256], sizes = [8, 256], strides = [1, 1]} : vector<8x512xf32> to vector<8x256xf32>
    %63 = vector.extract_strided_slice %48 {offsets = [0, 512], sizes = [8, 256], strides = [1, 1]} : vector<8x768xf32> to vector<8x256xf32>
    %64 = arith.addf %63, %12 : vector<8x256xf32>
    %65 = vector.extract_strided_slice %51 {offsets = [0, 512], sizes = [8, 256], strides = [1, 1]} : vector<8x768xf32> to vector<8x256xf32>
    %66 = arith.addf %65, %15 : vector<8x256xf32>
    %67 = arith.mulf %61, %66 : vector<8x256xf32>
    %68 = arith.addf %64, %67 : vector<8x256xf32>
    %69 = math.tanh %68 : vector<8x256xf32>
    %70 = arith.subf %44, %69 : vector<8x256xf32>
    %71 = arith.mulf %62, %70 : vector<8x256xf32>
    %72 = arith.addf %69, %71 : vector<8x256xf32>
    %c2_i32 = arith.constant 2 : i32
    %c8_i32_26 = arith.constant 8 : i32
    %73 = arith.muli %c2_i32, %c8_i32_26 : i32
    %74 = tpu.assume_multiple %73, 8 : i32
    %75 = arith.index_cast %74 : i32 to index
    %c0_27 = arith.constant 0 : index
    %76 = vector.load %arg10[%75, %c0_27] : memref<64x768xf32, #tpu.memory_space<vmem>>, vector<8x768xf32>
    %77 = arith.truncf %72 : vector<8x256xf32> to vector<8x256xbf16>
    %c0_28 = arith.constant 0 : index
    %c0_29 = arith.constant 0 : index
    %78 = vector.load %arg3[%c0_28, %c0_29] : memref<256x768xbf16, #tpu.memory_space<vmem>>, vector<256x768xbf16>
    %cst_30 = arith.constant dense<0.000000e+00> : vector<8x768xf32>
    %79 = tpu.matmul %77, %78, %cst_30 {dimension_numbers = #tpu.dot_dimension_numbers<[1], [0], [0], [1], [0, 0, 1, 1], [], []>} : vector<8x256xbf16>, vector<256x768xbf16>, vector<8x768xf32> -> vector<8x768xf32>
    %80 = vector.extract_strided_slice %76 {offsets = [0, 0], sizes = [8, 512], strides = [1, 1]} : vector<8x768xf32> to vector<8x512xf32>
    %81 = vector.extract_strided_slice %79 {offsets = [0, 0], sizes = [8, 512], strides = [1, 1]} : vector<8x768xf32> to vector<8x512xf32>
    %82 = arith.addf %80, %81 : vector<8x512xf32>
    %83 = arith.addf %82, %9 : vector<8x512xf32>
    %84 = arith.negf %83 : vector<8x512xf32>
    %85 = math.exp %84 : vector<8x512xf32>
    %cst_31 = arith.constant 1.000000e+00 : f32
    %86 = vector.broadcast %cst_31 : f32 to vector<8x512xf32>
    %87 = arith.addf %86, %85 : vector<8x512xf32>
    %88 = arith.divf %86, %87 : vector<8x512xf32>
    %89 = vector.extract_strided_slice %88 {offsets = [0, 0], sizes = [8, 256], strides = [1, 1]} : vector<8x512xf32> to vector<8x256xf32>
    %90 = vector.extract_strided_slice %88 {offsets = [0, 256], sizes = [8, 256], strides = [1, 1]} : vector<8x512xf32> to vector<8x256xf32>
    %91 = vector.extract_strided_slice %76 {offsets = [0, 512], sizes = [8, 256], strides = [1, 1]} : vector<8x768xf32> to vector<8x256xf32>
    %92 = arith.addf %91, %12 : vector<8x256xf32>
    %93 = vector.extract_strided_slice %79 {offsets = [0, 512], sizes = [8, 256], strides = [1, 1]} : vector<8x768xf32> to vector<8x256xf32>
    %94 = arith.addf %93, %15 : vector<8x256xf32>
    %95 = arith.mulf %89, %94 : vector<8x256xf32>
    %96 = arith.addf %92, %95 : vector<8x256xf32>
    %97 = math.tanh %96 : vector<8x256xf32>
    %98 = arith.subf %72, %97 : vector<8x256xf32>
    %99 = arith.mulf %90, %98 : vector<8x256xf32>
    %100 = arith.addf %97, %99 : vector<8x256xf32>
    %c3_i32 = arith.constant 3 : i32
    %c8_i32_32 = arith.constant 8 : i32
    %101 = arith.muli %c3_i32, %c8_i32_32 : i32
    %102 = tpu.assume_multiple %101, 8 : i32
    %103 = arith.index_cast %102 : i32 to index
    %c0_33 = arith.constant 0 : index
    %104 = vector.load %arg10[%103, %c0_33] : memref<64x768xf32, #tpu.memory_space<vmem>>, vector<8x768xf32>
    %105 = arith.truncf %100 : vector<8x256xf32> to vector<8x256xbf16>
    %c0_34 = arith.constant 0 : index
    %c0_35 = arith.constant 0 : index
    %106 = vector.load %arg3[%c0_34, %c0_35] : memref<256x768xbf16, #tpu.memory_space<vmem>>, vector<256x768xbf16>
    %cst_36 = arith.constant dense<0.000000e+00> : vector<8x768xf32>
    %107 = tpu.matmul %105, %106, %cst_36 {dimension_numbers = #tpu.dot_dimension_numbers<[1], [0], [0], [1], [0, 0, 1, 1], [], []>} : vector<8x256xbf16>, vector<256x768xbf16>, vector<8x768xf32> -> vector<8x768xf32>
    %108 = vector.extract_strided_slice %104 {offsets = [0, 0], sizes = [8, 512], strides = [1, 1]} : vector<8x768xf32> to vector<8x512xf32>
    %109 = vector.extract_strided_slice %107 {offsets = [0, 0], sizes = [8, 512], strides = [1, 1]} : vector<8x768xf32> to vector<8x512xf32>
    %110 = arith.addf %108, %109 : vector<8x512xf32>
    %111 = arith.addf %110, %9 : vector<8x512xf32>
    %112 = arith.negf %111 : vector<8x512xf32>
    %113 = math.exp %112 : vector<8x512xf32>
    %cst_37 = arith.constant 1.000000e+00 : f32
    %114 = vector.broadcast %cst_37 : f32 to vector<8x512xf32>
    %115 = arith.addf %114, %113 : vector<8x512xf32>
    %116 = arith.divf %114, %115 : vector<8x512xf32>
    %117 = vector.extract_strided_slice %116 {offsets = [0, 0], sizes = [8, 256], strides = [1, 1]} : vector<8x512xf32> to vector<8x256xf32>
    %118 = vector.extract_strided_slice %116 {offsets = [0, 256], sizes = [8, 256], strides = [1, 1]} : vector<8x512xf32> to vector<8x256xf32>
    %119 = vector.extract_strided_slice %104 {offsets = [0, 512], sizes = [8, 256], strides = [1, 1]} : vector<8x768xf32> to vector<8x256xf32>
    %120 = arith.addf %119, %12 : vector<8x256xf32>
    %121 = vector.extract_strided_slice %107 {offsets = [0, 512], sizes = [8, 256], strides = [1, 1]} : vector<8x768xf32> to vector<8x256xf32>
    %122 = arith.addf %121, %15 : vector<8x256xf32>
    %123 = arith.mulf %117, %122 : vector<8x256xf32>
    %124 = arith.addf %120, %123 : vector<8x256xf32>
    %125 = math.tanh %124 : vector<8x256xf32>
    %126 = arith.subf %100, %125 : vector<8x256xf32>
    %127 = arith.mulf %118, %126 : vector<8x256xf32>
    %128 = arith.addf %125, %127 : vector<8x256xf32>
    %c4_i32 = arith.constant 4 : i32
    %c8_i32_38 = arith.constant 8 : i32
    %129 = arith.muli %c4_i32, %c8_i32_38 : i32
    %130 = tpu.assume_multiple %129, 8 : i32
    %131 = arith.index_cast %130 : i32 to index
    %c0_39 = arith.constant 0 : index
    %132 = vector.load %arg10[%131, %c0_39] : memref<64x768xf32, #tpu.memory_space<vmem>>, vector<8x768xf32>
    %133 = arith.truncf %128 : vector<8x256xf32> to vector<8x256xbf16>
    %c0_40 = arith.constant 0 : index
    %c0_41 = arith.constant 0 : index
    %134 = vector.load %arg3[%c0_40, %c0_41] : memref<256x768xbf16, #tpu.memory_space<vmem>>, vector<256x768xbf16>
    %cst_42 = arith.constant dense<0.000000e+00> : vector<8x768xf32>
    %135 = tpu.matmul %133, %134, %cst_42 {dimension_numbers = #tpu.dot_dimension_numbers<[1], [0], [0], [1], [0, 0, 1, 1], [], []>} : vector<8x256xbf16>, vector<256x768xbf16>, vector<8x768xf32> -> vector<8x768xf32>
    %136 = vector.extract_strided_slice %132 {offsets = [0, 0], sizes = [8, 512], strides = [1, 1]} : vector<8x768xf32> to vector<8x512xf32>
    %137 = vector.extract_strided_slice %135 {offsets = [0, 0], sizes = [8, 512], strides = [1, 1]} : vector<8x768xf32> to vector<8x512xf32>
    %138 = arith.addf %136, %137 : vector<8x512xf32>
    %139 = arith.addf %138, %9 : vector<8x512xf32>
    %140 = arith.negf %139 : vector<8x512xf32>
    %141 = math.exp %140 : vector<8x512xf32>
    %cst_43 = arith.constant 1.000000e+00 : f32
    %142 = vector.broadcast %cst_43 : f32 to vector<8x512xf32>
    %143 = arith.addf %142, %141 : vector<8x512xf32>
    %144 = arith.divf %142, %143 : vector<8x512xf32>
    %145 = vector.extract_strided_slice %144 {offsets = [0, 0], sizes = [8, 256], strides = [1, 1]} : vector<8x512xf32> to vector<8x256xf32>
    %146 = vector.extract_strided_slice %144 {offsets = [0, 256], sizes = [8, 256], strides = [1, 1]} : vector<8x512xf32> to vector<8x256xf32>
    %147 = vector.extract_strided_slice %132 {offsets = [0, 512], sizes = [8, 256], strides = [1, 1]} : vector<8x768xf32> to vector<8x256xf32>
    %148 = arith.addf %147, %12 : vector<8x256xf32>
    %149 = vector.extract_strided_slice %135 {offsets = [0, 512], sizes = [8, 256], strides = [1, 1]} : vector<8x768xf32> to vector<8x256xf32>
    %150 = arith.addf %149, %15 : vector<8x256xf32>
    %151 = arith.mulf %145, %150 : vector<8x256xf32>
    %152 = arith.addf %148, %151 : vector<8x256xf32>
    %153 = math.tanh %152 : vector<8x256xf32>
    %154 = arith.subf %128, %153 : vector<8x256xf32>
    %155 = arith.mulf %146, %154 : vector<8x256xf32>
    %156 = arith.addf %153, %155 : vector<8x256xf32>
    %c5_i32 = arith.constant 5 : i32
    %c8_i32_44 = arith.constant 8 : i32
    %157 = arith.muli %c5_i32, %c8_i32_44 : i32
    %158 = tpu.assume_multiple %157, 8 : i32
    %159 = arith.index_cast %158 : i32 to index
    %c0_45 = arith.constant 0 : index
    %160 = vector.load %arg10[%159, %c0_45] : memref<64x768xf32, #tpu.memory_space<vmem>>, vector<8x768xf32>
    %161 = arith.truncf %156 : vector<8x256xf32> to vector<8x256xbf16>
    %c0_46 = arith.constant 0 : index
    %c0_47 = arith.constant 0 : index
    %162 = vector.load %arg3[%c0_46, %c0_47] : memref<256x768xbf16, #tpu.memory_space<vmem>>, vector<256x768xbf16>
    %cst_48 = arith.constant dense<0.000000e+00> : vector<8x768xf32>
    %163 = tpu.matmul %161, %162, %cst_48 {dimension_numbers = #tpu.dot_dimension_numbers<[1], [0], [0], [1], [0, 0, 1, 1], [], []>} : vector<8x256xbf16>, vector<256x768xbf16>, vector<8x768xf32> -> vector<8x768xf32>
    %164 = vector.extract_strided_slice %160 {offsets = [0, 0], sizes = [8, 512], strides = [1, 1]} : vector<8x768xf32> to vector<8x512xf32>
    %165 = vector.extract_strided_slice %163 {offsets = [0, 0], sizes = [8, 512], strides = [1, 1]} : vector<8x768xf32> to vector<8x512xf32>
    %166 = arith.addf %164, %165 : vector<8x512xf32>
    %167 = arith.addf %166, %9 : vector<8x512xf32>
    %168 = arith.negf %167 : vector<8x512xf32>
    %169 = math.exp %168 : vector<8x512xf32>
    %cst_49 = arith.constant 1.000000e+00 : f32
    %170 = vector.broadcast %cst_49 : f32 to vector<8x512xf32>
    %171 = arith.addf %170, %169 : vector<8x512xf32>
    %172 = arith.divf %170, %171 : vector<8x512xf32>
    %173 = vector.extract_strided_slice %172 {offsets = [0, 0], sizes = [8, 256], strides = [1, 1]} : vector<8x512xf32> to vector<8x256xf32>
    %174 = vector.extract_strided_slice %172 {offsets = [0, 256], sizes = [8, 256], strides = [1, 1]} : vector<8x512xf32> to vector<8x256xf32>
    %175 = vector.extract_strided_slice %160 {offsets = [0, 512], sizes = [8, 256], strides = [1, 1]} : vector<8x768xf32> to vector<8x256xf32>
    %176 = arith.addf %175, %12 : vector<8x256xf32>
    %177 = vector.extract_strided_slice %163 {offsets = [0, 512], sizes = [8, 256], strides = [1, 1]} : vector<8x768xf32> to vector<8x256xf32>
    %178 = arith.addf %177, %15 : vector<8x256xf32>
    %179 = arith.mulf %173, %178 : vector<8x256xf32>
    %180 = arith.addf %176, %179 : vector<8x256xf32>
    %181 = math.tanh %180 : vector<8x256xf32>
    %182 = arith.subf %156, %181 : vector<8x256xf32>
    %183 = arith.mulf %174, %182 : vector<8x256xf32>
    %184 = arith.addf %181, %183 : vector<8x256xf32>
    %c6_i32 = arith.constant 6 : i32
    %c8_i32_50 = arith.constant 8 : i32
    %185 = arith.muli %c6_i32, %c8_i32_50 : i32
    %186 = tpu.assume_multiple %185, 8 : i32
    %187 = arith.index_cast %186 : i32 to index
    %c0_51 = arith.constant 0 : index
    %188 = vector.load %arg10[%187, %c0_51] : memref<64x768xf32, #tpu.memory_space<vmem>>, vector<8x768xf32>
    %189 = arith.truncf %184 : vector<8x256xf32> to vector<8x256xbf16>
    %c0_52 = arith.constant 0 : index
    %c0_53 = arith.constant 0 : index
    %190 = vector.load %arg3[%c0_52, %c0_53] : memref<256x768xbf16, #tpu.memory_space<vmem>>, vector<256x768xbf16>
    %cst_54 = arith.constant dense<0.000000e+00> : vector<8x768xf32>
    %191 = tpu.matmul %189, %190, %cst_54 {dimension_numbers = #tpu.dot_dimension_numbers<[1], [0], [0], [1], [0, 0, 1, 1], [], []>} : vector<8x256xbf16>, vector<256x768xbf16>, vector<8x768xf32> -> vector<8x768xf32>
    %192 = vector.extract_strided_slice %188 {offsets = [0, 0], sizes = [8, 512], strides = [1, 1]} : vector<8x768xf32> to vector<8x512xf32>
    %193 = vector.extract_strided_slice %191 {offsets = [0, 0], sizes = [8, 512], strides = [1, 1]} : vector<8x768xf32> to vector<8x512xf32>
    %194 = arith.addf %192, %193 : vector<8x512xf32>
    %195 = arith.addf %194, %9 : vector<8x512xf32>
    %196 = arith.negf %195 : vector<8x512xf32>
    %197 = math.exp %196 : vector<8x512xf32>
    %cst_55 = arith.constant 1.000000e+00 : f32
    %198 = vector.broadcast %cst_55 : f32 to vector<8x512xf32>
    %199 = arith.addf %198, %197 : vector<8x512xf32>
    %200 = arith.divf %198, %199 : vector<8x512xf32>
    %201 = vector.extract_strided_slice %200 {offsets = [0, 0], sizes = [8, 256], strides = [1, 1]} : vector<8x512xf32> to vector<8x256xf32>
    %202 = vector.extract_strided_slice %200 {offsets = [0, 256], sizes = [8, 256], strides = [1, 1]} : vector<8x512xf32> to vector<8x256xf32>
    %203 = vector.extract_strided_slice %188 {offsets = [0, 512], sizes = [8, 256], strides = [1, 1]} : vector<8x768xf32> to vector<8x256xf32>
    %204 = arith.addf %203, %12 : vector<8x256xf32>
    %205 = vector.extract_strided_slice %191 {offsets = [0, 512], sizes = [8, 256], strides = [1, 1]} : vector<8x768xf32> to vector<8x256xf32>
    %206 = arith.addf %205, %15 : vector<8x256xf32>
    %207 = arith.mulf %201, %206 : vector<8x256xf32>
    %208 = arith.addf %204, %207 : vector<8x256xf32>
    %209 = math.tanh %208 : vector<8x256xf32>
    %210 = arith.subf %184, %209 : vector<8x256xf32>
    %211 = arith.mulf %202, %210 : vector<8x256xf32>
    %212 = arith.addf %209, %211 : vector<8x256xf32>
    %c7_i32 = arith.constant 7 : i32
    %c8_i32_56 = arith.constant 8 : i32
    %213 = arith.muli %c7_i32, %c8_i32_56 : i32
    %214 = tpu.assume_multiple %213, 8 : i32
    %215 = arith.index_cast %214 : i32 to index
    %c0_57 = arith.constant 0 : index
    %216 = vector.load %arg10[%215, %c0_57] : memref<64x768xf32, #tpu.memory_space<vmem>>, vector<8x768xf32>
    %217 = arith.truncf %212 : vector<8x256xf32> to vector<8x256xbf16>
    %c0_58 = arith.constant 0 : index
    %c0_59 = arith.constant 0 : index
    %218 = vector.load %arg3[%c0_58, %c0_59] : memref<256x768xbf16, #tpu.memory_space<vmem>>, vector<256x768xbf16>
    %cst_60 = arith.constant dense<0.000000e+00> : vector<8x768xf32>
    %219 = tpu.matmul %217, %218, %cst_60 {dimension_numbers = #tpu.dot_dimension_numbers<[1], [0], [0], [1], [0, 0, 1, 1], [], []>} : vector<8x256xbf16>, vector<256x768xbf16>, vector<8x768xf32> -> vector<8x768xf32>
    %220 = vector.extract_strided_slice %216 {offsets = [0, 0], sizes = [8, 512], strides = [1, 1]} : vector<8x768xf32> to vector<8x512xf32>
    %221 = vector.extract_strided_slice %219 {offsets = [0, 0], sizes = [8, 512], strides = [1, 1]} : vector<8x768xf32> to vector<8x512xf32>
    %222 = arith.addf %220, %221 : vector<8x512xf32>
    %223 = arith.addf %222, %9 : vector<8x512xf32>
    %224 = arith.negf %223 : vector<8x512xf32>
    %225 = math.exp %224 : vector<8x512xf32>
    %cst_61 = arith.constant 1.000000e+00 : f32
    %226 = vector.broadcast %cst_61 : f32 to vector<8x512xf32>
    %227 = arith.addf %226, %225 : vector<8x512xf32>
    %228 = arith.divf %226, %227 : vector<8x512xf32>
    %229 = vector.extract_strided_slice %228 {offsets = [0, 0], sizes = [8, 256], strides = [1, 1]} : vector<8x512xf32> to vector<8x256xf32>
    %230 = vector.extract_strided_slice %228 {offsets = [0, 256], sizes = [8, 256], strides = [1, 1]} : vector<8x512xf32> to vector<8x256xf32>
    %231 = vector.extract_strided_slice %216 {offsets = [0, 512], sizes = [8, 256], strides = [1, 1]} : vector<8x768xf32> to vector<8x256xf32>
    %232 = arith.addf %231, %12 : vector<8x256xf32>
    %233 = vector.extract_strided_slice %219 {offsets = [0, 512], sizes = [8, 256], strides = [1, 1]} : vector<8x768xf32> to vector<8x256xf32>
    %234 = arith.addf %233, %15 : vector<8x256xf32>
    %235 = arith.mulf %229, %234 : vector<8x256xf32>
    %236 = arith.addf %232, %235 : vector<8x256xf32>
    %237 = math.tanh %236 : vector<8x256xf32>
    %238 = arith.subf %212, %237 : vector<8x256xf32>
    %239 = arith.mulf %230, %238 : vector<8x256xf32>
    %240 = arith.addf %237, %239 : vector<8x256xf32>
    %c8_i32_62 = arith.constant 8 : i32
    %c0_63 = arith.constant 0 : index
    %c0_64 = arith.constant 0 : index
    %241 = vector.load %arg11[%c0_63, %c0_64] : memref<8x256xf32, #tpu.memory_space<vmem>>, vector<8x256xf32>
    tpu.vector_store %arg11[%c0_63, %c0_64], %240 {strides = array<i32>} : memref<8x256xf32, #tpu.memory_space<vmem>>, vector<8x256xf32>,
    %c0_i32_65 = arith.constant 0 : i32
    %242 = arith.cmpi eq, %arg0, %c0_i32_65 : i32
    %243 = arith.extui %242 : i1 to i32
    %c0_i32_66 = arith.constant 0 : i32
    %244 = arith.cmpi ne, %243, %c0_i32_66 : i32
    scf.if %244 {
      %cst_67 = arith.constant 0.000000e+00 : f32
      %245 = vector.broadcast %cst_67 : f32 to vector<8x256xf32>
      %246 = arith.maximumf %240, %245 : vector<8x256xf32>
      %247 = arith.truncf %246 : vector<8x256xf32> to vector<8x256xbf16>
      %c0_68 = arith.constant 0 : index
      %c0_69 = arith.constant 0 : index
      %248 = vector.load %arg7[%c0_68, %c0_69] : memref<256x128xbf16, #tpu.memory_space<vmem>>, vector<256x128xbf16>
      %cst_70 = arith.constant dense<0.000000e+00> : vector<8x128xf32>
      %249 = tpu.matmul %247, %248, %cst_70 {dimension_numbers = #tpu.dot_dimension_numbers<[1], [0], [0], [1], [0, 0, 1, 1], [], []>} : vector<8x256xbf16>, vector<256x128xbf16>, vector<8x128xf32> -> vector<8x128xf32>
      %c0_71 = arith.constant 0 : index
      %c0_72 = arith.constant 0 : index
      %250 = vector.load %arg8[%c0_71, %c0_72] : memref<1x128xf32, #tpu.memory_space<vmem>>, vector<1x128xf32>
      %251 = vector.broadcast %250 : vector<1x128xf32> to vector<8x128xf32>
      %252 = arith.addf %249, %251 : vector<8x128xf32>
      %c0_73 = arith.constant 0 : index
      %c0_74 = arith.constant 0 : index
      %253 = vector.load %arg9[%c0_73, %c0_74] : memref<8x128xf32, #tpu.memory_space<vmem>>, vector<8x128xf32>
      tpu.vector_store %arg9[%c0_73, %c0_74], %252 {strides = array<i32>} : memref<8x128xf32, #tpu.memory_space<vmem>>, vector<8x128xf32>,
    } else {
    }
    return
  }
  func.func @transform_0(%arg0: i32) -> (i32, i32) {
    %c0_i32 = arith.constant 0 : i32
    %c0_i32_0 = arith.constant 0 : i32
    return %arg0, %c0_i32 : i32, i32
  }
  func.func @transform_1(%arg0: i32) -> (i32, i32) {
    %c0_i32 = arith.constant 0 : i32
    %c0_i32_0 = arith.constant 0 : i32
    %c0_i32_1 = arith.constant 0 : i32
    return %c0_i32, %c0_i32_0 : i32, i32
  }
  func.func @transform_2(%arg0: i32) -> (i32, i32) {
    %c0_i32 = arith.constant 0 : i32
    %c0_i32_0 = arith.constant 0 : i32
    %c0_i32_1 = arith.constant 0 : i32
    return %c0_i32, %c0_i32_0 : i32, i32
  }
  func.func @transform_3(%arg0: i32) -> (i32, i32) {
    %c0_i32 = arith.constant 0 : i32
    %c0_i32_0 = arith.constant 0 : i32
    %c0_i32_1 = arith.constant 0 : i32
    return %c0_i32, %c0_i32_0 : i32, i32
  }
  func.func @transform_4(%arg0: i32) -> (i32, i32) {
    %c0_i32 = arith.constant 0 : i32
    %c0_i32_0 = arith.constant 0 : i32
    %c0_i32_1 = arith.constant 0 : i32
    return %c0_i32, %c0_i32_0 : i32, i32
  }
  func.func @transform_5(%arg0: i32) -> (i32, i32) {
    %c0_i32 = arith.constant 0 : i32
    %c0_i32_0 = arith.constant 0 : i32
    %c0_i32_1 = arith.constant 0 : i32
    return %c0_i32, %c0_i32_0 : i32, i32
  }
  func.func @transform_6(%arg0: i32) -> (i32, i32) {
    %c0_i32 = arith.constant 0 : i32
    %c0_i32_0 = arith.constant 0 : i32
    %c0_i32_1 = arith.constant 0 : i32
    return %c0_i32, %c0_i32_0 : i32, i32
  }
  func.func @transform_7(%arg0: i32) -> (i32, i32) {
    %c0_i32 = arith.constant 0 : i32
    %c0_i32_0 = arith.constant 0 : i32
    %c0_i32_1 = arith.constant 0 : i32
    return %c0_i32, %c0_i32_0 : i32, i32
  }
  func.func @transform_8(%arg0: i32) -> (i32, i32) {
    %c0_i32 = arith.constant 0 : i32
    %c0_i32_0 = arith.constant 0 : i32
    %c0_i32_1 = arith.constant 0 : i32
    return %c0_i32, %c0_i32_0 : i32, i32
  }
}

</mosaic_0001>

<llo_original>
// kernel: tpu_custom_call.1
$region0: #{tpu_custom_call.1}
  #allocation0 [shape = 'u32[]', space=smem, size = 0x4, offset = 0x4, fixed_abs, tag = 'smem constant byte address 0x4 - core index']
  #allocation1 [shape = 'u32[72,128]{1,0:T(1,128)}', space=vmem, size = 0x9000, scoped, tag = 'internal scratch']
  #allocation2 [shape = 'f32[64,768]{1,0:T(8,128)}', space=vmem, size = 0x30000, scoped, tag = 'scratch operand']
  #allocation3 [shape = 'f32[8,256]{1,0:T(8,128)}', space=vmem, size = 0x2000, scoped, tag = 'scratch operand']
  %s0 = inlined_call_operand.vmem [shape: bf16[64,32], index: 0, kind: input, shape index: {}]
  %s1 = inlined_call_operand.hbm [shape: bf16[32,768], index: 1, kind: input, shape index: {}]
  %s2 = inlined_call_operand.hbm [shape: bf16[256,768], index: 2, kind: input, shape index: {}]
  %s3 = inlined_call_operand.vmem [shape: f32[1,512], index: 3, kind: input, shape index: {}]
  %s4 = inlined_call_operand.vmem [shape: f32[1,256], index: 4, kind: input, shape index: {}]
  %s5 = inlined_call_operand.vmem [shape: f32[1,256], index: 5, kind: input, shape index: {}]
  %s6 = inlined_call_operand.hbm [shape: bf16[256,128], index: 6, kind: input, shape index: {}]
  %s7 = inlined_call_operand.vmem [shape: f32[1,128], index: 7, kind: input, shape index: {}]
  %s8 = inlined_call_operand.hbm [shape: f32[8,128], index: 8, kind: output, shape index: {}]
  %s9 = sld [smem:[#allocation0]]
  $region62: #{tpu_custom_call.1} parent=0
    _
  %s11 = ssub.s32 1, %s9
  %s12 = scalar_select 0, %s11, %s9
  $region1: #{tpu_custom_call.1} parent=0
    #allocation4 [shape = 'u8[49152]{0}', space=vmem, size = 0xc000, scoped, tag = 'input window, operand 1, single buffered']
    #allocation5 [shape = 's32[1]{0}', space=sflag, size = 0x4, scoped, tag = 'scoped memory for tpu_custom_call.1']
    #allocation6 [shape = 's32[1]{0}', space=sflag, size = 0x4, scoped, tag = 'scoped memory for tpu_custom_call.1']
    #allocation7 [shape = 'u8[393216]{0}', space=vmem, size = 0x60000, scoped, tag = 'input window, operand 2, single buffered']
    #allocation8 [shape = 's32[1]{0}', space=sflag, size = 0x4, scoped, tag = 'scoped memory for tpu_custom_call.1']
    #allocation9 [shape = 'u8[65536]{0}', space=vmem, size = 0x10000, scoped, tag = 'input window, operand 6, single buffered']
    #allocation10 [shape = 'u8[4096]{0}', space=vmem, size = 0x1000, scoped, tag = 'output window, operand 0, single buffered']
    %13 = vsyncpa [#allocation5], 0
    %14 = vsyncpa [#allocation8], 0
    %15 = vsyncpa [#allocation6], 0
    // Predicated region
    $region2: #{tpu_custom_call.1} parent=1 // pred_check
      _
    $region3: #{tpu_custom_call.1} parent=1 // pred_check_branch
      %17 = sbr.rel (0) target = $region5
    $region4: #{tpu_custom_call.1} parent=1 // pred_region
      _
    $region5: #{tpu_custom_call.1} parent=1 // pred_fallthru
      _
    // Predicated region
    $region6: #{tpu_custom_call.1} parent=1 // pred_check
      _
    $region7: #{tpu_custom_call.1} parent=1 // pred_check_branch
      %19 = sbr.rel (0) target = $region9
    $region8: #{tpu_custom_call.1} parent=1 // pred_region
      %21 = vsyncadd [#allocation5], 0
      %s22 = sshll.u32 %s1, 4
      %s23 = int_to_ptr.hbm [resolvable:$true] %s22
      %s24 = sshll.u32 [#allocation4], 4
      %s25 = int_to_ptr.vmem [resolvable:$true] %s24
      %30 = dma.hbm_to_vmem [thread:$0]  %s23, 1536, %s25, [#allocation5], 384, 384, 24
    $region9: #{tpu_custom_call.1} parent=1 // pred_fallthru
      _
    // Predicated region
    $region10: #{tpu_custom_call.1} parent=1 // pred_check
      _
    $region11: #{tpu_custom_call.1} parent=1 // pred_check_branch
      %32 = sbr.rel (0) target = $region13
    $region12: #{tpu_custom_call.1} parent=1 // pred_region
      %34 = vsyncadd [#allocation8], 0
      %s35 = sshll.u32 %s2, 4
      %s36 = int_to_ptr.hbm [resolvable:$true] %s35
      %s37 = sshll.u32 [#allocation7], 4
      %s38 = int_to_ptr.vmem [resolvable:$true] %s37
      %43 = dma.hbm_to_vmem [thread:$0]  %s36, 12288, %s38, [#allocation8], 384, 384, 24
    $region13: #{tpu_custom_call.1} parent=1 // pred_fallthru
      _
    // Predicated region
    $region14: #{tpu_custom_call.1} parent=1 // pred_check
      _
    $region15: #{tpu_custom_call.1} parent=1 // pred_check_branch
      %45 = sbr.rel (0) target = $region17
    $region16: #{tpu_custom_call.1} parent=1 // pred_region
      _
    $region17: #{tpu_custom_call.1} parent=1 // pred_fallthru
      _
    // Predicated region
    $region18: #{tpu_custom_call.1} parent=1 // pred_check
      _
    $region19: #{tpu_custom_call.1} parent=1 // pred_check_branch
      %47 = sbr.rel (0) target = $region21
    $region20: #{tpu_custom_call.1} parent=1 // pred_region
      _
    $region21: #{tpu_custom_call.1} parent=1 // pred_fallthru
      _
    // Predicated region
    $region22: #{tpu_custom_call.1} parent=1 // pred_check
      _
    $region23: #{tpu_custom_call.1} parent=1 // pred_check_branch
      %49 = sbr.rel (0) target = $region25
    $region24: #{tpu_custom_call.1} parent=1 // pred_region
      _
    $region25: #{tpu_custom_call.1} parent=1 // pred_fallthru
      _
    // Predicated region
    $region26: #{tpu_custom_call.1} parent=1 // pred_check
      _
    $region27: #{tpu_custom_call.1} parent=1 // pred_check_branch
      %51 = sbr.rel (0) target = $region29
    $region28: #{tpu_custom_call.1} parent=1 // pred_region
      %53 = vsyncadd [#allocation8], 0
      %s54 = sshll.u32 %s6, 4
      %s55 = int_to_ptr.hbm [resolvable:$true] %s54
      %s56 = sshll.u32 [#allocation9], 4
      %s57 = int_to_ptr.vmem [resolvable:$true] %s56
      %62 = dma.hbm_to_vmem [thread:$0]  %s55, 2048, %s57, [#allocation8], 64, 64, 4
    $region29: #{tpu_custom_call.1} parent=1 // pred_fallthru
      _
    // Predicated region
    $region30: #{tpu_custom_call.1} parent=1 // pred_check
      _
    $region31: #{tpu_custom_call.1} parent=1 // pred_check_branch
      %64 = sbr.rel (0) target = $region33
    $region32: #{tpu_custom_call.1} parent=1 // pred_region
      _
    $region33: #{tpu_custom_call.1} parent=1 // pred_fallthru
      _
    // Predicated region
    $region34: #{tpu_custom_call.1} parent=1 // pred_check
      _
    $region35: #{tpu_custom_call.1} parent=1 // pred_check_branch
      %66 = sbr.rel (0) target = $region37
    $region36: #{tpu_custom_call.1} parent=1 // pred_region
      %68 = dma.done [#allocation5], 1536
    $region37: #{tpu_custom_call.1} parent=1 // pred_fallthru
      _
    // Predicated region
    $region38: #{tpu_custom_call.1} parent=1 // pred_check
      _
    $region39: #{tpu_custom_call.1} parent=1 // pred_check_branch
      %70 = sbr.rel (0) target = $region41
    $region40: #{tpu_custom_call.1} parent=1 // pred_region
      %72 = dma.done [#allocation8], 12288
    $region41: #{tpu_custom_call.1} parent=1 // pred_fallthru
      _
    // Predicated region
    $region42: #{tpu_custom_call.1} parent=1 // pred_check
      _
    $region43: #{tpu_custom_call.1} parent=1 // pred_check_branch
      %74 = sbr.rel (0) target = $region45
    $region44: #{tpu_custom_call.1} parent=1 // pred_region
      %76 = dma.done [#allocation8], 2048
    $region45: #{tpu_custom_call.1} parent=1 // pred_fallthru
      _
    %p78 = scmp.eq.s32.totalorder 0, 0
    // Predicated region
    $region46: #{tpu_custom_call.1} parent=1 // pred_check
      %p79 = pneg %p78
    $region47: #{tpu_custom_call.1} parent=1 // pred_check_branch
      %81 = sbr.rel (%p79) target = $region49
    $region48: #{tpu_custom_call.1} parent=1 // pred_region
      %82 = vst [vmem:[#allocation3] sm:$0xff] 0.0
      %83 = vst [vmem:[#allocation3 + $0x8] sm:$0xff] 0.0
    $region49: #{tpu_custom_call.1} parent=1 // pred_fallthru
      _
    %v84 = vld [vmem:[%s0] sm:$0xf]
    %v85 = vld [vmem:[%s0 + $0x4] sm:$0xf]
    %v86 = vld [vmem:[%s0 + $0x8] sm:$0xf]
    %v87 = vld [vmem:[%s0 + $0xc] sm:$0xf]
    %v88 = vld [vmem:[%s0 + $0x10] sm:$0xf]
    %v89 = vld [vmem:[%s0 + $0x14] sm:$0xf]
    %v90 = vld [vmem:[%s0 + $0x18] sm:$0xf]
    %v91 = vld [vmem:[%s0 + $0x1c] sm:$0xf]
    %v92 = vld [vmem:[#allocation4] sm:$0xff]
    %v93 = vld [vmem:[#allocation4 + $0x8] sm:$0xff]
    %v94 = vld [vmem:[#allocation4 + $0x10] sm:$0xff]
    %v95 = vld [vmem:[#allocation4 + $0x18] sm:$0xff]
    %v96 = vld [vmem:[#allocation4 + $0x20] sm:$0xff]
    %v97 = vld [vmem:[#allocation4 + $0x28] sm:$0xff]
    %v98 = vld [vmem:[#allocation4 + $0x30] sm:$0xff]
    %v99 = vld [vmem:[#allocation4 + $0x38] sm:$0xff]
    %v100 = vld [vmem:[#allocation4 + $0x40] sm:$0xff]
    %v101 = vld [vmem:[#allocation4 + $0x48] sm:$0xff]
    %v102 = vld [vmem:[#allocation4 + $0x50] sm:$0xff]
    %v103 = vld [vmem:[#allocation4 + $0x58] sm:$0xff]
    %v112 = vunpack.c.l.b16 %v84
    %v113 = vunpack.c.l.b16 %v85
    %v114 = vunpack.c.l.b16 %v86
    %v115 = vunpack.c.l.b16 %v87
    %v116 = vunpack.c.l.b16 %v88
    %v117 = vunpack.c.l.b16 %v89
    %v118 = vunpack.c.l.b16 %v90
    %v119 = vunpack.c.l.b16 %v91
    %v120 = vpack.c.b16 %v113, %v112
    %v121 = vpack.c.b16 %v115, %v114
    %v122 = vpack.c.b16 %v117, %v116
    %v123 = vpack.c.b16 %v119, %v118
    %v136 = vunpack.c.l.b16 %v92
    %v137 = vunpack.c.h.b16 %v92
    %v138 = vunpack.c.l.b16 %v93
    %v139 = vunpack.c.h.b16 %v93
    %v140 = vunpack.c.l.b16 %v94
    %v141 = vunpack.c.h.b16 %v94
    %v142 = vunpack.c.l.b16 %v95
    %v143 = vunpack.c.h.b16 %v95
    %v144 = vunpack.c.l.b16 %v96
    %v145 = vunpack.c.h.b16 %v96
    %v146 = vunpack.c.l.b16 %v97
    %v147 = vunpack.c.h.b16 %v97
    %v148 = vunpack.c.l.b16 %v98
    %v149 = vunpack.c.h.b16 %v98
    %v150 = vunpack.c.l.b16 %v99
    %v151 = vunpack.c.h.b16 %v99
    %v152 = vunpack.c.l.b16 %v100
    %v153 = vunpack.c.h.b16 %v100
    %v154 = vunpack.c.l.b16 %v101
    %v155 = vunpack.c.h.b16 %v101
    %v156 = vunpack.c.l.b16 %v102
    %v157 = vunpack.c.h.b16 %v102
    %v158 = vunpack.c.l.b16 %v103
    %v159 = vunpack.c.h.b16 %v103
    %v160 = vpack.c.b16 %v142, %v136
    %v161 = vpack.c.b16 %v143, %v137
    %v162 = vpack.c.b16 %v144, %v138
    %v163 = vpack.c.b16 %v145, %v139
    %v164 = vpack.c.b16 %v146, %v140
    %v165 = vpack.c.b16 %v147, %v141
    %v166 = vpack.c.b16 %v154, %v148
    %v167 = vpack.c.b16 %v155, %v149
    %v168 = vpack.c.b16 %v156, %v150
    %v169 = vpack.c.b16 %v157, %v151
    %v170 = vpack.c.b16 %v158, %v152
    %v171 = vpack.c.b16 %v159, %v153
    %vm184 = vcmask 261120
    %v186 = vsel %vm184, %v120, 0
    %v189 = vsel %vm184, %v121, 0
    %v192 = vsel %vm184, %v122, 0
    %v195 = vsel %vm184, %v123, 0
    %197 = vmatpush.bf16.msra.mxu0 0
    %198 = vmatpush.bf16.msra.mxu0 0
    %199 = vmatpush.bf16.msra.mxu0 0
    %200 = vmatpush.bf16.msra.mxu0 0
    %201 = vmatpush.bf16.msra.mxu0 0
    %202 = vmatpush.bf16.msra.mxu0 0
    %203 = vmatpush.bf16.msra.mxu0 %v166
    %204 = vmatpush.bf16.msra.mxu0 %v160
    %205 = vmatmul.bf16.gmra.mxu0 %v186
    %v206 = vpop.f32.mrf.mxu0
    %v207 = vadd.f32 0.0, %v206
    %v208 = vpop.f32.mrf.mxu0
    %v209 = vadd.f32 0.0, %v208
    %210 = vmatmul.bf16.gmra.mxu0 %v189
    %v211 = vpop.f32.mrf.mxu0
    %v212 = vadd.f32 0.0, %v211
    %v213 = vpop.f32.mrf.mxu0
    %v214 = vadd.f32 0.0, %v213
    %215 = vmatmul.bf16.gmra.mxu0 %v192
    %v216 = vpop.f32.mrf.mxu0
    %v217 = vadd.f32 0.0, %v216
    %v218 = vpop.f32.mrf.mxu0
    %v219 = vadd.f32 0.0, %v218
    %220 = vmatmul.bf16.gmra.mxu0 %v195
    %v221 = vpop.f32.mrf.mxu0
    %v222 = vadd.f32 0.0, %v221
    %v223 = vpop.f32.mrf.mxu0
    %v224 = vadd.f32 0.0, %v223
    %225 = vdwg.mxu0
    %226 = vmatpush.bf16.msra.mxu0 0
    %227 = vmatpush.bf16.msra.mxu0 0
    %228 = vmatpush.bf16.msra.mxu0 0
    %229 = vmatpush.bf16.msra.mxu0 0
    %230 = vmatpush.bf16.msra.mxu0 0
    %231 = vmatpush.bf16.msra.mxu0 0
    %232 = vmatpush.bf16.msra.mxu0 %v167
    %233 = vmatpush.bf16.msra.mxu0 %v161
    %234 = vmatmul.bf16.gmra.mxu0 %v186
    %v235 = vpop.f32.mrf.mxu0
    %v236 = vadd.f32 0.0, %v235
    %v237 = vpop.f32.mrf.mxu0
    %v238 = vadd.f32 0.0, %v237
    %239 = vmatmul.bf16.gmra.mxu0 %v189
    %v240 = vpop.f32.mrf.mxu0
    %v241 = vadd.f32 0.0, %v240
    %v242 = vpop.f32.mrf.mxu0
    %v243 = vadd.f32 0.0, %v242
    %244 = vmatmul.bf16.gmra.mxu0 %v192
    %v245 = vpop.f32.mrf.mxu0
    %v246 = vadd.f32 0.0, %v245
    %v247 = vpop.f32.mrf.mxu0
    %v248 = vadd.f32 0.0, %v247
    %249 = vmatmul.bf16.gmra.mxu0 %v195
    %v250 = vpop.f32.mrf.mxu0
    %v251 = vadd.f32 0.0, %v250
    %v252 = vpop.f32.mrf.mxu0
    %v253 = vadd.f32 0.0, %v252
    %254 = vdwg.mxu0
    %255 = vmatpush.bf16.msra.mxu0 0
    %256 = vmatpush.bf16.msra.mxu0 0
    %257 = vmatpush.bf16.msra.mxu0 0
    %258 = vmatpush.bf16.msra.mxu0 0
    %259 = vmatpush.bf16.msra.mxu0 0
    %260 = vmatpush.bf16.msra.mxu0 0
    %261 = vmatpush.bf16.msra.mxu0 %v168
    %262 = vmatpush.bf16.msra.mxu0 %v162
    %263 = vmatmul.bf16.gmra.mxu0 %v186
    %v264 = vpop.f32.mrf.mxu0
    %v265 = vadd.f32 0.0, %v264
    %v266 = vpop.f32.mrf.mxu0
    %v267 = vadd.f32 0.0, %v266
    %268 = vmatmul.bf16.gmra.mxu0 %v189
    %v269 = vpop.f32.mrf.mxu0
    %v270 = vadd.f32 0.0, %v269
    %v271 = vpop.f32.mrf.mxu0
    %v272 = vadd.f32 0.0, %v271
    %273 = vmatmul.bf16.gmra.mxu0 %v192
    %v274 = vpop.f32.mrf.mxu0
    %v275 = vadd.f32 0.0, %v274
    %v276 = vpop.f32.mrf.mxu0
    %v277 = vadd.f32 0.0, %v276
    %278 = vmatmul.bf16.gmra.mxu0 %v195
    %v279 = vpop.f32.mrf.mxu0
    %v280 = vadd.f32 0.0, %v279
    %v281 = vpop.f32.mrf.mxu0
    %v282 = vadd.f32 0.0, %v281
    %283 = vdwg.mxu0
    %284 = vmatpush.bf16.msra.mxu0 0
    %285 = vmatpush.bf16.msra.mxu0 0
    %286 = vmatpush.bf16.msra.mxu0 0
    %287 = vmatpush.bf16.msra.mxu0 0
    %288 = vmatpush.bf16.msra.mxu0 0
    %289 = vmatpush.bf16.msra.mxu0 0
    %290 = vmatpush.bf16.msra.mxu0 %v169
    %291 = vmatpush.bf16.msra.mxu0 %v163
    %292 = vmatmul.bf16.gmra.mxu0 %v186
    %v293 = vpop.f32.mrf.mxu0
    %v294 = vadd.f32 0.0, %v293
    %v295 = vpop.f32.mrf.mxu0
    %v296 = vadd.f32 0.0, %v295
    %297 = vmatmul.bf16.gmra.mxu0 %v189
    %v298 = vpop.f32.mrf.mxu0
    %v299 = vadd.f32 0.0, %v298
    %v300 = vpop.f32.mrf.mxu0
    %v301 = vadd.f32 0.0, %v300
    %302 = vmatmul.bf16.gmra.mxu0 %v192
    %v303 = vpop.f32.mrf.mxu0
    %v304 = vadd.f32 0.0, %v303
    %v305 = vpop.f32.mrf.mxu0
    %v306 = vadd.f32 0.0, %v305
    %307 = vmatmul.bf16.gmra.mxu0 %v195
    %v308 = vpop.f32.mrf.mxu0
    %v309 = vadd.f32 0.0, %v308
    %v310 = vpop.f32.mrf.mxu0
    %v311 = vadd.f32 0.0, %v310
    %312 = vdwg.mxu0
    %313 = vmatpush.bf16.msra.mxu0 0
    %314 = vmatpush.bf16.msra.mxu0 0
    %315 = vmatpush.bf16.msra.mxu0 0
    %316 = vmatpush.bf16.msra.mxu0 0
    %317 = vmatpush.bf16.msra.mxu0 0
    %318 = vmatpush.bf16.msra.mxu0 0
    %319 = vmatpush.bf16.msra.mxu0 %v170
    %320 = vmatpush.bf16.msra.mxu0 %v164
    %321 = vmatmul.bf16.gmra.mxu0 %v186
    %v322 = vpop.f32.mrf.mxu0
    %v323 = vadd.f32 0.0, %v322
    %v324 = vpop.f32.mrf.mxu0
    %v325 = vadd.f32 0.0, %v324
    %326 = vmatmul.bf16.gmra.mxu0 %v189
    %v327 = vpop.f32.mrf.mxu0
    %v328 = vadd.f32 0.0, %v327
    %v329 = vpop.f32.mrf.mxu0
    %v330 = vadd.f32 0.0, %v329
    %331 = vmatmul.bf16.gmra.mxu0 %v192
    %v332 = vpop.f32.mrf.mxu0
    %v333 = vadd.f32 0.0, %v332
    %v334 = vpop.f32.mrf.mxu0
    %v335 = vadd.f32 0.0, %v334
    %336 = vmatmul.bf16.gmra.mxu0 %v195
    %v337 = vpop.f32.mrf.mxu0
    %v338 = vadd.f32 0.0, %v337
    %v339 = vpop.f32.mrf.mxu0
    %v340 = vadd.f32 0.0, %v339
    %341 = vdwg.mxu0
    %342 = vmatpush.bf16.msra.mxu0 0
    %343 = vmatpush.bf16.msra.mxu0 0
    %344 = vmatpush.bf16.msra.mxu0 0
    %345 = vmatpush.bf16.msra.mxu0 0
    %346 = vmatpush.bf16.msra.mxu0 0
    %347 = vmatpush.bf16.msra.mxu0 0
    %348 = vmatpush.bf16.msra.mxu0 %v171
    %349 = vmatpush.bf16.msra.mxu0 %v165
    %350 = vmatmul.bf16.gmra.mxu0 %v186
    %v351 = vpop.f32.mrf.mxu0
    %v352 = vadd.f32 0.0, %v351
    %v353 = vpop.f32.mrf.mxu0
    %v354 = vadd.f32 0.0, %v353
    %355 = vmatmul.bf16.gmra.mxu0 %v189
    %v356 = vpop.f32.mrf.mxu0
    %v357 = vadd.f32 0.0, %v356
    %v358 = vpop.f32.mrf.mxu0
    %v359 = vadd.f32 0.0, %v358
    %360 = vmatmul.bf16.gmra.mxu0 %v192
    %v361 = vpop.f32.mrf.mxu0
    %v362 = vadd.f32 0.0, %v361
    %v363 = vpop.f32.mrf.mxu0
    %v364 = vadd.f32 0.0, %v363
    %365 = vmatmul.bf16.gmra.mxu0 %v195
    %v366 = vpop.f32.mrf.mxu0
    %v367 = vadd.f32 0.0, %v366
    %v368 = vpop.f32.mrf.mxu0
    %v369 = vadd.f32 0.0, %v368
    %370 = vdwg.mxu0
    %371 = vst [vmem:[#allocation2] sm:$0xff] %v207
    %372 = vst [vmem:[#allocation2 + $0x8] sm:$0xff] %v236
    %373 = vst [vmem:[#allocation2 + $0x10] sm:$0xff] %v265
    %374 = vst [vmem:[#allocation2 + $0x18] sm:$0xff] %v294
    %375 = vst [vmem:[#allocation2 + $0x20] sm:$0xff] %v323
    %376 = vst [vmem:[#allocation2 + $0x28] sm:$0xff] %v352
    %377 = vst [vmem:[#allocation2 + $0x30] sm:$0xff] %v209
    %378 = vst [vmem:[#allocation2 + $0x38] sm:$0xff] %v238
    %379 = vst [vmem:[#allocation2 + $0x40] sm:$0xff] %v267
    %380 = vst [vmem:[#allocation2 + $0x48] sm:$0xff] %v296
    %381 = vst [vmem:[#allocation2 + $0x50] sm:$0xff] %v325
    %382 = vst [vmem:[#allocation2 + $0x58] sm:$0xff] %v354
    %383 = vst [vmem:[#allocation2 + $0x60] sm:$0xff] %v212
    %384 = vst [vmem:[#allocation2 + $0x68] sm:$0xff] %v241
    %385 = vst [vmem:[#allocation2 + $0x70] sm:$0xff] %v270
    %386 = vst [vmem:[#allocation2 + $0x78] sm:$0xff] %v299
    %387 = vst [vmem:[#allocation2 + $0x80] sm:$0xff] %v328
    %388 = vst [vmem:[#allocation2 + $0x88] sm:$0xff] %v357
    %389 = vst [vmem:[#allocation2 + $0x90] sm:$0xff] %v214
    %390 = vst [vmem:[#allocation2 + $0x98] sm:$0xff] %v243
    %391 = vst [vmem:[#allocation2 + $0xa0] sm:$0xff] %v272
    %392 = vst [vmem:[#allocation2 + $0xa8] sm:$0xff] %v301
    %393 = vst [vmem:[#allocation2 + $0xb0] sm:$0xff] %v330
    %394 = vst [vmem:[#allocation2 + $0xb8] sm:$0xff] %v359
    %395 = vst [vmem:[#allocation2 + $0xc0] sm:$0xff] %v217
    %396 = vst [vmem:[#allocation2 + $0xc8] sm:$0xff] %v246
    %397 = vst [vmem:[#allocation2 + $0xd0] sm:$0xff] %v275
    %398 = vst [vmem:[#allocation2 + $0xd8] sm:$0xff] %v304
    %399 = vst [vmem:[#allocation2 + $0xe0] sm:$0xff] %v333
    %400 = vst [vmem:[#allocation2 + $0xe8] sm:$0xff] %v362
    %401 = vst [vmem:[#allocation2 + $0xf0] sm:$0xff] %v219
    %402 = vst [vmem:[#allocation2 + $0xf8] sm:$0xff] %v248
    %403 = vst [vmem:[#allocation2 + $0x100] sm:$0xff] %v277
    %404 = vst [vmem:[#allocation2 + $0x108] sm:$0xff] %v306
    %405 = vst [vmem:[#allocation2 + $0x110] sm:$0xff] %v335
    %406 = vst [vmem:[#allocation2 + $0x118] sm:$0xff] %v364
    %407 = vst [vmem:[#allocation2 + $0x120] sm:$0xff] %v222
    %408 = vst [vmem:[#allocation2 + $0x128] sm:$0xff] %v251
    %409 = vst [vmem:[#allocation2 + $0x130] sm:$0xff] %v280
    %410 = vst [vmem:[#allocation2 + $0x138] sm:$0xff] %v309
    %411 = vst [vmem:[#allocation2 + $0x140] sm:$0xff] %v338
    %412 = vst [vmem:[#allocation2 + $0x148] sm:$0xff] %v367
    %413 = vst [vmem:[#allocation2 + $0x150] sm:$0xff] %v224
    %414 = vst [vmem:[#allocation2 + $0x158] sm:$0xff] %v253
    %415 = vst [vmem:[#allocation2 + $0x160] sm:$0xff] %v282
    %416 = vst [vmem:[#allocation2 + $0x168] sm:$0xff] %v311
    %417 = vst [vmem:[#allocation2 + $0x170] sm:$0xff] %v340
    %418 = vst [vmem:[#allocation2 + $0x178] sm:$0xff] %v369
    %v419 = vld [vmem:[%s3] sm:$0xf]
    %v421 = vperm.slane %v419, 0
    %v422 = vperm.slane %v419, 1
    %v423 = vperm.slane %v419, 2
    %v424 = vperm.slane %v419, 3
    %v429 = vld [vmem:[%s4] sm:$0x3]
    %v431 = vperm.slane %v429, 0
    %v432 = vperm.slane %v429, 1
    %v435 = vld [vmem:[%s5] sm:$0x3]
    %v437 = vperm.slane %v435, 0
    %v438 = vperm.slane %v435, 1
    %v441 = vld [vmem:[#allocation3] sm:$0xff]
    %v442 = vld [vmem:[#allocation3 + $0x8] sm:$0xff]
    %s443 = smul.u32 0, 6
    %s444 = smul.addr %s443, 8
    %s445 = scalar_lea.vmem [#allocation2], %s444
    %v446 = vld [vmem:[%s445] sm:$0xff]
    %v447 = vld [vmem:[%s445 + $0x8] sm:$0xff]
    %v448 = vld [vmem:[%s445 + $0x10] sm:$0xff]
    %v449 = vld [vmem:[%s445 + $0x18] sm:$0xff]
    %v450 = vld [vmem:[%s445 + $0x20] sm:$0xff]
    %v451 = vld [vmem:[%s445 + $0x28] sm:$0xff]
    %v452 = vpack.c.bf16 %v441, %v441
    %v453 = vpack.c.bf16 %v442, %v442
    %v454 = vld [vmem:[#allocation7] sm:$0xff]
    %v455 = vld [vmem:[#allocation7 + $0x8] sm:$0xff]
    %v456 = vld [vmem:[#allocation7 + $0x10] sm:$0xff]
    %v457 = vld [vmem:[#allocation7 + $0x18] sm:$0xff]
    %v458 = vld [vmem:[#allocation7 + $0x20] sm:$0xff]
    %v459 = vld [vmem:[#allocation7 + $0x28] sm:$0xff]
    %v460 = vld [vmem:[#allocation7 + $0x30] sm:$0xff]
    %v461 = vld [vmem:[#allocation7 + $0x38] sm:$0xff]
    %v462 = vld [vmem:[#allocation7 + $0x40] sm:$0xff]
    %v463 = vld [vmem:[#allocation7 + $0x48] sm:$0xff]
    %v464 = vld [vmem:[#allocation7 + $0x50] sm:$0xff]
    %v465 = vld [vmem:[#allocation7 + $0x58] sm:$0xff]
    %v466 = vld [vmem:[#allocation7 + $0x60] sm:$0xff]
    %v467 = vld [vmem:[#allocation7 + $0x68] sm:$0xff]
    %v468 = vld [vmem:[#allocation7 + $0x70] sm:$0xff]
    %v469 = vld [vmem:[#allocation7 + $0x78] sm:$0xff]
    %v470 = vld [vmem:[#allocation7 + $0x80] sm:$0xff]
    %v471 = vld [vmem:[#allocation7 + $0x88] sm:$0xff]
    %v472 = vld [vmem:[#allocation7 + $0x90] sm:$0xff]
    %v473 = vld [vmem:[#allocation7 + $0x98] sm:$0xff]
    %v474 = vld [vmem:[#allocation7 + $0xa0] sm:$0xff]
    %v475 = vld [vmem:[#allocation7 + $0xa8] sm:$0xff]
    %v476 = vld [vmem:[#allocation7 + $0xb0] sm:$0xff]
    %v477 = vld [vmem:[#allocation7 + $0xb8] sm:$0xff]
    %v478 = vld [vmem:[#allocation7 + $0xc0] sm:$0xff]
    %v479 = vld [vmem:[#allocation7 + $0xc8] sm:$0xff]
    %v480 = vld [vmem:[#allocation7 + $0xd0] sm:$0xff]
    %v481 = vld [vmem:[#allocation7 + $0xd8] sm:$0xff]
    %v482 = vld [vmem:[#allocation7 + $0xe0] sm:$0xff]
    %v483 = vld [vmem:[#allocation7 + $0xe8] sm:$0xff]
    %v484 = vld [vmem:[#allocation7 + $0xf0] sm:$0xff]
    %v485 = vld [vmem:[#allocation7 + $0xf8] sm:$0xff]
    %v486 = vld [vmem:[#allocation7 + $0x100] sm:$0xff]
    %v487 = vld [vmem:[#allocation7 + $0x108] sm:$0xff]
    %v488 = vld [vmem:[#allocation7 + $0x110] sm:$0xff]
    %v489 = vld [vmem:[#allocation7 + $0x118] sm:$0xff]
    %v490 = vld [vmem:[#allocation7 + $0x120] sm:$0xff]
    %v491 = vld [vmem:[#allocation7 + $0x128] sm:$0xff]
    %v492 = vld [vmem:[#allocation7 + $0x130] sm:$0xff]
    %v493 = vld [vmem:[#allocation7 + $0x138] sm:$0xff]
    %v494 = vld [vmem:[#allocation7 + $0x140] sm:$0xff]
    %v495 = vld [vmem:[#allocation7 + $0x148] sm:$0xff]
    %v496 = vld [vmem:[#allocation7 + $0x150] sm:$0xff]
    %v497 = vld [vmem:[#allocation7 + $0x158] sm:$0xff]
    %v498 = vld [vmem:[#allocation7 + $0x160] sm:$0xff]
    %v499 = vld [vmem:[#allocation7 + $0x168] sm:$0xff]
    %v500 = vld [vmem:[#allocation7 + $0x170] sm:$0xff]
    %v501 = vld [vmem:[#allocation7 + $0x178] sm:$0xff]
    %v502 = vld [vmem:[#allocation7 + $0x180] sm:$0xff]
    %v503 = vld [vmem:[#allocation7 + $0x188] sm:$0xff]
    %v504 = vld [vmem:[#allocation7 + $0x190] sm:$0xff]
    %v505 = vld [vmem:[#allocation7 + $0x198] sm:$0xff]
    %v506 = vld [vmem:[#allocation7 + $0x1a0] sm:$0xff]
    %v507 = vld [vmem:[#allocation7 + $0x1a8] sm:$0xff]
    %v508 = vld [vmem:[#allocation7 + $0x1b0] sm:$0xff]
    %v509 = vld [vmem:[#allocation7 + $0x1b8] sm:$0xff]
    %v510 = vld [vmem:[#allocation7 + $0x1c0] sm:$0xff]
    %v511 = vld [vmem:[#allocation7 + $0x1c8] sm:$0xff]
    %v512 = vld [vmem:[#allocation7 + $0x1d0] sm:$0xff]
    %v513 = vld [vmem:[#allocation7 + $0x1d8] sm:$0xff]
    %v514 = vld [vmem:[#allocation7 + $0x1e0] sm:$0xff]
    %v515 = vld [vmem:[#allocation7 + $0x1e8] sm:$0xff]
    %v516 = vld [vmem:[#allocation7 + $0x1f0] sm:$0xff]
    %v517 = vld [vmem:[#allocation7 + $0x1f8] sm:$0xff]
    %v518 = vld [vmem:[#allocation7 + $0x200] sm:$0xff]
    %v519 = vld [vmem:[#allocation7 + $0x208] sm:$0xff]
    %v520 = vld [vmem:[#allocation7 + $0x210] sm:$0xff]
    %v521 = vld [vmem:[#allocation7 + $0x218] sm:$0xff]
    %v522 = vld [vmem:[#allocation7 + $0x220] sm:$0xff]
    %v523 = vld [vmem:[#allocation7 + $0x228] sm:$0xff]
    %v524 = vld [vmem:[#allocation7 + $0x230] sm:$0xff]
    %v525 = vld [vmem:[#allocation7 + $0x238] sm:$0xff]
    %v526 = vld [vmem:[#allocation7 + $0x240] sm:$0xff]
    %v527 = vld [vmem:[#allocation7 + $0x248] sm:$0xff]
    %v528 = vld [vmem:[#allocation7 + $0x250] sm:$0xff]
    %v529 = vld [vmem:[#allocation7 + $0x258] sm:$0xff]
    %v530 = vld [vmem:[#allocation7 + $0x260] sm:$0xff]
    %v531 = vld [vmem:[#allocation7 + $0x268] sm:$0xff]
    %v532 = vld [vmem:[#allocation7 + $0x270] sm:$0xff]
    %v533 = vld [vmem:[#allocation7 + $0x278] sm:$0xff]
    %v534 = vld [vmem:[#allocation7 + $0x280] sm:$0xff]
    %v535 = vld [vmem:[#allocation7 + $0x288] sm:$0xff]
    %v536 = vld [vmem:[#allocation7 + $0x290] sm:$0xff]
    %v537 = vld [vmem:[#allocation7 + $0x298] sm:$0xff]
    %v538 = vld [vmem:[#allocation7 + $0x2a0] sm:$0xff]
    %v539 = vld [vmem:[#allocation7 + $0x2a8] sm:$0xff]
    %v540 = vld [vmem:[#allocation7 + $0x2b0] sm:$0xff]
    %v541 = vld [vmem:[#allocation7 + $0x2b8] sm:$0xff]
    %v542 = vld [vmem:[#allocation7 + $0x2c0] sm:$0xff]
    %v543 = vld [vmem:[#allocation7 + $0x2c8] sm:$0xff]
    %v544 = vld [vmem:[#allocation7 + $0x2d0] sm:$0xff]
    %v545 = vld [vmem:[#allocation7 + $0x2d8] sm:$0xff]
    %v546 = vld [vmem:[#allocation7 + $0x2e0] sm:$0xff]
    %v547 = vld [vmem:[#allocation7 + $0x2e8] sm:$0xff]
    %v548 = vld [vmem:[#allocation7 + $0x2f0] sm:$0xff]
    %v549 = vld [vmem:[#allocation7 + $0x2f8] sm:$0xff]
    %v646 = vunpack.c.l.b16 %v454
    %v647 = vunpack.c.h.b16 %v454
    %v648 = vunpack.c.l.b16 %v455
    %v649 = vunpack.c.h.b16 %v455
    %v650 = vunpack.c.l.b16 %v456
    %v651 = vunpack.c.h.b16 %v456
    %v652 = vunpack.c.l.b16 %v457
    %v653 = vunpack.c.h.b16 %v457
    %v654 = vunpack.c.l.b16 %v458
    %v655 = vunpack.c.h.b16 %v458
    %v656 = vunpack.c.l.b16 %v459
    %v657 = vunpack.c.h.b16 %v459
    %v658 = vunpack.c.l.b16 %v460
    %v659 = vunpack.c.h.b16 %v460
    %v660 = vunpack.c.l.b16 %v461
    %v661 = vunpack.c.h.b16 %v461
    %v662 = vunpack.c.l.b16 %v462
    %v663 = vunpack.c.h.b16 %v462
    %v664 = vunpack.c.l.b16 %v463
    %v665 = vunpack.c.h.b16 %v463
    %v666 = vunpack.c.l.b16 %v464
    %v667 = vunpack.c.h.b16 %v464
    %v668 = vunpack.c.l.b16 %v465
    %v669 = vunpack.c.h.b16 %v465
    %v670 = vunpack.c.l.b16 %v466
    %v671 = vunpack.c.h.b16 %v466
    %v672 = vunpack.c.l.b16 %v467
    %v673 = vunpack.c.h.b16 %v467
    %v674 = vunpack.c.l.b16 %v468
    %v675 = vunpack.c.h.b16 %v468
    %v676 = vunpack.c.l.b16 %v469
    %v677 = vunpack.c.h.b16 %v469
    %v678 = vunpack.c.l.b16 %v470
    %v679 = vunpack.c.h.b16 %v470
    %v680 = vunpack.c.l.b16 %v471
    %v681 = vunpack.c.h.b16 %v471
    %v682 = vunpack.c.l.b16 %v472
    %v683 = vunpack.c.h.b16 %v472
    %v684 = vunpack.c.l.b16 %v473
    %v685 = vunpack.c.h.b16 %v473
    %v686 = vunpack.c.l.b16 %v474
    %v687 = vunpack.c.h.b16 %v474
    %v688 = vunpack.c.l.b16 %v475
    %v689 = vunpack.c.h.b16 %v475
    %v690 = vunpack.c.l.b16 %v476
    %v691 = vunpack.c.h.b16 %v476
    %v692 = vunpack.c.l.b16 %v477
    %v693 = vunpack.c.h.b16 %v477
    %v694 = vunpack.c.l.b16 %v478
    %v695 = vunpack.c.h.b16 %v478
    %v696 = vunpack.c.l.b16 %v479
    %v697 = vunpack.c.h.b16 %v479
    %v698 = vunpack.c.l.b16 %v480
    %v699 = vunpack.c.h.b16 %v480
    %v700 = vunpack.c.l.b16 %v481
    %v701 = vunpack.c.h.b16 %v481
    %v702 = vunpack.c.l.b16 %v482
    %v703 = vunpack.c.h.b16 %v482
    %v704 = vunpack.c.l.b16 %v483
    %v705 = vunpack.c.h.b16 %v483
    %v706 = vunpack.c.l.b16 %v484
    %v707 = vunpack.c.h.b16 %v484
    %v708 = vunpack.c.l.b16 %v485
    %v709 = vunpack.c.h.b16 %v485
    %v710 = vunpack.c.l.b16 %v486
    %v711 = vunpack.c.h.b16 %v486
    %v712 = vunpack.c.l.b16 %v487
    %v713 = vunpack.c.h.b16 %v487
    %v714 = vunpack.c.l.b16 %v488
    %v715 = vunpack.c.h.b16 %v488
    %v716 = vunpack.c.l.b16 %v489
    %v717 = vunpack.c.h.b16 %v489
    %v718 = vunpack.c.l.b16 %v490
    %v719 = vunpack.c.h.b16 %v490
    %v720 = vunpack.c.l.b16 %v491
    %v721 = vunpack.c.h.b16 %v491
    %v722 = vunpack.c.l.b16 %v492
    %v723 = vunpack.c.h.b16 %v492
    %v724 = vunpack.c.l.b16 %v493
    %v725 = vunpack.c.h.b16 %v493
    %v726 = vunpack.c.l.b16 %v494
    %v727 = vunpack.c.h.b16 %v494
    %v728 = vunpack.c.l.b16 %v495
    %v729 = vunpack.c.h.b16 %v495
    %v730 = vunpack.c.l.b16 %v496
    %v731 = vunpack.c.h.b16 %v496
    %v732 = vunpack.c.l.b16 %v497
    %v733 = vunpack.c.h.b16 %v497
    %v734 = vunpack.c.l.b16 %v498
    %v735 = vunpack.c.h.b16 %v498
    %v736 = vunpack.c.l.b16 %v499
    %v737 = vunpack.c.h.b16 %v499
    %v738 = vunpack.c.l.b16 %v500
    %v739 = vunpack.c.h.b16 %v500
    %v740 = vunpack.c.l.b16 %v501
    %v741 = vunpack.c.h.b16 %v501
    %v742 = vunpack.c.l.b16 %v502
    %v743 = vunpack.c.h.b16 %v502
    %v744 = vunpack.c.l.b16 %v503
    %v745 = vunpack.c.h.b16 %v503
    %v746 = vunpack.c.l.b16 %v504
    %v747 = vunpack.c.h.b16 %v504
    %v748 = vunpack.c.l.b16 %v505
    %v749 = vunpack.c.h.b16 %v505
    %v750 = vunpack.c.l.b16 %v506
    %v751 = vunpack.c.h.b16 %v506
    %v752 = vunpack.c.l.b16 %v507
    %v753 = vunpack.c.h.b16 %v507
    %v754 = vunpack.c.l.b16 %v508
    %v755 = vunpack.c.h.b16 %v508
    %v756 = vunpack.c.l.b16 %v509
    %v757 = vunpack.c.h.b16 %v509
    %v758 = vunpack.c.l.b16 %v510
    %v759 = vunpack.c.h.b16 %v510
    %v760 = vunpack.c.l.b16 %v511
    %v761 = vunpack.c.h.b16 %v511
    %v762 = vunpack.c.l.b16 %v512
    %v763 = vunpack.c.h.b16 %v512
    %v764 = vunpack.c.l.b16 %v513
    %v765 = vunpack.c.h.b16 %v513
    %v766 = vunpack.c.l.b16 %v514
    %v767 = vunpack.c.h.b16 %v514
    %v768 = vunpack.c.l.b16 %v515
    %v769 = vunpack.c.h.b16 %v515
    %v770 = vunpack.c.l.b16 %v516
    %v771 = vunpack.c.h.b16 %v516
    %v772 = vunpack.c.l.b16 %v517
    %v773 = vunpack.c.h.b16 %v517
    %v774 = vunpack.c.l.b16 %v518
    %v775 = vunpack.c.h.b16 %v518
    %v776 = vunpack.c.l.b16 %v519
    %v777 = vunpack.c.h.b16 %v519
    %v778 = vunpack.c.l.b16 %v520
    %v779 = vunpack.c.h.b16 %v520
    %v780 = vunpack.c.l.b16 %v521
    %v781 = vunpack.c.h.b16 %v521
    %v782 = vunpack.c.l.b16 %v522
    %v783 = vunpack.c.h.b16 %v522
    %v784 = vunpack.c.l.b16 %v523
    %v785 = vunpack.c.h.b16 %v523
    %v786 = vunpack.c.l.b16 %v524
    %v787 = vunpack.c.h.b16 %v524
    %v788 = vunpack.c.l.b16 %v525
    %v789 = vunpack.c.h.b16 %v525
    %v790 = vunpack.c.l.b16 %v526
    %v791 = vunpack.c.h.b16 %v526
    %v792 = vunpack.c.l.b16 %v527
    %v793 = vunpack.c.h.b16 %v527
    %v794 = vunpack.c.l.b16 %v528
    %v795 = vunpack.c.h.b16 %v528
    %v796 = vunpack.c.l.b16 %v529
    %v797 = vunpack.c.h.b16 %v529
    %v798 = vunpack.c.l.b16 %v530
    %v799 = vunpack.c.h.b16 %v530
    %v800 = vunpack.c.l.b16 %v531
    %v801 = vunpack.c.h.b16 %v531
    %v802 = vunpack.c.l.b16 %v532
    %v803 = vunpack.c.h.b16 %v532
    %v804 = vunpack.c.l.b16 %v533
    %v805 = vunpack.c.h.b16 %v533
    %v806 = vunpack.c.l.b16 %v534
    %v807 = vunpack.c.h.b16 %v534
    %v808 = vunpack.c.l.b16 %v535
    %v809 = vunpack.c.h.b16 %v535
    %v810 = vunpack.c.l.b16 %v536
    %v811 = vunpack.c.h.b16 %v536
    %v812 = vunpack.c.l.b16 %v537
    %v813 = vunpack.c.h.b16 %v537
    %v814 = vunpack.c.l.b16 %v538
    %v815 = vunpack.c.h.b16 %v538
    %v816 = vunpack.c.l.b16 %v539
    %v817 = vunpack.c.h.b16 %v539
    %v818 = vunpack.c.l.b16 %v540
    %v819 = vunpack.c.h.b16 %v540
    %v820 = vunpack.c.l.b16 %v541
    %v821 = vunpack.c.h.b16 %v541
    %v822 = vunpack.c.l.b16 %v542
    %v823 = vunpack.c.h.b16 %v542
    %v824 = vunpack.c.l.b16 %v543
    %v825 = vunpack.c.h.b16 %v543
    %v826 = vunpack.c.l.b16 %v544
    %v827 = vunpack.c.h.b16 %v544
    %v828 = vunpack.c.l.b16 %v545
    %v829 = vunpack.c.h.b16 %v545
    %v830 = vunpack.c.l.b16 %v546
    %v831 = vunpack.c.h.b16 %v546
    %v832 = vunpack.c.l.b16 %v547
    %v833 = vunpack.c.h.b16 %v547
    %v834 = vunpack.c.l.b16 %v548
    %v835 = vunpack.c.h.b16 %v548
    %v836 = vunpack.c.l.b16 %v549
    %v837 = vunpack.c.h.b16 %v549
    %v838 = vpack.c.b16 %v652, %v646
    %v839 = vpack.c.b16 %v653, %v647
    %v840 = vpack.c.b16 %v654, %v648
    %v841 = vpack.c.b16 %v655, %v649
    %v842 = vpack.c.b16 %v656, %v650
    %v843 = vpack.c.b16 %v657, %v651
    %v844 = vpack.c.b16 %v664, %v658
    %v845 = vpack.c.b16 %v665, %v659
    %v846 = vpack.c.b16 %v666, %v660
    %v847 = vpack.c.b16 %v667, %v661
    %v848 = vpack.c.b16 %v668, %v662
    %v849 = vpack.c.b16 %v669, %v663
    %v850 = vpack.c.b16 %v676, %v670
    %v851 = vpack.c.b16 %v677, %v671
    %v852 = vpack.c.b16 %v678, %v672
    %v853 = vpack.c.b16 %v679, %v673
    %v854 = vpack.c.b16 %v680, %v674
    %v855 = vpack.c.b16 %v681, %v675
    %v856 = vpack.c.b16 %v688, %v682
    %v857 = vpack.c.b16 %v689, %v683
    %v858 = vpack.c.b16 %v690, %v684
    %v859 = vpack.c.b16 %v691, %v685
    %v860 = vpack.c.b16 %v692, %v686
    %v861 = vpack.c.b16 %v693, %v687
    %v862 = vpack.c.b16 %v700, %v694
    %v863 = vpack.c.b16 %v701, %v695
    %v864 = vpack.c.b16 %v702, %v696
    %v865 = vpack.c.b16 %v703, %v697
    %v866 = vpack.c.b16 %v704, %v698
    %v867 = vpack.c.b16 %v705, %v699
    %v868 = vpack.c.b16 %v712, %v706
    %v869 = vpack.c.b16 %v713, %v707
    %v870 = vpack.c.b16 %v714, %v708
    %v871 = vpack.c.b16 %v715, %v709
    %v872 = vpack.c.b16 %v716, %v710
    %v873 = vpack.c.b16 %v717, %v711
    %v874 = vpack.c.b16 %v724, %v718
    %v875 = vpack.c.b16 %v725, %v719
    %v876 = vpack.c.b16 %v726, %v720
    %v877 = vpack.c.b16 %v727, %v721
    %v878 = vpack.c.b16 %v728, %v722
    %v879 = vpack.c.b16 %v729, %v723
    %v880 = vpack.c.b16 %v736, %v730
    %v881 = vpack.c.b16 %v737, %v731
    %v882 = vpack.c.b16 %v738, %v732
    %v883 = vpack.c.b16 %v739, %v733
    %v884 = vpack.c.b16 %v740, %v734
    %v885 = vpack.c.b16 %v741, %v735
    %v886 = vpack.c.b16 %v748, %v742
    %v887 = vpack.c.b16 %v749, %v743
    %v888 = vpack.c.b16 %v750, %v744
    %v889 = vpack.c.b16 %v751, %v745
    %v890 = vpack.c.b16 %v752, %v746
    %v891 = vpack.c.b16 %v753, %v747
    %v892 = vpack.c.b16 %v760, %v754
    %v893 = vpack.c.b16 %v761, %v755
    %v894 = vpack.c.b16 %v762, %v756
    %v895 = vpack.c.b16 %v763, %v757
    %v896 = vpack.c.b16 %v764, %v758
    %v897 = vpack.c.b16 %v765, %v759
    %v898 = vpack.c.b16 %v772, %v766
    %v899 = vpack.c.b16 %v773, %v767
    %v900 = vpack.c.b16 %v774, %v768
    %v901 = vpack.c.b16 %v775, %v769
    %v902 = vpack.c.b16 %v776, %v770
    %v903 = vpack.c.b16 %v777, %v771
    %v904 = vpack.c.b16 %v784, %v778
    %v905 = vpack.c.b16 %v785, %v779
    %v906 = vpack.c.b16 %v786, %v780
    %v907 = vpack.c.b16 %v787, %v781
    %v908 = vpack.c.b16 %v788, %v782
    %v909 = vpack.c.b16 %v789, %v783
    %v910 = vpack.c.b16 %v796, %v790
    %v911 = vpack.c.b16 %v797, %v791
    %v912 = vpack.c.b16 %v798, %v792
    %v913 = vpack.c.b16 %v799, %v793
    %v914 = vpack.c.b16 %v800, %v794
    %v915 = vpack.c.b16 %v801, %v795
    %v916 = vpack.c.b16 %v808, %v802
    %v917 = vpack.c.b16 %v809, %v803
    %v918 = vpack.c.b16 %v810, %v804
    %v919 = vpack.c.b16 %v811, %v805
    %v920 = vpack.c.b16 %v812, %v806
    %v921 = vpack.c.b16 %v813, %v807
    %v922 = vpack.c.b16 %v820, %v814
    %v923 = vpack.c.b16 %v821, %v815
    %v924 = vpack.c.b16 %v822, %v816
    %v925 = vpack.c.b16 %v823, %v817
    %v926 = vpack.c.b16 %v824, %v818
    %v927 = vpack.c.b16 %v825, %v819
    %v928 = vpack.c.b16 %v832, %v826
    %v929 = vpack.c.b16 %v833, %v827
    %v930 = vpack.c.b16 %v834, %v828
    %v931 = vpack.c.b16 %v835, %v829
    %v932 = vpack.c.b16 %v836, %v830
    %v933 = vpack.c.b16 %v837, %v831
    %1030 = vmatpush.bf16.msra.mxu0 %v880
    %1031 = vmatpush.bf16.msra.mxu0 %v874
    %1032 = vmatpush.bf16.msra.mxu0 %v868
    %1033 = vmatpush.bf16.msra.mxu0 %v862
    %1034 = vmatpush.bf16.msra.mxu0 %v856
    %1035 = vmatpush.bf16.msra.mxu0 %v850
    %1036 = vmatpush.bf16.msra.mxu0 %v844
    %1037 = vmatpush.bf16.msra.mxu0 %v838
    %1038 = vmatmul.bf16.gmra.mxu0 %v452
    %v1039 = vpop.f32.mrf.mxu0
    %v1040 = vadd.f32 0.0, %v1039
    %v1041 = vpop.f32.mrf.mxu0
    %1042 = vdwg.mxu0
    %1043 = vmatpush.bf16.msra.mxu0 %v928
    %1044 = vmatpush.bf16.msra.mxu0 %v922
    %1045 = vmatpush.bf16.msra.mxu0 %v916
    %1046 = vmatpush.bf16.msra.mxu0 %v910
    %1047 = vmatpush.bf16.msra.mxu0 %v904
    %1048 = vmatpush.bf16.msra.mxu0 %v898
    %1049 = vmatpush.bf16.msra.mxu0 %v892
    %1050 = vmatpush.bf16.msra.mxu0 %v886
    %1051 = vmatmul.bf16.gmra.mxu0 %v453
    %v1052 = vpop.f32.mrf.mxu0
    %v1053 = vadd.f32 %v1040, %v1052
    %v1054 = vpop.f32.mrf.mxu0
    %1055 = vdwg.mxu0
    %1056 = vmatpush.bf16.msra.mxu0 %v881
    %1057 = vmatpush.bf16.msra.mxu0 %v875
    %1058 = vmatpush.bf16.msra.mxu0 %v869
    %1059 = vmatpush.bf16.msra.mxu0 %v863
    %1060 = vmatpush.bf16.msra.mxu0 %v857
    %1061 = vmatpush.bf16.msra.mxu0 %v851
    %1062 = vmatpush.bf16.msra.mxu0 %v845
    %1063 = vmatpush.bf16.msra.mxu0 %v839
    %1064 = vmatmul.bf16.gmra.mxu0 %v452
    %v1065 = vpop.f32.mrf.mxu0
    %v1066 = vadd.f32 0.0, %v1065
    %v1067 = vpop.f32.mrf.mxu0
    %1068 = vdwg.mxu0
    %1069 = vmatpush.bf16.msra.mxu0 %v929
    %1070 = vmatpush.bf16.msra.mxu0 %v923
    %1071 = vmatpush.bf16.msra.mxu0 %v917
    %1072 = vmatpush.bf16.msra.mxu0 %v911
    %1073 = vmatpush.bf16.msra.mxu0 %v905
    %1074 = vmatpush.bf16.msra.mxu0 %v899
    %1075 = vmatpush.bf16.msra.mxu0 %v893
    %1076 = vmatpush.bf16.msra.mxu0 %v887
    %1077 = vmatmul.bf16.gmra.mxu0 %v453
    %v1078 = vpop.f32.mrf.mxu0
    %v1079 = vadd.f32 %v1066, %v1078
    %v1080 = vpop.f32.mrf.mxu0
    %1081 = vdwg.mxu0
    %1082 = vmatpush.bf16.msra.mxu0 %v882
    %1083 = vmatpush.bf16.msra.mxu0 %v876
    %1084 = vmatpush.bf16.msra.mxu0 %v870
    %1085 = vmatpush.bf16.msra.mxu0 %v864
    %1086 = vmatpush.bf16.msra.mxu0 %v858
    %1087 = vmatpush.bf16.msra.mxu0 %v852
    %1088 = vmatpush.bf16.msra.mxu0 %v846
    %1089 = vmatpush.bf16.msra.mxu0 %v840
    %1090 = vmatmul.bf16.gmra.mxu0 %v452
    %v1091 = vpop.f32.mrf.mxu0
    %v1092 = vadd.f32 0.0, %v1091
    %v1093 = vpop.f32.mrf.mxu0
    %1094 = vdwg.mxu0
    %1095 = vmatpush.bf16.msra.mxu0 %v930
    %1096 = vmatpush.bf16.msra.mxu0 %v924
    %1097 = vmatpush.bf16.msra.mxu0 %v918
    %1098 = vmatpush.bf16.msra.mxu0 %v912
    %1099 = vmatpush.bf16.msra.mxu0 %v906
    %1100 = vmatpush.bf16.msra.mxu0 %v900
    %1101 = vmatpush.bf16.msra.mxu0 %v894
    %1102 = vmatpush.bf16.msra.mxu0 %v888
    %1103 = vmatmul.bf16.gmra.mxu0 %v453
    %v1104 = vpop.f32.mrf.mxu0
    %v1105 = vadd.f32 %v1092, %v1104
    %v1106 = vpop.f32.mrf.mxu0
    %1107 = vdwg.mxu0
    %1108 = vmatpush.bf16.msra.mxu0 %v883
    %1109 = vmatpush.bf16.msra.mxu0 %v877
    %1110 = vmatpush.bf16.msra.mxu0 %v871
    %1111 = vmatpush.bf16.msra.mxu0 %v865
    %1112 = vmatpush.bf16.msra.mxu0 %v859
    %1113 = vmatpush.bf16.msra.mxu0 %v853
    %1114 = vmatpush.bf16.msra.mxu0 %v847
    %1115 = vmatpush.bf16.msra.mxu0 %v841
    %1116 = vmatmul.bf16.gmra.mxu0 %v452
    %v1117 = vpop.f32.mrf.mxu0
    %v1118 = vadd.f32 0.0, %v1117
    %v1119 = vpop.f32.mrf.mxu0
    %1120 = vdwg.mxu0
    %1121 = vmatpush.bf16.msra.mxu0 %v931
    %1122 = vmatpush.bf16.msra.mxu0 %v925
    %1123 = vmatpush.bf16.msra.mxu0 %v919
    %1124 = vmatpush.bf16.msra.mxu0 %v913
    %1125 = vmatpush.bf16.msra.mxu0 %v907
    %1126 = vmatpush.bf16.msra.mxu0 %v901
    %1127 = vmatpush.bf16.msra.mxu0 %v895
    %1128 = vmatpush.bf16.msra.mxu0 %v889
    %1129 = vmatmul.bf16.gmra.mxu0 %v453
    %v1130 = vpop.f32.mrf.mxu0
    %v1131 = vadd.f32 %v1118, %v1130
    %v1132 = vpop.f32.mrf.mxu0
    %1133 = vdwg.mxu0
    %1134 = vmatpush.bf16.msra.mxu0 %v884
    %1135 = vmatpush.bf16.msra.mxu0 %v878
    %1136 = vmatpush.bf16.msra.mxu0 %v872
    %1137 = vmatpush.bf16.msra.mxu0 %v866
    %1138 = vmatpush.bf16.msra.mxu0 %v860
    %1139 = vmatpush.bf16.msra.mxu0 %v854
    %1140 = vmatpush.bf16.msra.mxu0 %v848
    %1141 = vmatpush.bf16.msra.mxu0 %v842
    %1142 = vmatmul.bf16.gmra.mxu0 %v452
    %v1143 = vpop.f32.mrf.mxu0
    %v1144 = vadd.f32 0.0, %v1143
    %v1145 = vpop.f32.mrf.mxu0
    %1146 = vdwg.mxu0
    %1147 = vmatpush.bf16.msra.mxu0 %v932
    %1148 = vmatpush.bf16.msra.mxu0 %v926
    %1149 = vmatpush.bf16.msra.mxu0 %v920
    %1150 = vmatpush.bf16.msra.mxu0 %v914
    %1151 = vmatpush.bf16.msra.mxu0 %v908
    %1152 = vmatpush.bf16.msra.mxu0 %v902
    %1153 = vmatpush.bf16.msra.mxu0 %v896
    %1154 = vmatpush.bf16.msra.mxu0 %v890
    %1155 = vmatmul.bf16.gmra.mxu0 %v453
    %v1156 = vpop.f32.mrf.mxu0
    %v1157 = vadd.f32 %v1144, %v1156
    %v1158 = vpop.f32.mrf.mxu0
    %1159 = vdwg.mxu0
    %1160 = vmatpush.bf16.msra.mxu0 %v885
    %1161 = vmatpush.bf16.msra.mxu0 %v879
    %1162 = vmatpush.bf16.msra.mxu0 %v873
    %1163 = vmatpush.bf16.msra.mxu0 %v867
    %1164 = vmatpush.bf16.msra.mxu0 %v861
    %1165 = vmatpush.bf16.msra.mxu0 %v855
    %1166 = vmatpush.bf16.msra.mxu0 %v849
    %1167 = vmatpush.bf16.msra.mxu0 %v843
    %1168 = vmatmul.bf16.gmra.mxu0 %v452
    %v1169 = vpop.f32.mrf.mxu0
    %v1170 = vadd.f32 0.0, %v1169
    %v1171 = vpop.f32.mrf.mxu0
    %1172 = vdwg.mxu0
    %1173 = vmatpush.bf16.msra.mxu0 %v933
    %1174 = vmatpush.bf16.msra.mxu0 %v927
    %1175 = vmatpush.bf16.msra.mxu0 %v921
    %1176 = vmatpush.bf16.msra.mxu0 %v915
    %1177 = vmatpush.bf16.msra.mxu0 %v909
    %1178 = vmatpush.bf16.msra.mxu0 %v903
    %1179 = vmatpush.bf16.msra.mxu0 %v897
    %1180 = vmatpush.bf16.msra.mxu0 %v891
    %1181 = vmatmul.bf16.gmra.mxu0 %v453
    %v1182 = vpop.f32.mrf.mxu0
    %v1183 = vadd.f32 %v1170, %v1182
    %v1184 = vpop.f32.mrf.mxu0
    %1185 = vdwg.mxu0
    %v1186 = vadd.f32 %v446, %v1053
    %v1187 = vadd.f32 %v447, %v1079
    %v1188 = vadd.f32 %v448, %v1105
    %v1189 = vadd.f32 %v449, %v1131
    %v1190 = vadd.f32 %v1186, %v421
    %v1191 = vadd.f32 %v1187, %v422
    %v1192 = vadd.f32 %v1188, %v423
    %v1193 = vadd.f32 %v1189, %v424
    %v1194 = vxor.u32 %v1190, 2147483648
    %v1195 = vxor.u32 %v1191, 2147483648
    %v1196 = vxor.u32 %v1192, 2147483648
    %v1197 = vxor.u32 %v1193, 2147483648
    %v1198 = vmul.f32 %v1194, 1.442695
    %v1199 = vpow.pop %v1198
    %v1200 = vmul.f32 %v1195, 1.442695
    %v1201 = vpow.pop %v1200
    %v1202 = vmul.f32 %v1196, 1.442695
    %v1203 = vpow.pop %v1202
    %v1204 = vmul.f32 %v1197, 1.442695
    %v1205 = vpow.pop %v1204
    %v1206 = vadd.f32 %v1199, 1.0
    %v1207 = vadd.f32 %v1201, 1.0
    %v1208 = vadd.f32 %v1203, 1.0
    %v1209 = vadd.f32 %v1205, 1.0
    %v1210 = vrcp.pop %v1206
    %v1211 = vmul.f32 %v1206, %v1210
    %v1212 = vsub.f32 1.0, %v1211
    %v1213 = vmul.f32 %v1210, %v1212
    %v1214 = vadd.f32 %v1210, %v1213
    %vm1215 = vweird.f32 %v1206
    %vm1216 = vweird.f32 %v1210
    %vm1217 = vmor %vm1215, %vm1216
    %v1218 = vsel %vm1217, %v1210, %v1214
    %v1219 = vand.u32 2147483647, %v1206
    %vm1220 = vcmp.eq.f32.partialorder %v1219, 8.507059e+37
    %v1221 = vand.u32 %v1206, 2147483648
    %v1222 = vor.u32 1.1754944e-38, %v1221
    %v1223 = vsel %vm1220, %v1222, %v1218
    %v1224 = vmul.f32 1.0, %v1223
    %v1225 = vrcp.pop %v1207
    %v1226 = vmul.f32 %v1207, %v1225
    %v1227 = vsub.f32 1.0, %v1226
    %v1228 = vmul.f32 %v1225, %v1227
    %v1229 = vadd.f32 %v1225, %v1228
    %vm1230 = vweird.f32 %v1207
    %vm1231 = vweird.f32 %v1225
    %vm1232 = vmor %vm1230, %vm1231
    %v1233 = vsel %vm1232, %v1225, %v1229
    %v1234 = vand.u32 2147483647, %v1207
    %vm1235 = vcmp.eq.f32.partialorder %v1234, 8.507059e+37
    %v1236 = vand.u32 %v1207, 2147483648
    %v1237 = vor.u32 1.1754944e-38, %v1236
    %v1238 = vsel %vm1235, %v1237, %v1233
    %v1239 = vmul.f32 1.0, %v1238
    %v1240 = vrcp.pop %v1208
    %v1241 = vmul.f32 %v1208, %v1240
    %v1242 = vsub.f32 1.0, %v1241
    %v1243 = vmul.f32 %v1240, %v1242
    %v1244 = vadd.f32 %v1240, %v1243
    %vm1245 = vweird.f32 %v1208
    %vm1246 = vweird.f32 %v1240
    %vm1247 = vmor %vm1245, %vm1246
    %v1248 = vsel %vm1247, %v1240, %v1244
    %v1249 = vand.u32 2147483647, %v1208
    %vm1250 = vcmp.eq.f32.partialorder %v1249, 8.507059e+37
    %v1251 = vand.u32 %v1208, 2147483648
    %v1252 = vor.u32 1.1754944e-38, %v1251
    %v1253 = vsel %vm1250, %v1252, %v1248
    %v1254 = vmul.f32 1.0, %v1253
    %v1255 = vrcp.pop %v1209
    %v1256 = vmul.f32 %v1209, %v1255
    %v1257 = vsub.f32 1.0, %v1256
    %v1258 = vmul.f32 %v1255, %v1257
    %v1259 = vadd.f32 %v1255, %v1258
    %vm1260 = vweird.f32 %v1209
    %vm1261 = vweird.f32 %v1255
    %vm1262 = vmor %vm1260, %vm1261
    %v1263 = vsel %vm1262, %v1255, %v1259
    %v1264 = vand.u32 2147483647, %v1209
    %vm1265 = vcmp.eq.f32.partialorder %v1264, 8.507059e+37
    %v1266 = vand.u32 %v1209, 2147483648
    %v1267 = vor.u32 1.1754944e-38, %v1266
    %v1268 = vsel %vm1265, %v1267, %v1263
    %v1269 = vmul.f32 1.0, %v1268
    %v1270 = vadd.f32 %v450, %v431
    %v1271 = vadd.f32 %v451, %v432
    %v1272 = vadd.f32 %v1157, %v437
    %v1273 = vadd.f32 %v1183, %v438
    %v1274 = vmul.f32 %v1224, %v1272
    %v1275 = vmul.f32 %v1239, %v1273
    %v1276 = vadd.f32 %v1270, %v1274
    %v1277 = vadd.f32 %v1271, %v1275
    %v1278 = vtanh.pop %v1276
    %v1279 = vtanh.pop %v1277
    %v1280 = vsub.f32 %v441, %v1278
    %v1281 = vsub.f32 %v442, %v1279
    %v1282 = vmul.f32 %v1254, %v1280
    %v1283 = vmul.f32 %v1269, %v1281
    %v1284 = vadd.f32 %v1278, %v1282
    %v1285 = vadd.f32 %v1279, %v1283
    %s1286 = smul.u32 1, 6
    %s1287 = smul.addr %s1286, 8
    %s1288 = scalar_lea.vmem [#allocation2], %s1287
    %v1289 = vld [vmem:[%s1288] sm:$0xff]
    %v1290 = vld [vmem:[%s1288 + $0x8] sm:$0xff]
    %v1291 = vld [vmem:[%s1288 + $0x10] sm:$0xff]
    %v1292 = vld [vmem:[%s1288 + $0x18] sm:$0xff]
    %v1293 = vld [vmem:[%s1288 + $0x20] sm:$0xff]
    %v1294 = vld [vmem:[%s1288 + $0x28] sm:$0xff]
    %v1295 = vpack.c.bf16 %v1284, %v1284
    %v1296 = vpack.c.bf16 %v1285, %v1285
    %1297 = vmatpush.bf16.msra.mxu0 %v880
    %1298 = vmatpush.bf16.msra.mxu0 %v874
    %1299 = vmatpush.bf16.msra.mxu0 %v868
    %1300 = vmatpush.bf16.msra.mxu0 %v862
    %1301 = vmatpush.bf16.msra.mxu0 %v856
    %1302 = vmatpush.bf16.msra.mxu0 %v850
    %1303 = vmatpush.bf16.msra.mxu0 %v844
    %1304 = vmatpush.bf16.msra.mxu0 %v838
    %1305 = vmatmul.bf16.gmra.mxu0 %v1295
    %v1306 = vpop.f32.mrf.mxu0
    %v1307 = vadd.f32 0.0, %v1306
    %v1308 = vpop.f32.mrf.mxu0
    %1309 = vdwg.mxu0
    %1310 = vmatpush.bf16.msra.mxu0 %v928
    %1311 = vmatpush.bf16.msra.mxu0 %v922
    %1312 = vmatpush.bf16.msra.mxu0 %v916
    %1313 = vmatpush.bf16.msra.mxu0 %v910
    %1314 = vmatpush.bf16.msra.mxu0 %v904
    %1315 = vmatpush.bf16.msra.mxu0 %v898
    %1316 = vmatpush.bf16.msra.mxu0 %v892
    %1317 = vmatpush.bf16.msra.mxu0 %v886
    %1318 = vmatmul.bf16.gmra.mxu0 %v1296
    %v1319 = vpop.f32.mrf.mxu0
    %v1320 = vadd.f32 %v1307, %v1319
    %v1321 = vpop.f32.mrf.mxu0
    %1322 = vdwg.mxu0
    %1323 = vmatpush.bf16.msra.mxu0 %v881
    %1324 = vmatpush.bf16.msra.mxu0 %v875
    %1325 = vmatpush.bf16.msra.mxu0 %v869
    %1326 = vmatpush.bf16.msra.mxu0 %v863
    %1327 = vmatpush.bf16.msra.mxu0 %v857
    %1328 = vmatpush.bf16.msra.mxu0 %v851
    %1329 = vmatpush.bf16.msra.mxu0 %v845
    %1330 = vmatpush.bf16.msra.mxu0 %v839
    %1331 = vmatmul.bf16.gmra.mxu0 %v1295
    %v1332 = vpop.f32.mrf.mxu0
    %v1333 = vadd.f32 0.0, %v1332
    %v1334 = vpop.f32.mrf.mxu0
    %1335 = vdwg.mxu0
    %1336 = vmatpush.bf16.msra.mxu0 %v929
    %1337 = vmatpush.bf16.msra.mxu0 %v923
    %1338 = vmatpush.bf16.msra.mxu0 %v917
    %1339 = vmatpush.bf16.msra.mxu0 %v911
    %1340 = vmatpush.bf16.msra.mxu0 %v905
    %1341 = vmatpush.bf16.msra.mxu0 %v899
    %1342 = vmatpush.bf16.msra.mxu0 %v893
    %1343 = vmatpush.bf16.msra.mxu0 %v887
    %1344 = vmatmul.bf16.gmra.mxu0 %v1296
    %v1345 = vpop.f32.mrf.mxu0
    %v1346 = vadd.f32 %v1333, %v1345
    %v1347 = vpop.f32.mrf.mxu0
    %1348 = vdwg.mxu0
    %1349 = vmatpush.bf16.msra.mxu0 %v882
    %1350 = vmatpush.bf16.msra.mxu0 %v876
    %1351 = vmatpush.bf16.msra.mxu0 %v870
    %1352 = vmatpush.bf16.msra.mxu0 %v864
    %1353 = vmatpush.bf16.msra.mxu0 %v858
    %1354 = vmatpush.bf16.msra.mxu0 %v852
    %1355 = vmatpush.bf16.msra.mxu0 %v846
    %1356 = vmatpush.bf16.msra.mxu0 %v840
    %1357 = vmatmul.bf16.gmra.mxu0 %v1295
    %v1358 = vpop.f32.mrf.mxu0
    %v1359 = vadd.f32 0.0, %v1358
    %v1360 = vpop.f32.mrf.mxu0
    %1361 = vdwg.mxu0
    %1362 = vmatpush.bf16.msra.mxu0 %v930
    %1363 = vmatpush.bf16.msra.mxu0 %v924
    %1364 = vmatpush.bf16.msra.mxu0 %v918
    %1365 = vmatpush.bf16.msra.mxu0 %v912
    %1366 = vmatpush.bf16.msra.mxu0 %v906
    %1367 = vmatpush.bf16.msra.mxu0 %v900
    %1368 = vmatpush.bf16.msra.mxu0 %v894
    %1369 = vmatpush.bf16.msra.mxu0 %v888
    %1370 = vmatmul.bf16.gmra.mxu0 %v1296
    %v1371 = vpop.f32.mrf.mxu0
    %v1372 = vadd.f32 %v1359, %v1371
    %v1373 = vpop.f32.mrf.mxu0
    %1374 = vdwg.mxu0
    %1375 = vmatpush.bf16.msra.mxu0 %v883
    %1376 = vmatpush.bf16.msra.mxu0 %v877
    %1377 = vmatpush.bf16.msra.mxu0 %v871
    %1378 = vmatpush.bf16.msra.mxu0 %v865
    %1379 = vmatpush.bf16.msra.mxu0 %v859
    %1380 = vmatpush.bf16.msra.mxu0 %v853
    %1381 = vmatpush.bf16.msra.mxu0 %v847
    %1382 = vmatpush.bf16.msra.mxu0 %v841
    %1383 = vmatmul.bf16.gmra.mxu0 %v1295
    %v1384 = vpop.f32.mrf.mxu0
    %v1385 = vadd.f32 0.0, %v1384
    %v1386 = vpop.f32.mrf.mxu0
    %1387 = vdwg.mxu0
    %1388 = vmatpush.bf16.msra.mxu0 %v931
    %1389 = vmatpush.bf16.msra.mxu0 %v925
    %1390 = vmatpush.bf16.msra.mxu0 %v919
    %1391 = vmatpush.bf16.msra.mxu0 %v913
    %1392 = vmatpush.bf16.msra.mxu0 %v907
    %1393 = vmatpush.bf16.msra.mxu0 %v901
    %1394 = vmatpush.bf16.msra.mxu0 %v895
    %1395 = vmatpush.bf16.msra.mxu0 %v889
    %1396 = vmatmul.bf16.gmra.mxu0 %v1296
    %v1397 = vpop.f32.mrf.mxu0
    %v1398 = vadd.f32 %v1385, %v1397
    %v1399 = vpop.f32.mrf.mxu0
    %1400 = vdwg.mxu0
    %1401 = vmatpush.bf16.msra.mxu0 %v884
    %1402 = vmatpush.bf16.msra.mxu0 %v878
    %1403 = vmatpush.bf16.msra.mxu0 %v872
    %1404 = vmatpush.bf16.msra.mxu0 %v866
    %1405 = vmatpush.bf16.msra.mxu0 %v860
    %1406 = vmatpush.bf16.msra.mxu0 %v854
    %1407 = vmatpush.bf16.msra.mxu0 %v848
    %1408 = vmatpush.bf16.msra.mxu0 %v842
    %1409 = vmatmul.bf16.gmra.mxu0 %v1295
    %v1410 = vpop.f32.mrf.mxu0
    %v1411 = vadd.f32 0.0, %v1410
    %v1412 = vpop.f32.mrf.mxu0
    %1413 = vdwg.mxu0
    %1414 = vmatpush.bf16.msra.mxu0 %v932
    %1415 = vmatpush.bf16.msra.mxu0 %v926
    %1416 = vmatpush.bf16.msra.mxu0 %v920
    %1417 = vmatpush.bf16.msra.mxu0 %v914
    %1418 = vmatpush.bf16.msra.mxu0 %v908
    %1419 = vmatpush.bf16.msra.mxu0 %v902
    %1420 = vmatpush.bf16.msra.mxu0 %v896
    %1421 = vmatpush.bf16.msra.mxu0 %v890
    %1422 = vmatmul.bf16.gmra.mxu0 %v1296
    %v1423 = vpop.f32.mrf.mxu0
    %v1424 = vadd.f32 %v1411, %v1423
    %v1425 = vpop.f32.mrf.mxu0
    %1426 = vdwg.mxu0
    %1427 = vmatpush.bf16.msra.mxu0 %v885
    %1428 = vmatpush.bf16.msra.mxu0 %v879
    %1429 = vmatpush.bf16.msra.mxu0 %v873
    %1430 = vmatpush.bf16.msra.mxu0 %v867
    %1431 = vmatpush.bf16.msra.mxu0 %v861
    %1432 = vmatpush.bf16.msra.mxu0 %v855
    %1433 = vmatpush.bf16.msra.mxu0 %v849
    %1434 = vmatpush.bf16.msra.mxu0 %v843
    %1435 = vmatmul.bf16.gmra.mxu0 %v1295
    %v1436 = vpop.f32.mrf.mxu0
    %v1437 = vadd.f32 0.0, %v1436
    %v1438 = vpop.f32.mrf.mxu0
    %1439 = vdwg.mxu0
    %1440 = vmatpush.bf16.msra.mxu0 %v933
    %1441 = vmatpush.bf16.msra.mxu0 %v927
    %1442 = vmatpush.bf16.msra.mxu0 %v921
    %1443 = vmatpush.bf16.msra.mxu0 %v915
    %1444 = vmatpush.bf16.msra.mxu0 %v909
    %1445 = vmatpush.bf16.msra.mxu0 %v903
    %1446 = vmatpush.bf16.msra.mxu0 %v897
    %1447 = vmatpush.bf16.msra.mxu0 %v891
    %1448 = vmatmul.bf16.gmra.mxu0 %v1296
    %v1449 = vpop.f32.mrf.mxu0
    %v1450 = vadd.f32 %v1437, %v1449
    %v1451 = vpop.f32.mrf.mxu0
    %1452 = vdwg.mxu0
    %v1453 = vadd.f32 %v1289, %v1320
    %v1454 = vadd.f32 %v1290, %v1346
    %v1455 = vadd.f32 %v1291, %v1372
    %v1456 = vadd.f32 %v1292, %v1398
    %v1457 = vadd.f32 %v1453, %v421
    %v1458 = vadd.f32 %v1454, %v422
    %v1459 = vadd.f32 %v1455, %v423
    %v1460 = vadd.f32 %v1456, %v424
    %v1461 = vxor.u32 %v1457, 2147483648
    %v1462 = vxor.u32 %v1458, 2147483648
    %v1463 = vxor.u32 %v1459, 2147483648
    %v1464 = vxor.u32 %v1460, 2147483648
    %v1465 = vmul.f32 %v1461, 1.442695
    %v1466 = vpow.pop %v1465
    %v1467 = vmul.f32 %v1462, 1.442695
    %v1468 = vpow.pop %v1467
    %v1469 = vmul.f32 %v1463, 1.442695
    %v1470 = vpow.pop %v1469
    %v1471 = vmul.f32 %v1464, 1.442695
    %v1472 = vpow.pop %v1471
    %v1473 = vadd.f32 %v1466, 1.0
    %v1474 = vadd.f32 %v1468, 1.0
    %v1475 = vadd.f32 %v1470, 1.0
    %v1476 = vadd.f32 %v1472, 1.0
    %v1477 = vrcp.pop %v1473
    %v1478 = vmul.f32 %v1473, %v1477
    %v1479 = vsub.f32 1.0, %v1478
    %v1480 = vmul.f32 %v1477, %v1479
    %v1481 = vadd.f32 %v1477, %v1480
    %vm1482 = vweird.f32 %v1473
    %vm1483 = vweird.f32 %v1477
    %vm1484 = vmor %vm1482, %vm1483
    %v1485 = vsel %vm1484, %v1477, %v1481
    %v1486 = vand.u32 2147483647, %v1473
    %vm1487 = vcmp.eq.f32.partialorder %v1486, 8.507059e+37
    %v1488 = vand.u32 %v1473, 2147483648
    %v1489 = vor.u32 1.1754944e-38, %v1488
    %v1490 = vsel %vm1487, %v1489, %v1485
    %v1491 = vmul.f32 1.0, %v1490
    %v1492 = vrcp.pop %v1474
    %v1493 = vmul.f32 %v1474, %v1492
    %v1494 = vsub.f32 1.0, %v1493
    %v1495 = vmul.f32 %v1492, %v1494
    %v1496 = vadd.f32 %v1492, %v1495
    %vm1497 = vweird.f32 %v1474
    %vm1498 = vweird.f32 %v1492
    %vm1499 = vmor %vm1497, %vm1498
    %v1500 = vsel %vm1499, %v1492, %v1496
    %v1501 = vand.u32 2147483647, %v1474
    %vm1502 = vcmp.eq.f32.partialorder %v1501, 8.507059e+37
    %v1503 = vand.u32 %v1474, 2147483648
    %v1504 = vor.u32 1.1754944e-38, %v1503
    %v1505 = vsel %vm1502, %v1504, %v1500
    %v1506 = vmul.f32 1.0, %v1505
    %v1507 = vrcp.pop %v1475
    %v1508 = vmul.f32 %v1475, %v1507
    %v1509 = vsub.f32 1.0, %v1508
    %v1510 = vmul.f32 %v1507, %v1509
    %v1511 = vadd.f32 %v1507, %v1510
    %vm1512 = vweird.f32 %v1475
    %vm1513 = vweird.f32 %v1507
    %vm1514 = vmor %vm1512, %vm1513
    %v1515 = vsel %vm1514, %v1507, %v1511
    %v1516 = vand.u32 2147483647, %v1475
    %vm1517 = vcmp.eq.f32.partialorder %v1516, 8.507059e+37
    %v1518 = vand.u32 %v1475, 2147483648
    %v1519 = vor.u32 1.1754944e-38, %v1518
    %v1520 = vsel %vm1517, %v1519, %v1515
    %v1521 = vmul.f32 1.0, %v1520
    %v1522 = vrcp.pop %v1476
    %v1523 = vmul.f32 %v1476, %v1522
    %v1524 = vsub.f32 1.0, %v1523
    %v1525 = vmul.f32 %v1522, %v1524
    %v1526 = vadd.f32 %v1522, %v1525
    %vm1527 = vweird.f32 %v1476
    %vm1528 = vweird.f32 %v1522
    %vm1529 = vmor %vm1527, %vm1528
    %v1530 = vsel %vm1529, %v1522, %v1526
    %v1531 = vand.u32 2147483647, %v1476
    %vm1532 = vcmp.eq.f32.partialorder %v1531, 8.507059e+37
    %v1533 = vand.u32 %v1476, 2147483648
    %v1534 = vor.u32 1.1754944e-38, %v1533
    %v1535 = vsel %vm1532, %v1534, %v1530
    %v1536 = vmul.f32 1.0, %v1535
    %v1537 = vadd.f32 %v1293, %v431
    %v1538 = vadd.f32 %v1294, %v432
    %v1539 = vadd.f32 %v1424, %v437
    %v1540 = vadd.f32 %v1450, %v438
    %v1541 = vmul.f32 %v1491, %v1539
    %v1542 = vmul.f32 %v1506, %v1540
    %v1543 = vadd.f32 %v1537, %v1541
    %v1544 = vadd.f32 %v1538, %v1542
    %v1545 = vtanh.pop %v1543
    %v1546 = vtanh.pop %v1544
    %v1547 = vsub.f32 %v1284, %v1545
    %v1548 = vsub.f32 %v1285, %v1546
    %v1549 = vmul.f32 %v1521, %v1547
    %v1550 = vmul.f32 %v1536, %v1548
    %v1551 = vadd.f32 %v1545, %v1549
    %v1552 = vadd.f32 %v1546, %v1550
    %s1553 = smul.u32 2, 6
    %s1554 = smul.addr %s1553, 8
    %s1555 = scalar_lea.vmem [#allocation2], %s1554
    %v1556 = vld [vmem:[%s1555] sm:$0xff]
    %v1557 = vld [vmem:[%s1555 + $0x8] sm:$0xff]
    %v1558 = vld [vmem:[%s1555 + $0x10] sm:$0xff]
    %v1559 = vld [vmem:[%s1555 + $0x18] sm:$0xff]
    %v1560 = vld [vmem:[%s1555 + $0x20] sm:$0xff]
    %v1561 = vld [vmem:[%s1555 + $0x28] sm:$0xff]
    %v1562 = vpack.c.bf16 %v1551, %v1551
    %v1563 = vpack.c.bf16 %v1552, %v1552
    %1564 = vmatpush.bf16.msra.mxu0 %v880
    %1565 = vmatpush.bf16.msra.mxu0 %v874
    %1566 = vmatpush.bf16.msra.mxu0 %v868
    %1567 = vmatpush.bf16.msra.mxu0 %v862
    %1568 = vmatpush.bf16.msra.mxu0 %v856
    %1569 = vmatpush.bf16.msra.mxu0 %v850
    %1570 = vmatpush.bf16.msra.mxu0 %v844
    %1571 = vmatpush.bf16.msra.mxu0 %v838
    %1572 = vmatmul.bf16.gmra.mxu0 %v1562
    %v1573 = vpop.f32.mrf.mxu0
    %v1574 = vadd.f32 0.0, %v1573
    %v1575 = vpop.f32.mrf.mxu0
    %1576 = vdwg.mxu0
    %1577 = vmatpush.bf16.msra.mxu0 %v928
    %1578 = vmatpush.bf16.msra.mxu0 %v922
    %1579 = vmatpush.bf16.msra.mxu0 %v916
    %1580 = vmatpush.bf16.msra.mxu0 %v910
    %1581 = vmatpush.bf16.msra.mxu0 %v904
    %1582 = vmatpush.bf16.msra.mxu0 %v898
    %1583 = vmatpush.bf16.msra.mxu0 %v892
    %1584 = vmatpush.bf16.msra.mxu0 %v886
    %1585 = vmatmul.bf16.gmra.mxu0 %v1563
    %v1586 = vpop.f32.mrf.mxu0
    %v1587 = vadd.f32 %v1574, %v1586
    %v1588 = vpop.f32.mrf.mxu0
    %1589 = vdwg.mxu0
    %1590 = vmatpush.bf16.msra.mxu0 %v881
    %1591 = vmatpush.bf16.msra.mxu0 %v875
    %1592 = vmatpush.bf16.msra.mxu0 %v869
    %1593 = vmatpush.bf16.msra.mxu0 %v863
    %1594 = vmatpush.bf16.msra.mxu0 %v857
    %1595 = vmatpush.bf16.msra.mxu0 %v851
    %1596 = vmatpush.bf16.msra.mxu0 %v845
    %1597 = vmatpush.bf16.msra.mxu0 %v839
    %1598 = vmatmul.bf16.gmra.mxu0 %v1562
    %v1599 = vpop.f32.mrf.mxu0
    %v1600 = vadd.f32 0.0, %v1599
    %v1601 = vpop.f32.mrf.mxu0
    %1602 = vdwg.mxu0
    %1603 = vmatpush.bf16.msra.mxu0 %v929
    %1604 = vmatpush.bf16.msra.mxu0 %v923
    %1605 = vmatpush.bf16.msra.mxu0 %v917
    %1606 = vmatpush.bf16.msra.mxu0 %v911
    %1607 = vmatpush.bf16.msra.mxu0 %v905
    %1608 = vmatpush.bf16.msra.mxu0 %v899
    %1609 = vmatpush.bf16.msra.mxu0 %v893
    %1610 = vmatpush.bf16.msra.mxu0 %v887
    %1611 = vmatmul.bf16.gmra.mxu0 %v1563
    %v1612 = vpop.f32.mrf.mxu0
    %v1613 = vadd.f32 %v1600, %v1612
    %v1614 = vpop.f32.mrf.mxu0
    %1615 = vdwg.mxu0
    %1616 = vmatpush.bf16.msra.mxu0 %v882
    %1617 = vmatpush.bf16.msra.mxu0 %v876
    %1618 = vmatpush.bf16.msra.mxu0 %v870
    %1619 = vmatpush.bf16.msra.mxu0 %v864
    %1620 = vmatpush.bf16.msra.mxu0 %v858
    %1621 = vmatpush.bf16.msra.mxu0 %v852
    %1622 = vmatpush.bf16.msra.mxu0 %v846
    %1623 = vmatpush.bf16.msra.mxu0 %v840
    %1624 = vmatmul.bf16.gmra.mxu0 %v1562
    %v1625 = vpop.f32.mrf.mxu0
    %v1626 = vadd.f32 0.0, %v1625
    %v1627 = vpop.f32.mrf.mxu0
    %1628 = vdwg.mxu0
    %1629 = vmatpush.bf16.msra.mxu0 %v930
    %1630 = vmatpush.bf16.msra.mxu0 %v924
    %1631 = vmatpush.bf16.msra.mxu0 %v918
    %1632 = vmatpush.bf16.msra.mxu0 %v912
    %1633 = vmatpush.bf16.msra.mxu0 %v906
    %1634 = vmatpush.bf16.msra.mxu0 %v900
    %1635 = vmatpush.bf16.msra.mxu0 %v894
    %1636 = vmatpush.bf16.msra.mxu0 %v888
    %1637 = vmatmul.bf16.gmra.mxu0 %v1563
    %v1638 = vpop.f32.mrf.mxu0
    %v1639 = vadd.f32 %v1626, %v1638
    %v1640 = vpop.f32.mrf.mxu0
    %1641 = vdwg.mxu0
    %1642 = vmatpush.bf16.msra.mxu0 %v883
    %1643 = vmatpush.bf16.msra.mxu0 %v877
    %1644 = vmatpush.bf16.msra.mxu0 %v871
    %1645 = vmatpush.bf16.msra.mxu0 %v865
    %1646 = vmatpush.bf16.msra.mxu0 %v859
    %1647 = vmatpush.bf16.msra.mxu0 %v853
    %1648 = vmatpush.bf16.msra.mxu0 %v847
    %1649 = vmatpush.bf16.msra.mxu0 %v841
    %1650 = vmatmul.bf16.gmra.mxu0 %v1562
    %v1651 = vpop.f32.mrf.mxu0
    %v1652 = vadd.f32 0.0, %v1651
    %v1653 = vpop.f32.mrf.mxu0
    %1654 = vdwg.mxu0
    %1655 = vmatpush.bf16.msra.mxu0 %v931
    %1656 = vmatpush.bf16.msra.mxu0 %v925
    %1657 = vmatpush.bf16.msra.mxu0 %v919
    %1658 = vmatpush.bf16.msra.mxu0 %v913
    %1659 = vmatpush.bf16.msra.mxu0 %v907
    %1660 = vmatpush.bf16.msra.mxu0 %v901
    %1661 = vmatpush.bf16.msra.mxu0 %v895
    %1662 = vmatpush.bf16.msra.mxu0 %v889
    %1663 = vmatmul.bf16.gmra.mxu0 %v1563
    %v1664 = vpop.f32.mrf.mxu0
    %v1665 = vadd.f32 %v1652, %v1664
    %v1666 = vpop.f32.mrf.mxu0
    %1667 = vdwg.mxu0
    %1668 = vmatpush.bf16.msra.mxu0 %v884
    %1669 = vmatpush.bf16.msra.mxu0 %v878
    %1670 = vmatpush.bf16.msra.mxu0 %v872
    %1671 = vmatpush.bf16.msra.mxu0 %v866
    %1672 = vmatpush.bf16.msra.mxu0 %v860
    %1673 = vmatpush.bf16.msra.mxu0 %v854
    %1674 = vmatpush.bf16.msra.mxu0 %v848
    %1675 = vmatpush.bf16.msra.mxu0 %v842
    %1676 = vmatmul.bf16.gmra.mxu0 %v1562
    %v1677 = vpop.f32.mrf.mxu0
    %v1678 = vadd.f32 0.0, %v1677
    %v1679 = vpop.f32.mrf.mxu0
    %1680 = vdwg.mxu0
    %1681 = vmatpush.bf16.msra.mxu0 %v932
    %1682 = vmatpush.bf16.msra.mxu0 %v926
    %1683 = vmatpush.bf16.msra.mxu0 %v920
    %1684 = vmatpush.bf16.msra.mxu0 %v914
    %1685 = vmatpush.bf16.msra.mxu0 %v908
    %1686 = vmatpush.bf16.msra.mxu0 %v902
    %1687 = vmatpush.bf16.msra.mxu0 %v896
    %1688 = vmatpush.bf16.msra.mxu0 %v890
    %1689 = vmatmul.bf16.gmra.mxu0 %v1563
    %v1690 = vpop.f32.mrf.mxu0
    %v1691 = vadd.f32 %v1678, %v1690
    %v1692 = vpop.f32.mrf.mxu0
    %1693 = vdwg.mxu0
    %1694 = vmatpush.bf16.msra.mxu0 %v885
    %1695 = vmatpush.bf16.msra.mxu0 %v879
    %1696 = vmatpush.bf16.msra.mxu0 %v873
    %1697 = vmatpush.bf16.msra.mxu0 %v867
    %1698 = vmatpush.bf16.msra.mxu0 %v861
    %1699 = vmatpush.bf16.msra.mxu0 %v855
    %1700 = vmatpush.bf16.msra.mxu0 %v849
    %1701 = vmatpush.bf16.msra.mxu0 %v843
    %1702 = vmatmul.bf16.gmra.mxu0 %v1562
    %v1703 = vpop.f32.mrf.mxu0
    %v1704 = vadd.f32 0.0, %v1703
    %v1705 = vpop.f32.mrf.mxu0
    %1706 = vdwg.mxu0
    %1707 = vmatpush.bf16.msra.mxu0 %v933
    %1708 = vmatpush.bf16.msra.mxu0 %v927
    %1709 = vmatpush.bf16.msra.mxu0 %v921
    %1710 = vmatpush.bf16.msra.mxu0 %v915
    %1711 = vmatpush.bf16.msra.mxu0 %v909
    %1712 = vmatpush.bf16.msra.mxu0 %v903
    %1713 = vmatpush.bf16.msra.mxu0 %v897
    %1714 = vmatpush.bf16.msra.mxu0 %v891
    %1715 = vmatmul.bf16.gmra.mxu0 %v1563
    %v1716 = vpop.f32.mrf.mxu0
    %v1717 = vadd.f32 %v1704, %v1716
    %v1718 = vpop.f32.mrf.mxu0
    %1719 = vdwg.mxu0
    %v1720 = vadd.f32 %v1556, %v1587
    %v1721 = vadd.f32 %v1557, %v1613
    %v1722 = vadd.f32 %v1558, %v1639
    %v1723 = vadd.f32 %v1559, %v1665
    %v1724 = vadd.f32 %v1720, %v421
    %v1725 = vadd.f32 %v1721, %v422
    %v1726 = vadd.f32 %v1722, %v423
    %v1727 = vadd.f32 %v1723, %v424
    %v1728 = vxor.u32 %v1724, 2147483648
    %v1729 = vxor.u32 %v1725, 2147483648
    %v1730 = vxor.u32 %v1726, 2147483648
    %v1731 = vxor.u32 %v1727, 2147483648
    %v1732 = vmul.f32 %v1728, 1.442695
    %v1733 = vpow.pop %v1732
    %v1734 = vmul.f32 %v1729, 1.442695
    %v1735 = vpow.pop %v1734
    %v1736 = vmul.f32 %v1730, 1.442695
    %v1737 = vpow.pop %v1736
    %v1738 = vmul.f32 %v1731, 1.442695
    %v1739 = vpow.pop %v1738
    %v1740 = vadd.f32 %v1733, 1.0
    %v1741 = vadd.f32 %v1735, 1.0
    %v1742 = vadd.f32 %v1737, 1.0
    %v1743 = vadd.f32 %v1739, 1.0
    %v1744 = vrcp.pop %v1740
    %v1745 = vmul.f32 %v1740, %v1744
    %v1746 = vsub.f32 1.0, %v1745
    %v1747 = vmul.f32 %v1744, %v1746
    %v1748 = vadd.f32 %v1744, %v1747
    %vm1749 = vweird.f32 %v1740
    %vm1750 = vweird.f32 %v1744
    %vm1751 = vmor %vm1749, %vm1750
    %v1752 = vsel %vm1751, %v1744, %v1748
    %v1753 = vand.u32 2147483647, %v1740
    %vm1754 = vcmp.eq.f32.partialorder %v1753, 8.507059e+37
    %v1755 = vand.u32 %v1740, 2147483648
    %v1756 = vor.u32 1.1754944e-38, %v1755
    %v1757 = vsel %vm1754, %v1756, %v1752
    %v1758 = vmul.f32 1.0, %v1757
    %v1759 = vrcp.pop %v1741
    %v1760 = vmul.f32 %v1741, %v1759
    %v1761 = vsub.f32 1.0, %v1760
    %v1762 = vmul.f32 %v1759, %v1761
    %v1763 = vadd.f32 %v1759, %v1762
    %vm1764 = vweird.f32 %v1741
    %vm1765 = vweird.f32 %v1759
    %vm1766 = vmor %vm1764, %vm1765
    %v1767 = vsel %vm1766, %v1759, %v1763
    %v1768 = vand.u32 2147483647, %v1741
    %vm1769 = vcmp.eq.f32.partialorder %v1768, 8.507059e+37
    %v1770 = vand.u32 %v1741, 2147483648
    %v1771 = vor.u32 1.1754944e-38, %v1770
    %v1772 = vsel %vm1769, %v1771, %v1767
    %v1773 = vmul.f32 1.0, %v1772
    %v1774 = vrcp.pop %v1742
    %v1775 = vmul.f32 %v1742, %v1774
    %v1776 = vsub.f32 1.0, %v1775
    %v1777 = vmul.f32 %v1774, %v1776
    %v1778 = vadd.f32 %v1774, %v1777
    %vm1779 = vweird.f32 %v1742
    %vm1780 = vweird.f32 %v1774
    %vm1781 = vmor %vm1779, %vm1780
    %v1782 = vsel %vm1781, %v1774, %v1778
    %v1783 = vand.u32 2147483647, %v1742
    %vm1784 = vcmp.eq.f32.partialorder %v1783, 8.507059e+37
    %v1785 = vand.u32 %v1742, 2147483648
    %v1786 = vor.u32 1.1754944e-38, %v1785
    %v1787 = vsel %vm1784, %v1786, %v1782
    %v1788 = vmul.f32 1.0, %v1787
    %v1789 = vrcp.pop %v1743
    %v1790 = vmul.f32 %v1743, %v1789
    %v1791 = vsub.f32 1.0, %v1790
    %v1792 = vmul.f32 %v1789, %v1791
    %v1793 = vadd.f32 %v1789, %v1792
    %vm1794 = vweird.f32 %v1743
    %vm1795 = vweird.f32 %v1789
    %vm1796 = vmor %vm1794, %vm1795
    %v1797 = vsel %vm1796, %v1789, %v1793
    %v1798 = vand.u32 2147483647, %v1743
    %vm1799 = vcmp.eq.f32.partialorder %v1798, 8.507059e+37
    %v1800 = vand.u32 %v1743, 2147483648
    %v1801 = vor.u32 1.1754944e-38, %v1800
    %v1802 = vsel %vm1799, %v1801, %v1797
    %v1803 = vmul.f32 1.0, %v1802
    %v1804 = vadd.f32 %v1560, %v431
    %v1805 = vadd.f32 %v1561, %v432
    %v1806 = vadd.f32 %v1691, %v437
    %v1807 = vadd.f32 %v1717, %v438
    %v1808 = vmul.f32 %v1758, %v1806
    %v1809 = vmul.f32 %v1773, %v1807
    %v1810 = vadd.f32 %v1804, %v1808
    %v1811 = vadd.f32 %v1805, %v1809
    %v1812 = vtanh.pop %v1810
    %v1813 = vtanh.pop %v1811
    %v1814 = vsub.f32 %v1551, %v1812
    %v1815 = vsub.f32 %v1552, %v1813
    %v1816 = vmul.f32 %v1788, %v1814
    %v1817 = vmul.f32 %v1803, %v1815
    %v1818 = vadd.f32 %v1812, %v1816
    %v1819 = vadd.f32 %v1813, %v1817
    %s1820 = smul.u32 3, 6
    %s1821 = smul.addr %s1820, 8
    %s1822 = scalar_lea.vmem [#allocation2], %s1821
    %v1823 = vld [vmem:[%s1822] sm:$0xff]
    %v1824 = vld [vmem:[%s1822 + $0x8] sm:$0xff]
    %v1825 = vld [vmem:[%s1822 + $0x10] sm:$0xff]
    %v1826 = vld [vmem:[%s1822 + $0x18] sm:$0xff]
    %v1827 = vld [vmem:[%s1822 + $0x20] sm:$0xff]
    %v1828 = vld [vmem:[%s1822 + $0x28] sm:$0xff]
    %v1829 = vpack.c.bf16 %v1818, %v1818
    %v1830 = vpack.c.bf16 %v1819, %v1819
    %1831 = vmatpush.bf16.msra.mxu0 %v880
    %1832 = vmatpush.bf16.msra.mxu0 %v874
    %1833 = vmatpush.bf16.msra.mxu0 %v868
    %1834 = vmatpush.bf16.msra.mxu0 %v862
    %1835 = vmatpush.bf16.msra.mxu0 %v856
    %1836 = vmatpush.bf16.msra.mxu0 %v850
    %1837 = vmatpush.bf16.msra.mxu0 %v844
    %1838 = vmatpush.bf16.msra.mxu0 %v838
    %1839 = vmatmul.bf16.gmra.mxu0 %v1829
    %v1840 = vpop.f32.mrf.mxu0
    %v1841 = vadd.f32 0.0, %v1840
    %v1842 = vpop.f32.mrf.mxu0
    %1843 = vdwg.mxu0
    %1844 = vmatpush.bf16.msra.mxu0 %v928
    %1845 = vmatpush.bf16.msra.mxu0 %v922
    %1846 = vmatpush.bf16.msra.mxu0 %v916
    %1847 = vmatpush.bf16.msra.mxu0 %v910
    %1848 = vmatpush.bf16.msra.mxu0 %v904
    %1849 = vmatpush.bf16.msra.mxu0 %v898
    %1850 = vmatpush.bf16.msra.mxu0 %v892
    %1851 = vmatpush.bf16.msra.mxu0 %v886
    %1852 = vmatmul.bf16.gmra.mxu0 %v1830
    %v1853 = vpop.f32.mrf.mxu0
    %v1854 = vadd.f32 %v1841, %v1853
    %v1855 = vpop.f32.mrf.mxu0
    %1856 = vdwg.mxu0
    %1857 = vmatpush.bf16.msra.mxu0 %v881
    %1858 = vmatpush.bf16.msra.mxu0 %v875
    %1859 = vmatpush.bf16.msra.mxu0 %v869
    %1860 = vmatpush.bf16.msra.mxu0 %v863
    %1861 = vmatpush.bf16.msra.mxu0 %v857
    %1862 = vmatpush.bf16.msra.mxu0 %v851
    %1863 = vmatpush.bf16.msra.mxu0 %v845
    %1864 = vmatpush.bf16.msra.mxu0 %v839
    %1865 = vmatmul.bf16.gmra.mxu0 %v1829
    %v1866 = vpop.f32.mrf.mxu0
    %v1867 = vadd.f32 0.0, %v1866
    %v1868 = vpop.f32.mrf.mxu0
    %1869 = vdwg.mxu0
    %1870 = vmatpush.bf16.msra.mxu0 %v929
    %1871 = vmatpush.bf16.msra.mxu0 %v923
    %1872 = vmatpush.bf16.msra.mxu0 %v917
    %1873 = vmatpush.bf16.msra.mxu0 %v911
    %1874 = vmatpush.bf16.msra.mxu0 %v905
    %1875 = vmatpush.bf16.msra.mxu0 %v899
    %1876 = vmatpush.bf16.msra.mxu0 %v893
    %1877 = vmatpush.bf16.msra.mxu0 %v887
    %1878 = vmatmul.bf16.gmra.mxu0 %v1830
    %v1879 = vpop.f32.mrf.mxu0
    %v1880 = vadd.f32 %v1867, %v1879
    %v1881 = vpop.f32.mrf.mxu0
    %1882 = vdwg.mxu0
    %1883 = vmatpush.bf16.msra.mxu0 %v882
    %1884 = vmatpush.bf16.msra.mxu0 %v876
    %1885 = vmatpush.bf16.msra.mxu0 %v870
    %1886 = vmatpush.bf16.msra.mxu0 %v864
    %1887 = vmatpush.bf16.msra.mxu0 %v858
    %1888 = vmatpush.bf16.msra.mxu0 %v852
    %1889 = vmatpush.bf16.msra.mxu0 %v846
    %1890 = vmatpush.bf16.msra.mxu0 %v840
    %1891 = vmatmul.bf16.gmra.mxu0 %v1829
    %v1892 = vpop.f32.mrf.mxu0
    %v1893 = vadd.f32 0.0, %v1892
    %v1894 = vpop.f32.mrf.mxu0
    %1895 = vdwg.mxu0
    %1896 = vmatpush.bf16.msra.mxu0 %v930
    %1897 = vmatpush.bf16.msra.mxu0 %v924
    %1898 = vmatpush.bf16.msra.mxu0 %v918
    %1899 = vmatpush.bf16.msra.mxu0 %v912
    %1900 = vmatpush.bf16.msra.mxu0 %v906
    %1901 = vmatpush.bf16.msra.mxu0 %v900
    %1902 = vmatpush.bf16.msra.mxu0 %v894
    %1903 = vmatpush.bf16.msra.mxu0 %v888
    %1904 = vmatmul.bf16.gmra.mxu0 %v1830
    %v1905 = vpop.f32.mrf.mxu0
    %v1906 = vadd.f32 %v1893, %v1905
    %v1907 = vpop.f32.mrf.mxu0
    %1908 = vdwg.mxu0
    %1909 = vmatpush.bf16.msra.mxu0 %v883
    %1910 = vmatpush.bf16.msra.mxu0 %v877
    %1911 = vmatpush.bf16.msra.mxu0 %v871
    %1912 = vmatpush.bf16.msra.mxu0 %v865
    %1913 = vmatpush.bf16.msra.mxu0 %v859
    %1914 = vmatpush.bf16.msra.mxu0 %v853
    %1915 = vmatpush.bf16.msra.mxu0 %v847
    %1916 = vmatpush.bf16.msra.mxu0 %v841
    %1917 = vmatmul.bf16.gmra.mxu0 %v1829
    %v1918 = vpop.f32.mrf.mxu0
    %v1919 = vadd.f32 0.0, %v1918
    %v1920 = vpop.f32.mrf.mxu0
    %1921 = vdwg.mxu0
    %1922 = vmatpush.bf16.msra.mxu0 %v931
    %1923 = vmatpush.bf16.msra.mxu0 %v925
    %1924 = vmatpush.bf16.msra.mxu0 %v919
    %1925 = vmatpush.bf16.msra.mxu0 %v913
    %1926 = vmatpush.bf16.msra.mxu0 %v907
    %1927 = vmatpush.bf16.msra.mxu0 %v901
    %1928 = vmatpush.bf16.msra.mxu0 %v895
    %1929 = vmatpush.bf16.msra.mxu0 %v889
    %1930 = vmatmul.bf16.gmra.mxu0 %v1830
    %v1931 = vpop.f32.mrf.mxu0
    %v1932 = vadd.f32 %v1919, %v1931
    %v1933 = vpop.f32.mrf.mxu0
    %1934 = vdwg.mxu0
    %1935 = vmatpush.bf16.msra.mxu0 %v884
    %1936 = vmatpush.bf16.msra.mxu0 %v878
    %1937 = vmatpush.bf16.msra.mxu0 %v872
    %1938 = vmatpush.bf16.msra.mxu0 %v866
    %1939 = vmatpush.bf16.msra.mxu0 %v860
    %1940 = vmatpush.bf16.msra.mxu0 %v854
    %1941 = vmatpush.bf16.msra.mxu0 %v848
    %1942 = vmatpush.bf16.msra.mxu0 %v842
    %1943 = vmatmul.bf16.gmra.mxu0 %v1829
    %v1944 = vpop.f32.mrf.mxu0
    %v1945 = vadd.f32 0.0, %v1944
    %v1946 = vpop.f32.mrf.mxu0
    %1947 = vdwg.mxu0
    %1948 = vmatpush.bf16.msra.mxu0 %v932
    %1949 = vmatpush.bf16.msra.mxu0 %v926
    %1950 = vmatpush.bf16.msra.mxu0 %v920
    %1951 = vmatpush.bf16.msra.mxu0 %v914
    %1952 = vmatpush.bf16.msra.mxu0 %v908
    %1953 = vmatpush.bf16.msra.mxu0 %v902
    %1954 = vmatpush.bf16.msra.mxu0 %v896
    %1955 = vmatpush.bf16.msra.mxu0 %v890
    %1956 = vmatmul.bf16.gmra.mxu0 %v1830
    %v1957 = vpop.f32.mrf.mxu0
    %v1958 = vadd.f32 %v1945, %v1957
    %v1959 = vpop.f32.mrf.mxu0
    %1960 = vdwg.mxu0
    %1961 = vmatpush.bf16.msra.mxu0 %v885
    %1962 = vmatpush.bf16.msra.mxu0 %v879
    %1963 = vmatpush.bf16.msra.mxu0 %v873
    %1964 = vmatpush.bf16.msra.mxu0 %v867
    %1965 = vmatpush.bf16.msra.mxu0 %v861
    %1966 = vmatpush.bf16.msra.mxu0 %v855
    %1967 = vmatpush.bf16.msra.mxu0 %v849
    %1968 = vmatpush.bf16.msra.mxu0 %v843
    %1969 = vmatmul.bf16.gmra.mxu0 %v1829
    %v1970 = vpop.f32.mrf.mxu0
    %v1971 = vadd.f32 0.0, %v1970
    %v1972 = vpop.f32.mrf.mxu0
    %1973 = vdwg.mxu0
    %1974 = vmatpush.bf16.msra.mxu0 %v933
    %1975 = vmatpush.bf16.msra.mxu0 %v927
    %1976 = vmatpush.bf16.msra.mxu0 %v921
    %1977 = vmatpush.bf16.msra.mxu0 %v915
    %1978 = vmatpush.bf16.msra.mxu0 %v909
    %1979 = vmatpush.bf16.msra.mxu0 %v903
    %1980 = vmatpush.bf16.msra.mxu0 %v897
    %1981 = vmatpush.bf16.msra.mxu0 %v891
    %1982 = vmatmul.bf16.gmra.mxu0 %v1830
    %v1983 = vpop.f32.mrf.mxu0
    %v1984 = vadd.f32 %v1971, %v1983
    %v1985 = vpop.f32.mrf.mxu0
    %1986 = vdwg.mxu0
    %v1987 = vadd.f32 %v1823, %v1854
    %v1988 = vadd.f32 %v1824, %v1880
    %v1989 = vadd.f32 %v1825, %v1906
    %v1990 = vadd.f32 %v1826, %v1932
    %v1991 = vadd.f32 %v1987, %v421
    %v1992 = vadd.f32 %v1988, %v422
    %v1993 = vadd.f32 %v1989, %v423
    %v1994 = vadd.f32 %v1990, %v424
    %v1995 = vxor.u32 %v1991, 2147483648
    %v1996 = vxor.u32 %v1992, 2147483648
    %v1997 = vxor.u32 %v1993, 2147483648
    %v1998 = vxor.u32 %v1994, 2147483648
    %v1999 = vmul.f32 %v1995, 1.442695
    %v2000 = vpow.pop %v1999
    %v2001 = vmul.f32 %v1996, 1.442695
    %v2002 = vpow.pop %v2001
    %v2003 = vmul.f32 %v1997, 1.442695
    %v2004 = vpow.pop %v2003
    %v2005 = vmul.f32 %v1998, 1.442695
    %v2006 = vpow.pop %v2005
    %v2007 = vadd.f32 %v2000, 1.0
    %v2008 = vadd.f32 %v2002, 1.0
    %v2009 = vadd.f32 %v2004, 1.0
    %v2010 = vadd.f32 %v2006, 1.0
    %v2011 = vrcp.pop %v2007
    %v2012 = vmul.f32 %v2007, %v2011
    %v2013 = vsub.f32 1.0, %v2012
    %v2014 = vmul.f32 %v2011, %v2013
    %v2015 = vadd.f32 %v2011, %v2014
    %vm2016 = vweird.f32 %v2007
    %vm2017 = vweird.f32 %v2011
    %vm2018 = vmor %vm2016, %vm2017
    %v2019 = vsel %vm2018, %v2011, %v2015
    %v2020 = vand.u32 2147483647, %v2007
    %vm2021 = vcmp.eq.f32.partialorder %v2020, 8.507059e+37
    %v2022 = vand.u32 %v2007, 2147483648
    %v2023 = vor.u32 1.1754944e-38, %v2022
    %v2024 = vsel %vm2021, %v2023, %v2019
    %v2025 = vmul.f32 1.0, %v2024
    %v2026 = vrcp.pop %v2008
    %v2027 = vmul.f32 %v2008, %v2026
    %v2028 = vsub.f32 1.0, %v2027
    %v2029 = vmul.f32 %v2026, %v2028
    %v2030 = vadd.f32 %v2026, %v2029
    %vm2031 = vweird.f32 %v2008
    %vm2032 = vweird.f32 %v2026
    %vm2033 = vmor %vm2031, %vm2032
    %v2034 = vsel %vm2033, %v2026, %v2030
    %v2035 = vand.u32 2147483647, %v2008
    %vm2036 = vcmp.eq.f32.partialorder %v2035, 8.507059e+37
    %v2037 = vand.u32 %v2008, 2147483648
    %v2038 = vor.u32 1.1754944e-38, %v2037
    %v2039 = vsel %vm2036, %v2038, %v2034
    %v2040 = vmul.f32 1.0, %v2039
    %v2041 = vrcp.pop %v2009
    %v2042 = vmul.f32 %v2009, %v2041
    %v2043 = vsub.f32 1.0, %v2042
    %v2044 = vmul.f32 %v2041, %v2043
    %v2045 = vadd.f32 %v2041, %v2044
    %vm2046 = vweird.f32 %v2009
    %vm2047 = vweird.f32 %v2041
    %vm2048 = vmor %vm2046, %vm2047
    %v2049 = vsel %vm2048, %v2041, %v2045
    %v2050 = vand.u32 2147483647, %v2009
    %vm2051 = vcmp.eq.f32.partialorder %v2050, 8.507059e+37
    %v2052 = vand.u32 %v2009, 2147483648
    %v2053 = vor.u32 1.1754944e-38, %v2052
    %v2054 = vsel %vm2051, %v2053, %v2049
    %v2055 = vmul.f32 1.0, %v2054
    %v2056 = vrcp.pop %v2010
    %v2057 = vmul.f32 %v2010, %v2056
    %v2058 = vsub.f32 1.0, %v2057
    %v2059 = vmul.f32 %v2056, %v2058
    %v2060 = vadd.f32 %v2056, %v2059
    %vm2061 = vweird.f32 %v2010
    %vm2062 = vweird.f32 %v2056
    %vm2063 = vmor %vm2061, %vm2062
    %v2064 = vsel %vm2063, %v2056, %v2060
    %v2065 = vand.u32 2147483647, %v2010
    %vm2066 = vcmp.eq.f32.partialorder %v2065, 8.507059e+37
    %v2067 = vand.u32 %v2010, 2147483648
    %v2068 = vor.u32 1.1754944e-38, %v2067
    %v2069 = vsel %vm2066, %v2068, %v2064
    %v2070 = vmul.f32 1.0, %v2069
    %v2071 = vadd.f32 %v1827, %v431
    %v2072 = vadd.f32 %v1828, %v432
    %v2073 = vadd.f32 %v1958, %v437
    %v2074 = vadd.f32 %v1984, %v438
    %v2075 = vmul.f32 %v2025, %v2073
    %v2076 = vmul.f32 %v2040, %v2074
    %v2077 = vadd.f32 %v2071, %v2075
    %v2078 = vadd.f32 %v2072, %v2076
    %v2079 = vtanh.pop %v2077
    %v2080 = vtanh.pop %v2078
    %v2081 = vsub.f32 %v1818, %v2079
    %v2082 = vsub.f32 %v1819, %v2080
    %v2083 = vmul.f32 %v2055, %v2081
    %v2084 = vmul.f32 %v2070, %v2082
    %v2085 = vadd.f32 %v2079, %v2083
    %v2086 = vadd.f32 %v2080, %v2084
    %s2087 = smul.u32 4, 6
    %s2088 = smul.addr %s2087, 8
    %s2089 = scalar_lea.vmem [#allocation2], %s2088
    %v2090 = vld [vmem:[%s2089] sm:$0xff]
    %v2091 = vld [vmem:[%s2089 + $0x8] sm:$0xff]
    %v2092 = vld [vmem:[%s2089 + $0x10] sm:$0xff]
    %v2093 = vld [vmem:[%s2089 + $0x18] sm:$0xff]
    %v2094 = vld [vmem:[%s2089 + $0x20] sm:$0xff]
    %v2095 = vld [vmem:[%s2089 + $0x28] sm:$0xff]
    %v2096 = vpack.c.bf16 %v2085, %v2085
    %v2097 = vpack.c.bf16 %v2086, %v2086
    %2098 = vmatpush.bf16.msra.mxu0 %v880
    %2099 = vmatpush.bf16.msra.mxu0 %v874
    %2100 = vmatpush.bf16.msra.mxu0 %v868
    %2101 = vmatpush.bf16.msra.mxu0 %v862
    %2102 = vmatpush.bf16.msra.mxu0 %v856
    %2103 = vmatpush.bf16.msra.mxu0 %v850
    %2104 = vmatpush.bf16.msra.mxu0 %v844
    %2105 = vmatpush.bf16.msra.mxu0 %v838
    %2106 = vmatmul.bf16.gmra.mxu0 %v2096
    %v2107 = vpop.f32.mrf.mxu0
    %v2108 = vadd.f32 0.0, %v2107
    %v2109 = vpop.f32.mrf.mxu0
    %2110 = vdwg.mxu0
    %2111 = vmatpush.bf16.msra.mxu0 %v928
    %2112 = vmatpush.bf16.msra.mxu0 %v922
    %2113 = vmatpush.bf16.msra.mxu0 %v916
    %2114 = vmatpush.bf16.msra.mxu0 %v910
    %2115 = vmatpush.bf16.msra.mxu0 %v904
    %2116 = vmatpush.bf16.msra.mxu0 %v898
    %2117 = vmatpush.bf16.msra.mxu0 %v892
    %2118 = vmatpush.bf16.msra.mxu0 %v886
    %2119 = vmatmul.bf16.gmra.mxu0 %v2097
    %v2120 = vpop.f32.mrf.mxu0
    %v2121 = vadd.f32 %v2108, %v2120
    %v2122 = vpop.f32.mrf.mxu0
    %2123 = vdwg.mxu0
    %2124 = vmatpush.bf16.msra.mxu0 %v881
    %2125 = vmatpush.bf16.msra.mxu0 %v875
    %2126 = vmatpush.bf16.msra.mxu0 %v869
    %2127 = vmatpush.bf16.msra.mxu0 %v863
    %2128 = vmatpush.bf16.msra.mxu0 %v857
    %2129 = vmatpush.bf16.msra.mxu0 %v851
    %2130 = vmatpush.bf16.msra.mxu0 %v845
    %2131 = vmatpush.bf16.msra.mxu0 %v839
    %2132 = vmatmul.bf16.gmra.mxu0 %v2096
    %v2133 = vpop.f32.mrf.mxu0
    %v2134 = vadd.f32 0.0, %v2133
    %v2135 = vpop.f32.mrf.mxu0
    %2136 = vdwg.mxu0
    %2137 = vmatpush.bf16.msra.mxu0 %v929
    %2138 = vmatpush.bf16.msra.mxu0 %v923
    %2139 = vmatpush.bf16.msra.mxu0 %v917
    %2140 = vmatpush.bf16.msra.mxu0 %v911
    %2141 = vmatpush.bf16.msra.mxu0 %v905
    %2142 = vmatpush.bf16.msra.mxu0 %v899
    %2143 = vmatpush.bf16.msra.mxu0 %v893
    %2144 = vmatpush.bf16.msra.mxu0 %v887
    %2145 = vmatmul.bf16.gmra.mxu0 %v2097
    %v2146 = vpop.f32.mrf.mxu0
    %v2147 = vadd.f32 %v2134, %v2146
    %v2148 = vpop.f32.mrf.mxu0
    %2149 = vdwg.mxu0
    %2150 = vmatpush.bf16.msra.mxu0 %v882
    %2151 = vmatpush.bf16.msra.mxu0 %v876
    %2152 = vmatpush.bf16.msra.mxu0 %v870
    %2153 = vmatpush.bf16.msra.mxu0 %v864
    %2154 = vmatpush.bf16.msra.mxu0 %v858
    %2155 = vmatpush.bf16.msra.mxu0 %v852
    %2156 = vmatpush.bf16.msra.mxu0 %v846
    %2157 = vmatpush.bf16.msra.mxu0 %v840
    %2158 = vmatmul.bf16.gmra.mxu0 %v2096
    %v2159 = vpop.f32.mrf.mxu0
    %v2160 = vadd.f32 0.0, %v2159
    %v2161 = vpop.f32.mrf.mxu0
    %2162 = vdwg.mxu0
    %2163 = vmatpush.bf16.msra.mxu0 %v930
    %2164 = vmatpush.bf16.msra.mxu0 %v924
    %2165 = vmatpush.bf16.msra.mxu0 %v918
    %2166 = vmatpush.bf16.msra.mxu0 %v912
    %2167 = vmatpush.bf16.msra.mxu0 %v906
    %2168 = vmatpush.bf16.msra.mxu0 %v900
    %2169 = vmatpush.bf16.msra.mxu0 %v894
    %2170 = vmatpush.bf16.msra.mxu0 %v888
    %2171 = vmatmul.bf16.gmra.mxu0 %v2097
    %v2172 = vpop.f32.mrf.mxu0
    %v2173 = vadd.f32 %v2160, %v2172
    %v2174 = vpop.f32.mrf.mxu0
    %2175 = vdwg.mxu0
    %2176 = vmatpush.bf16.msra.mxu0 %v883
    %2177 = vmatpush.bf16.msra.mxu0 %v877
    %2178 = vmatpush.bf16.msra.mxu0 %v871
    %2179 = vmatpush.bf16.msra.mxu0 %v865
    %2180 = vmatpush.bf16.msra.mxu0 %v859
    %2181 = vmatpush.bf16.msra.mxu0 %v853
    %2182 = vmatpush.bf16.msra.mxu0 %v847
    %2183 = vmatpush.bf16.msra.mxu0 %v841
    %2184 = vmatmul.bf16.gmra.mxu0 %v2096
    %v2185 = vpop.f32.mrf.mxu0
    %v2186 = vadd.f32 0.0, %v2185
    %v2187 = vpop.f32.mrf.mxu0
    %2188 = vdwg.mxu0
    %2189 = vmatpush.bf16.msra.mxu0 %v931
    %2190 = vmatpush.bf16.msra.mxu0 %v925
    %2191 = vmatpush.bf16.msra.mxu0 %v919
    %2192 = vmatpush.bf16.msra.mxu0 %v913
    %2193 = vmatpush.bf16.msra.mxu0 %v907
    %2194 = vmatpush.bf16.msra.mxu0 %v901
    %2195 = vmatpush.bf16.msra.mxu0 %v895
    %2196 = vmatpush.bf16.msra.mxu0 %v889
    %2197 = vmatmul.bf16.gmra.mxu0 %v2097
    %v2198 = vpop.f32.mrf.mxu0
    %v2199 = vadd.f32 %v2186, %v2198
    %v2200 = vpop.f32.mrf.mxu0
    %2201 = vdwg.mxu0
    %2202 = vmatpush.bf16.msra.mxu0 %v884
    %2203 = vmatpush.bf16.msra.mxu0 %v878
    %2204 = vmatpush.bf16.msra.mxu0 %v872
    %2205 = vmatpush.bf16.msra.mxu0 %v866
    %2206 = vmatpush.bf16.msra.mxu0 %v860
    %2207 = vmatpush.bf16.msra.mxu0 %v854
    %2208 = vmatpush.bf16.msra.mxu0 %v848
    %2209 = vmatpush.bf16.msra.mxu0 %v842
    %2210 = vmatmul.bf16.gmra.mxu0 %v2096
    %v2211 = vpop.f32.mrf.mxu0
    %v2212 = vadd.f32 0.0, %v2211
    %v2213 = vpop.f32.mrf.mxu0
    %2214 = vdwg.mxu0
    %2215 = vmatpush.bf16.msra.mxu0 %v932
    %2216 = vmatpush.bf16.msra.mxu0 %v926
    %2217 = vmatpush.bf16.msra.mxu0 %v920
    %2218 = vmatpush.bf16.msra.mxu0 %v914
    %2219 = vmatpush.bf16.msra.mxu0 %v908
    %2220 = vmatpush.bf16.msra.mxu0 %v902
    %2221 = vmatpush.bf16.msra.mxu0 %v896
    %2222 = vmatpush.bf16.msra.mxu0 %v890
    %2223 = vmatmul.bf16.gmra.mxu0 %v2097
    %v2224 = vpop.f32.mrf.mxu0
    %v2225 = vadd.f32 %v2212, %v2224
    %v2226 = vpop.f32.mrf.mxu0
    %2227 = vdwg.mxu0
    %2228 = vmatpush.bf16.msra.mxu0 %v885
    %2229 = vmatpush.bf16.msra.mxu0 %v879
    %2230 = vmatpush.bf16.msra.mxu0 %v873
    %2231 = vmatpush.bf16.msra.mxu0 %v867
    %2232 = vmatpush.bf16.msra.mxu0 %v861
    %2233 = vmatpush.bf16.msra.mxu0 %v855
    %2234 = vmatpush.bf16.msra.mxu0 %v849
    %2235 = vmatpush.bf16.msra.mxu0 %v843
    %2236 = vmatmul.bf16.gmra.mxu0 %v2096
    %v2237 = vpop.f32.mrf.mxu0
    %v2238 = vadd.f32 0.0, %v2237
    %v2239 = vpop.f32.mrf.mxu0
    %2240 = vdwg.mxu0
    %2241 = vmatpush.bf16.msra.mxu0 %v933
    %2242 = vmatpush.bf16.msra.mxu0 %v927
    %2243 = vmatpush.bf16.msra.mxu0 %v921
    %2244 = vmatpush.bf16.msra.mxu0 %v915
    %2245 = vmatpush.bf16.msra.mxu0 %v909
    %2246 = vmatpush.bf16.msra.mxu0 %v903
    %2247 = vmatpush.bf16.msra.mxu0 %v897
    %2248 = vmatpush.bf16.msra.mxu0 %v891
    %2249 = vmatmul.bf16.gmra.mxu0 %v2097
    %v2250 = vpop.f32.mrf.mxu0
    %v2251 = vadd.f32 %v2238, %v2250
    %v2252 = vpop.f32.mrf.mxu0
    %2253 = vdwg.mxu0
    %v2254 = vadd.f32 %v2090, %v2121
    %v2255 = vadd.f32 %v2091, %v2147
    %v2256 = vadd.f32 %v2092, %v2173
    %v2257 = vadd.f32 %v2093, %v2199
    %v2258 = vadd.f32 %v2254, %v421
    %v2259 = vadd.f32 %v2255, %v422
    %v2260 = vadd.f32 %v2256, %v423
    %v2261 = vadd.f32 %v2257, %v424
    %v2262 = vxor.u32 %v2258, 2147483648
    %v2263 = vxor.u32 %v2259, 2147483648
    %v2264 = vxor.u32 %v2260, 2147483648
    %v2265 = vxor.u32 %v2261, 2147483648
    %v2266 = vmul.f32 %v2262, 1.442695
    %v2267 = vpow.pop %v2266
    %v2268 = vmul.f32 %v2263, 1.442695
    %v2269 = vpow.pop %v2268
    %v2270 = vmul.f32 %v2264, 1.442695
    %v2271 = vpow.pop %v2270
    %v2272 = vmul.f32 %v2265, 1.442695
    %v2273 = vpow.pop %v2272
    %v2274 = vadd.f32 %v2267, 1.0
    %v2275 = vadd.f32 %v2269, 1.0
    %v2276 = vadd.f32 %v2271, 1.0
    %v2277 = vadd.f32 %v2273, 1.0
    %v2278 = vrcp.pop %v2274
    %v2279 = vmul.f32 %v2274, %v2278
    %v2280 = vsub.f32 1.0, %v2279
    %v2281 = vmul.f32 %v2278, %v2280
    %v2282 = vadd.f32 %v2278, %v2281
    %vm2283 = vweird.f32 %v2274
    %vm2284 = vweird.f32 %v2278
    %vm2285 = vmor %vm2283, %vm2284
    %v2286 = vsel %vm2285, %v2278, %v2282
    %v2287 = vand.u32 2147483647, %v2274
    %vm2288 = vcmp.eq.f32.partialorder %v2287, 8.507059e+37
    %v2289 = vand.u32 %v2274, 2147483648
    %v2290 = vor.u32 1.1754944e-38, %v2289
    %v2291 = vsel %vm2288, %v2290, %v2286
    %v2292 = vmul.f32 1.0, %v2291
    %v2293 = vrcp.pop %v2275
    %v2294 = vmul.f32 %v2275, %v2293
    %v2295 = vsub.f32 1.0, %v2294
    %v2296 = vmul.f32 %v2293, %v2295
    %v2297 = vadd.f32 %v2293, %v2296
    %vm2298 = vweird.f32 %v2275
    %vm2299 = vweird.f32 %v2293
    %vm2300 = vmor %vm2298, %vm2299
    %v2301 = vsel %vm2300, %v2293, %v2297
    %v2302 = vand.u32 2147483647, %v2275
    %vm2303 = vcmp.eq.f32.partialorder %v2302, 8.507059e+37
    %v2304 = vand.u32 %v2275, 2147483648
    %v2305 = vor.u32 1.1754944e-38, %v2304
    %v2306 = vsel %vm2303, %v2305, %v2301
    %v2307 = vmul.f32 1.0, %v2306
    %v2308 = vrcp.pop %v2276
    %v2309 = vmul.f32 %v2276, %v2308
    %v2310 = vsub.f32 1.0, %v2309
    %v2311 = vmul.f32 %v2308, %v2310
    %v2312 = vadd.f32 %v2308, %v2311
    %vm2313 = vweird.f32 %v2276
    %vm2314 = vweird.f32 %v2308
    %vm2315 = vmor %vm2313, %vm2314
    %v2316 = vsel %vm2315, %v2308, %v2312
    %v2317 = vand.u32 2147483647, %v2276
    %vm2318 = vcmp.eq.f32.partialorder %v2317, 8.507059e+37
    %v2319 = vand.u32 %v2276, 2147483648
    %v2320 = vor.u32 1.1754944e-38, %v2319
    %v2321 = vsel %vm2318, %v2320, %v2316
    %v2322 = vmul.f32 1.0, %v2321
    %v2323 = vrcp.pop %v2277
    %v2324 = vmul.f32 %v2277, %v2323
    %v2325 = vsub.f32 1.0, %v2324
    %v2326 = vmul.f32 %v2323, %v2325
    %v2327 = vadd.f32 %v2323, %v2326
    %vm2328 = vweird.f32 %v2277
    %vm2329 = vweird.f32 %v2323
    %vm2330 = vmor %vm2328, %vm2329
    %v2331 = vsel %vm2330, %v2323, %v2327
    %v2332 = vand.u32 2147483647, %v2277
    %vm2333 = vcmp.eq.f32.partialorder %v2332, 8.507059e+37
    %v2334 = vand.u32 %v2277, 2147483648
    %v2335 = vor.u32 1.1754944e-38, %v2334
    %v2336 = vsel %vm2333, %v2335, %v2331
    %v2337 = vmul.f32 1.0, %v2336
    %v2338 = vadd.f32 %v2094, %v431
    %v2339 = vadd.f32 %v2095, %v432
    %v2340 = vadd.f32 %v2225, %v437
    %v2341 = vadd.f32 %v2251, %v438
    %v2342 = vmul.f32 %v2292, %v2340
    %v2343 = vmul.f32 %v2307, %v2341
    %v2344 = vadd.f32 %v2338, %v2342
    %v2345 = vadd.f32 %v2339, %v2343
    %v2346 = vtanh.pop %v2344
    %v2347 = vtanh.pop %v2345
    %v2348 = vsub.f32 %v2085, %v2346
    %v2349 = vsub.f32 %v2086, %v2347
    %v2350 = vmul.f32 %v2322, %v2348
    %v2351 = vmul.f32 %v2337, %v2349
    %v2352 = vadd.f32 %v2346, %v2350
    %v2353 = vadd.f32 %v2347, %v2351
    %s2354 = smul.u32 5, 6
    %s2355 = smul.addr %s2354, 8
    %s2356 = scalar_lea.vmem [#allocation2], %s2355
    %v2357 = vld [vmem:[%s2356] sm:$0xff]
    %v2358 = vld [vmem:[%s2356 + $0x8] sm:$0xff]
    %v2359 = vld [vmem:[%s2356 + $0x10] sm:$0xff]
    %v2360 = vld [vmem:[%s2356 + $0x18] sm:$0xff]
    %v2361 = vld [vmem:[%s2356 + $0x20] sm:$0xff]
    %v2362 = vld [vmem:[%s2356 + $0x28] sm:$0xff]
    %v2363 = vpack.c.bf16 %v2352, %v2352
    %v2364 = vpack.c.bf16 %v2353, %v2353
    %2365 = vmatpush.bf16.msra.mxu0 %v880
    %2366 = vmatpush.bf16.msra.mxu0 %v874
    %2367 = vmatpush.bf16.msra.mxu0 %v868
    %2368 = vmatpush.bf16.msra.mxu0 %v862
    %2369 = vmatpush.bf16.msra.mxu0 %v856
    %2370 = vmatpush.bf16.msra.mxu0 %v850
    %2371 = vmatpush.bf16.msra.mxu0 %v844
    %2372 = vmatpush.bf16.msra.mxu0 %v838
    %2373 = vmatmul.bf16.gmra.mxu0 %v2363
    %v2374 = vpop.f32.mrf.mxu0
    %v2375 = vadd.f32 0.0, %v2374
    %v2376 = vpop.f32.mrf.mxu0
    %2377 = vdwg.mxu0
    %2378 = vmatpush.bf16.msra.mxu0 %v928
    %2379 = vmatpush.bf16.msra.mxu0 %v922
    %2380 = vmatpush.bf16.msra.mxu0 %v916
    %2381 = vmatpush.bf16.msra.mxu0 %v910
    %2382 = vmatpush.bf16.msra.mxu0 %v904
    %2383 = vmatpush.bf16.msra.mxu0 %v898
    %2384 = vmatpush.bf16.msra.mxu0 %v892
    %2385 = vmatpush.bf16.msra.mxu0 %v886
    %2386 = vmatmul.bf16.gmra.mxu0 %v2364
    %v2387 = vpop.f32.mrf.mxu0
    %v2388 = vadd.f32 %v2375, %v2387
    %v2389 = vpop.f32.mrf.mxu0
    %2390 = vdwg.mxu0
    %2391 = vmatpush.bf16.msra.mxu0 %v881
    %2392 = vmatpush.bf16.msra.mxu0 %v875
    %2393 = vmatpush.bf16.msra.mxu0 %v869
    %2394 = vmatpush.bf16.msra.mxu0 %v863
    %2395 = vmatpush.bf16.msra.mxu0 %v857
    %2396 = vmatpush.bf16.msra.mxu0 %v851
    %2397 = vmatpush.bf16.msra.mxu0 %v845
    %2398 = vmatpush.bf16.msra.mxu0 %v839
    %2399 = vmatmul.bf16.gmra.mxu0 %v2363
    %v2400 = vpop.f32.mrf.mxu0
    %v2401 = vadd.f32 0.0, %v2400
    %v2402 = vpop.f32.mrf.mxu0
    %2403 = vdwg.mxu0
    %2404 = vmatpush.bf16.msra.mxu0 %v929
    %2405 = vmatpush.bf16.msra.mxu0 %v923
    %2406 = vmatpush.bf16.msra.mxu0 %v917
    %2407 = vmatpush.bf16.msra.mxu0 %v911
    %2408 = vmatpush.bf16.msra.mxu0 %v905
    %2409 = vmatpush.bf16.msra.mxu0 %v899
    %2410 = vmatpush.bf16.msra.mxu0 %v893
    %2411 = vmatpush.bf16.msra.mxu0 %v887
    %2412 = vmatmul.bf16.gmra.mxu0 %v2364
    %v2413 = vpop.f32.mrf.mxu0
    %v2414 = vadd.f32 %v2401, %v2413
    %v2415 = vpop.f32.mrf.mxu0
    %2416 = vdwg.mxu0
    %2417 = vmatpush.bf16.msra.mxu0 %v882
    %2418 = vmatpush.bf16.msra.mxu0 %v876
    %2419 = vmatpush.bf16.msra.mxu0 %v870
    %2420 = vmatpush.bf16.msra.mxu0 %v864
    %2421 = vmatpush.bf16.msra.mxu0 %v858
    %2422 = vmatpush.bf16.msra.mxu0 %v852
    %2423 = vmatpush.bf16.msra.mxu0 %v846
    %2424 = vmatpush.bf16.msra.mxu0 %v840
    %2425 = vmatmul.bf16.gmra.mxu0 %v2363
    %v2426 = vpop.f32.mrf.mxu0
    %v2427 = vadd.f32 0.0, %v2426
    %v2428 = vpop.f32.mrf.mxu0
    %2429 = vdwg.mxu0
    %2430 = vmatpush.bf16.msra.mxu0 %v930
    %2431 = vmatpush.bf16.msra.mxu0 %v924
    %2432 = vmatpush.bf16.msra.mxu0 %v918
    %2433 = vmatpush.bf16.msra.mxu0 %v912
    %2434 = vmatpush.bf16.msra.mxu0 %v906
    %2435 = vmatpush.bf16.msra.mxu0 %v900
    %2436 = vmatpush.bf16.msra.mxu0 %v894
    %2437 = vmatpush.bf16.msra.mxu0 %v888
    %2438 = vmatmul.bf16.gmra.mxu0 %v2364
    %v2439 = vpop.f32.mrf.mxu0
    %v2440 = vadd.f32 %v2427, %v2439
    %v2441 = vpop.f32.mrf.mxu0
    %2442 = vdwg.mxu0
    %2443 = vmatpush.bf16.msra.mxu0 %v883
    %2444 = vmatpush.bf16.msra.mxu0 %v877
    %2445 = vmatpush.bf16.msra.mxu0 %v871
    %2446 = vmatpush.bf16.msra.mxu0 %v865
    %2447 = vmatpush.bf16.msra.mxu0 %v859
    %2448 = vmatpush.bf16.msra.mxu0 %v853
    %2449 = vmatpush.bf16.msra.mxu0 %v847
    %2450 = vmatpush.bf16.msra.mxu0 %v841
    %2451 = vmatmul.bf16.gmra.mxu0 %v2363
    %v2452 = vpop.f32.mrf.mxu0
    %v2453 = vadd.f32 0.0, %v2452
    %v2454 = vpop.f32.mrf.mxu0
    %2455 = vdwg.mxu0
    %2456 = vmatpush.bf16.msra.mxu0 %v931
    %2457 = vmatpush.bf16.msra.mxu0 %v925
    %2458 = vmatpush.bf16.msra.mxu0 %v919
    %2459 = vmatpush.bf16.msra.mxu0 %v913
    %2460 = vmatpush.bf16.msra.mxu0 %v907
    %2461 = vmatpush.bf16.msra.mxu0 %v901
    %2462 = vmatpush.bf16.msra.mxu0 %v895
    %2463 = vmatpush.bf16.msra.mxu0 %v889
    %2464 = vmatmul.bf16.gmra.mxu0 %v2364
    %v2465 = vpop.f32.mrf.mxu0
    %v2466 = vadd.f32 %v2453, %v2465
    %v2467 = vpop.f32.mrf.mxu0
    %2468 = vdwg.mxu0
    %2469 = vmatpush.bf16.msra.mxu0 %v884
    %2470 = vmatpush.bf16.msra.mxu0 %v878
    %2471 = vmatpush.bf16.msra.mxu0 %v872
    %2472 = vmatpush.bf16.msra.mxu0 %v866
    %2473 = vmatpush.bf16.msra.mxu0 %v860
    %2474 = vmatpush.bf16.msra.mxu0 %v854
    %2475 = vmatpush.bf16.msra.mxu0 %v848
    %2476 = vmatpush.bf16.msra.mxu0 %v842
    %2477 = vmatmul.bf16.gmra.mxu0 %v2363
    %v2478 = vpop.f32.mrf.mxu0
    %v2479 = vadd.f32 0.0, %v2478
    %v2480 = vpop.f32.mrf.mxu0
    %2481 = vdwg.mxu0
    %2482 = vmatpush.bf16.msra.mxu0 %v932
    %2483 = vmatpush.bf16.msra.mxu0 %v926
    %2484 = vmatpush.bf16.msra.mxu0 %v920
    %2485 = vmatpush.bf16.msra.mxu0 %v914
    %2486 = vmatpush.bf16.msra.mxu0 %v908
    %2487 = vmatpush.bf16.msra.mxu0 %v902
    %2488 = vmatpush.bf16.msra.mxu0 %v896
    %2489 = vmatpush.bf16.msra.mxu0 %v890
    %2490 = vmatmul.bf16.gmra.mxu0 %v2364
    %v2491 = vpop.f32.mrf.mxu0
    %v2492 = vadd.f32 %v2479, %v2491
    %v2493 = vpop.f32.mrf.mxu0
    %2494 = vdwg.mxu0
    %2495 = vmatpush.bf16.msra.mxu0 %v885
    %2496 = vmatpush.bf16.msra.mxu0 %v879
    %2497 = vmatpush.bf16.msra.mxu0 %v873
    %2498 = vmatpush.bf16.msra.mxu0 %v867
    %2499 = vmatpush.bf16.msra.mxu0 %v861
    %2500 = vmatpush.bf16.msra.mxu0 %v855
    %2501 = vmatpush.bf16.msra.mxu0 %v849
    %2502 = vmatpush.bf16.msra.mxu0 %v843
    %2503 = vmatmul.bf16.gmra.mxu0 %v2363
    %v2504 = vpop.f32.mrf.mxu0
    %v2505 = vadd.f32 0.0, %v2504
    %v2506 = vpop.f32.mrf.mxu0
    %2507 = vdwg.mxu0
    %2508 = vmatpush.bf16.msra.mxu0 %v933
    %2509 = vmatpush.bf16.msra.mxu0 %v927
    %2510 = vmatpush.bf16.msra.mxu0 %v921
    %2511 = vmatpush.bf16.msra.mxu0 %v915
    %2512 = vmatpush.bf16.msra.mxu0 %v909
    %2513 = vmatpush.bf16.msra.mxu0 %v903
    %2514 = vmatpush.bf16.msra.mxu0 %v897
    %2515 = vmatpush.bf16.msra.mxu0 %v891
    %2516 = vmatmul.bf16.gmra.mxu0 %v2364
    %v2517 = vpop.f32.mrf.mxu0
    %v2518 = vadd.f32 %v2505, %v2517
    %v2519 = vpop.f32.mrf.mxu0
    %2520 = vdwg.mxu0
    %v2521 = vadd.f32 %v2357, %v2388
    %v2522 = vadd.f32 %v2358, %v2414
    %v2523 = vadd.f32 %v2359, %v2440
    %v2524 = vadd.f32 %v2360, %v2466
    %v2525 = vadd.f32 %v2521, %v421
    %v2526 = vadd.f32 %v2522, %v422
    %v2527 = vadd.f32 %v2523, %v423
    %v2528 = vadd.f32 %v2524, %v424
    %v2529 = vxor.u32 %v2525, 2147483648
    %v2530 = vxor.u32 %v2526, 2147483648
    %v2531 = vxor.u32 %v2527, 2147483648
    %v2532 = vxor.u32 %v2528, 2147483648
    %v2533 = vmul.f32 %v2529, 1.442695
    %v2534 = vpow.pop %v2533
    %v2535 = vmul.f32 %v2530, 1.442695
    %v2536 = vpow.pop %v2535
    %v2537 = vmul.f32 %v2531, 1.442695
    %v2538 = vpow.pop %v2537
    %v2539 = vmul.f32 %v2532, 1.442695
    %v2540 = vpow.pop %v2539
    %v2541 = vadd.f32 %v2534, 1.0
    %v2542 = vadd.f32 %v2536, 1.0
    %v2543 = vadd.f32 %v2538, 1.0
    %v2544 = vadd.f32 %v2540, 1.0
    %v2545 = vrcp.pop %v2541
    %v2546 = vmul.f32 %v2541, %v2545
    %v2547 = vsub.f32 1.0, %v2546
    %v2548 = vmul.f32 %v2545, %v2547
    %v2549 = vadd.f32 %v2545, %v2548
    %vm2550 = vweird.f32 %v2541
    %vm2551 = vweird.f32 %v2545
    %vm2552 = vmor %vm2550, %vm2551
    %v2553 = vsel %vm2552, %v2545, %v2549
    %v2554 = vand.u32 2147483647, %v2541
    %vm2555 = vcmp.eq.f32.partialorder %v2554, 8.507059e+37
    %v2556 = vand.u32 %v2541, 2147483648
    %v2557 = vor.u32 1.1754944e-38, %v2556
    %v2558 = vsel %vm2555, %v2557, %v2553
    %v2559 = vmul.f32 1.0, %v2558
    %v2560 = vrcp.pop %v2542
    %v2561 = vmul.f32 %v2542, %v2560
    %v2562 = vsub.f32 1.0, %v2561
    %v2563 = vmul.f32 %v2560, %v2562
    %v2564 = vadd.f32 %v2560, %v2563
    %vm2565 = vweird.f32 %v2542
    %vm2566 = vweird.f32 %v2560
    %vm2567 = vmor %vm2565, %vm2566
    %v2568 = vsel %vm2567, %v2560, %v2564
    %v2569 = vand.u32 2147483647, %v2542
    %vm2570 = vcmp.eq.f32.partialorder %v2569, 8.507059e+37
    %v2571 = vand.u32 %v2542, 2147483648
    %v2572 = vor.u32 1.1754944e-38, %v2571
    %v2573 = vsel %vm2570, %v2572, %v2568
    %v2574 = vmul.f32 1.0, %v2573
    %v2575 = vrcp.pop %v2543
    %v2576 = vmul.f32 %v2543, %v2575
    %v2577 = vsub.f32 1.0, %v2576
    %v2578 = vmul.f32 %v2575, %v2577
    %v2579 = vadd.f32 %v2575, %v2578
    %vm2580 = vweird.f32 %v2543
    %vm2581 = vweird.f32 %v2575
    %vm2582 = vmor %vm2580, %vm2581
    %v2583 = vsel %vm2582, %v2575, %v2579
    %v2584 = vand.u32 2147483647, %v2543
    %vm2585 = vcmp.eq.f32.partialorder %v2584, 8.507059e+37
    %v2586 = vand.u32 %v2543, 2147483648
    %v2587 = vor.u32 1.1754944e-38, %v2586
    %v2588 = vsel %vm2585, %v2587, %v2583
    %v2589 = vmul.f32 1.0, %v2588
    %v2590 = vrcp.pop %v2544
    %v2591 = vmul.f32 %v2544, %v2590
    %v2592 = vsub.f32 1.0, %v2591
    %v2593 = vmul.f32 %v2590, %v2592
    %v2594 = vadd.f32 %v2590, %v2593
    %vm2595 = vweird.f32 %v2544
    %vm2596 = vweird.f32 %v2590
    %vm2597 = vmor %vm2595, %vm2596
    %v2598 = vsel %vm2597, %v2590, %v2594
    %v2599 = vand.u32 2147483647, %v2544
    %vm2600 = vcmp.eq.f32.partialorder %v2599, 8.507059e+37
    %v2601 = vand.u32 %v2544, 2147483648
    %v2602 = vor.u32 1.1754944e-38, %v2601
    %v2603 = vsel %vm2600, %v2602, %v2598
    %v2604 = vmul.f32 1.0, %v2603
    %v2605 = vadd.f32 %v2361, %v431
    %v2606 = vadd.f32 %v2362, %v432
    %v2607 = vadd.f32 %v2492, %v437
    %v2608 = vadd.f32 %v2518, %v438
    %v2609 = vmul.f32 %v2559, %v2607
    %v2610 = vmul.f32 %v2574, %v2608
    %v2611 = vadd.f32 %v2605, %v2609
    %v2612 = vadd.f32 %v2606, %v2610
    %v2613 = vtanh.pop %v2611
    %v2614 = vtanh.pop %v2612
    %v2615 = vsub.f32 %v2352, %v2613
    %v2616 = vsub.f32 %v2353, %v2614
    %v2617 = vmul.f32 %v2589, %v2615
    %v2618 = vmul.f32 %v2604, %v2616
    %v2619 = vadd.f32 %v2613, %v2617
    %v2620 = vadd.f32 %v2614, %v2618
    %s2621 = smul.u32 6, 6
    %s2622 = smul.addr %s2621, 8
    %s2623 = scalar_lea.vmem [#allocation2], %s2622
    %v2624 = vld [vmem:[%s2623] sm:$0xff]
    %v2625 = vld [vmem:[%s2623 + $0x8] sm:$0xff]
    %v2626 = vld [vmem:[%s2623 + $0x10] sm:$0xff]
    %v2627 = vld [vmem:[%s2623 + $0x18] sm:$0xff]
    %v2628 = vld [vmem:[%s2623 + $0x20] sm:$0xff]
    %v2629 = vld [vmem:[%s2623 + $0x28] sm:$0xff]
    %v2630 = vpack.c.bf16 %v2619, %v2619
    %v2631 = vpack.c.bf16 %v2620, %v2620
    %2632 = vmatpush.bf16.msra.mxu0 %v880
    %2633 = vmatpush.bf16.msra.mxu0 %v874
    %2634 = vmatpush.bf16.msra.mxu0 %v868
    %2635 = vmatpush.bf16.msra.mxu0 %v862
    %2636 = vmatpush.bf16.msra.mxu0 %v856
    %2637 = vmatpush.bf16.msra.mxu0 %v850
    %2638 = vmatpush.bf16.msra.mxu0 %v844
    %2639 = vmatpush.bf16.msra.mxu0 %v838
    %2640 = vmatmul.bf16.gmra.mxu0 %v2630
    %v2641 = vpop.f32.mrf.mxu0
    %v2642 = vadd.f32 0.0, %v2641
    %v2643 = vpop.f32.mrf.mxu0
    %2644 = vdwg.mxu0
    %2645 = vmatpush.bf16.msra.mxu0 %v928
    %2646 = vmatpush.bf16.msra.mxu0 %v922
    %2647 = vmatpush.bf16.msra.mxu0 %v916
    %2648 = vmatpush.bf16.msra.mxu0 %v910
    %2649 = vmatpush.bf16.msra.mxu0 %v904
    %2650 = vmatpush.bf16.msra.mxu0 %v898
    %2651 = vmatpush.bf16.msra.mxu0 %v892
    %2652 = vmatpush.bf16.msra.mxu0 %v886
    %2653 = vmatmul.bf16.gmra.mxu0 %v2631
    %v2654 = vpop.f32.mrf.mxu0
    %v2655 = vadd.f32 %v2642, %v2654
    %v2656 = vpop.f32.mrf.mxu0
    %2657 = vdwg.mxu0
    %2658 = vmatpush.bf16.msra.mxu0 %v881
    %2659 = vmatpush.bf16.msra.mxu0 %v875
    %2660 = vmatpush.bf16.msra.mxu0 %v869
    %2661 = vmatpush.bf16.msra.mxu0 %v863
    %2662 = vmatpush.bf16.msra.mxu0 %v857
    %2663 = vmatpush.bf16.msra.mxu0 %v851
    %2664 = vmatpush.bf16.msra.mxu0 %v845
    %2665 = vmatpush.bf16.msra.mxu0 %v839
    %2666 = vmatmul.bf16.gmra.mxu0 %v2630
    %v2667 = vpop.f32.mrf.mxu0
    %v2668 = vadd.f32 0.0, %v2667
    %v2669 = vpop.f32.mrf.mxu0
    %2670 = vdwg.mxu0
    %2671 = vmatpush.bf16.msra.mxu0 %v929
    %2672 = vmatpush.bf16.msra.mxu0 %v923
    %2673 = vmatpush.bf16.msra.mxu0 %v917
    %2674 = vmatpush.bf16.msra.mxu0 %v911
    %2675 = vmatpush.bf16.msra.mxu0 %v905
    %2676 = vmatpush.bf16.msra.mxu0 %v899
    %2677 = vmatpush.bf16.msra.mxu0 %v893
    %2678 = vmatpush.bf16.msra.mxu0 %v887
    %2679 = vmatmul.bf16.gmra.mxu0 %v2631
    %v2680 = vpop.f32.mrf.mxu0
    %v2681 = vadd.f32 %v2668, %v2680
    %v2682 = vpop.f32.mrf.mxu0
    %2683 = vdwg.mxu0
    %2684 = vmatpush.bf16.msra.mxu0 %v882
    %2685 = vmatpush.bf16.msra.mxu0 %v876
    %2686 = vmatpush.bf16.msra.mxu0 %v870
    %2687 = vmatpush.bf16.msra.mxu0 %v864
    %2688 = vmatpush.bf16.msra.mxu0 %v858
    %2689 = vmatpush.bf16.msra.mxu0 %v852
    %2690 = vmatpush.bf16.msra.mxu0 %v846
    %2691 = vmatpush.bf16.msra.mxu0 %v840
    %2692 = vmatmul.bf16.gmra.mxu0 %v2630
    %v2693 = vpop.f32.mrf.mxu0
    %v2694 = vadd.f32 0.0, %v2693
    %v2695 = vpop.f32.mrf.mxu0
    %2696 = vdwg.mxu0
    %2697 = vmatpush.bf16.msra.mxu0 %v930
    %2698 = vmatpush.bf16.msra.mxu0 %v924
    %2699 = vmatpush.bf16.msra.mxu0 %v918
    %2700 = vmatpush.bf16.msra.mxu0 %v912
    %2701 = vmatpush.bf16.msra.mxu0 %v906
    %2702 = vmatpush.bf16.msra.mxu0 %v900
    %2703 = vmatpush.bf16.msra.mxu0 %v894
    %2704 = vmatpush.bf16.msra.mxu0 %v888
    %2705 = vmatmul.bf16.gmra.mxu0 %v2631
    %v2706 = vpop.f32.mrf.mxu0
    %v2707 = vadd.f32 %v2694, %v2706
    %v2708 = vpop.f32.mrf.mxu0
    %2709 = vdwg.mxu0
    %2710 = vmatpush.bf16.msra.mxu0 %v883
    %2711 = vmatpush.bf16.msra.mxu0 %v877
    %2712 = vmatpush.bf16.msra.mxu0 %v871
    %2713 = vmatpush.bf16.msra.mxu0 %v865
    %2714 = vmatpush.bf16.msra.mxu0 %v859
    %2715 = vmatpush.bf16.msra.mxu0 %v853
    %2716 = vmatpush.bf16.msra.mxu0 %v847
    %2717 = vmatpush.bf16.msra.mxu0 %v841
    %2718 = vmatmul.bf16.gmra.mxu0 %v2630
    %v2719 = vpop.f32.mrf.mxu0
    %v2720 = vadd.f32 0.0, %v2719
    %v2721 = vpop.f32.mrf.mxu0
    %2722 = vdwg.mxu0
    %2723 = vmatpush.bf16.msra.mxu0 %v931
    %2724 = vmatpush.bf16.msra.mxu0 %v925
    %2725 = vmatpush.bf16.msra.mxu0 %v919
    %2726 = vmatpush.bf16.msra.mxu0 %v913
    %2727 = vmatpush.bf16.msra.mxu0 %v907
    %2728 = vmatpush.bf16.msra.mxu0 %v901
    %2729 = vmatpush.bf16.msra.mxu0 %v895
    %2730 = vmatpush.bf16.msra.mxu0 %v889
    %2731 = vmatmul.bf16.gmra.mxu0 %v2631
    %v2732 = vpop.f32.mrf.mxu0
    %v2733 = vadd.f32 %v2720, %v2732
    %v2734 = vpop.f32.mrf.mxu0
    %2735 = vdwg.mxu0
    %2736 = vmatpush.bf16.msra.mxu0 %v884
    %2737 = vmatpush.bf16.msra.mxu0 %v878
    %2738 = vmatpush.bf16.msra.mxu0 %v872
    %2739 = vmatpush.bf16.msra.mxu0 %v866
    %2740 = vmatpush.bf16.msra.mxu0 %v860
    %2741 = vmatpush.bf16.msra.mxu0 %v854
    %2742 = vmatpush.bf16.msra.mxu0 %v848
    %2743 = vmatpush.bf16.msra.mxu0 %v842
    %2744 = vmatmul.bf16.gmra.mxu0 %v2630
    %v2745 = vpop.f32.mrf.mxu0
    %v2746 = vadd.f32 0.0, %v2745
    %v2747 = vpop.f32.mrf.mxu0
    %2748 = vdwg.mxu0
    %2749 = vmatpush.bf16.msra.mxu0 %v932
    %2750 = vmatpush.bf16.msra.mxu0 %v926
    %2751 = vmatpush.bf16.msra.mxu0 %v920
    %2752 = vmatpush.bf16.msra.mxu0 %v914
    %2753 = vmatpush.bf16.msra.mxu0 %v908
    %2754 = vmatpush.bf16.msra.mxu0 %v902
    %2755 = vmatpush.bf16.msra.mxu0 %v896
    %2756 = vmatpush.bf16.msra.mxu0 %v890
    %2757 = vmatmul.bf16.gmra.mxu0 %v2631
    %v2758 = vpop.f32.mrf.mxu0
    %v2759 = vadd.f32 %v2746, %v2758
    %v2760 = vpop.f32.mrf.mxu0
    %2761 = vdwg.mxu0
    %2762 = vmatpush.bf16.msra.mxu0 %v885
    %2763 = vmatpush.bf16.msra.mxu0 %v879
    %2764 = vmatpush.bf16.msra.mxu0 %v873
    %2765 = vmatpush.bf16.msra.mxu0 %v867
    %2766 = vmatpush.bf16.msra.mxu0 %v861
    %2767 = vmatpush.bf16.msra.mxu0 %v855
    %2768 = vmatpush.bf16.msra.mxu0 %v849
    %2769 = vmatpush.bf16.msra.mxu0 %v843
    %2770 = vmatmul.bf16.gmra.mxu0 %v2630
    %v2771 = vpop.f32.mrf.mxu0
    %v2772 = vadd.f32 0.0, %v2771
    %v2773 = vpop.f32.mrf.mxu0
    %2774 = vdwg.mxu0
    %2775 = vmatpush.bf16.msra.mxu0 %v933
    %2776 = vmatpush.bf16.msra.mxu0 %v927
    %2777 = vmatpush.bf16.msra.mxu0 %v921
    %2778 = vmatpush.bf16.msra.mxu0 %v915
    %2779 = vmatpush.bf16.msra.mxu0 %v909
    %2780 = vmatpush.bf16.msra.mxu0 %v903
    %2781 = vmatpush.bf16.msra.mxu0 %v897
    %2782 = vmatpush.bf16.msra.mxu0 %v891
    %2783 = vmatmul.bf16.gmra.mxu0 %v2631
    %v2784 = vpop.f32.mrf.mxu0
    %v2785 = vadd.f32 %v2772, %v2784
    %v2786 = vpop.f32.mrf.mxu0
    %2787 = vdwg.mxu0
    %v2788 = vadd.f32 %v2624, %v2655
    %v2789 = vadd.f32 %v2625, %v2681
    %v2790 = vadd.f32 %v2626, %v2707
    %v2791 = vadd.f32 %v2627, %v2733
    %v2792 = vadd.f32 %v2788, %v421
    %v2793 = vadd.f32 %v2789, %v422
    %v2794 = vadd.f32 %v2790, %v423
    %v2795 = vadd.f32 %v2791, %v424
    %v2796 = vxor.u32 %v2792, 2147483648
    %v2797 = vxor.u32 %v2793, 2147483648
    %v2798 = vxor.u32 %v2794, 2147483648
    %v2799 = vxor.u32 %v2795, 2147483648
    %v2800 = vmul.f32 %v2796, 1.442695
    %v2801 = vpow.pop %v2800
    %v2802 = vmul.f32 %v2797, 1.442695
    %v2803 = vpow.pop %v2802
    %v2804 = vmul.f32 %v2798, 1.442695
    %v2805 = vpow.pop %v2804
    %v2806 = vmul.f32 %v2799, 1.442695
    %v2807 = vpow.pop %v2806
    %v2808 = vadd.f32 %v2801, 1.0
    %v2809 = vadd.f32 %v2803, 1.0
    %v2810 = vadd.f32 %v2805, 1.0
    %v2811 = vadd.f32 %v2807, 1.0
    %v2812 = vrcp.pop %v2808
    %v2813 = vmul.f32 %v2808, %v2812
    %v2814 = vsub.f32 1.0, %v2813
    %v2815 = vmul.f32 %v2812, %v2814
    %v2816 = vadd.f32 %v2812, %v2815
    %vm2817 = vweird.f32 %v2808
    %vm2818 = vweird.f32 %v2812
    %vm2819 = vmor %vm2817, %vm2818
    %v2820 = vsel %vm2819, %v2812, %v2816
    %v2821 = vand.u32 2147483647, %v2808
    %vm2822 = vcmp.eq.f32.partialorder %v2821, 8.507059e+37
    %v2823 = vand.u32 %v2808, 2147483648
    %v2824 = vor.u32 1.1754944e-38, %v2823
    %v2825 = vsel %vm2822, %v2824, %v2820
    %v2826 = vmul.f32 1.0, %v2825
    %v2827 = vrcp.pop %v2809
    %v2828 = vmul.f32 %v2809, %v2827
    %v2829 = vsub.f32 1.0, %v2828
    %v2830 = vmul.f32 %v2827, %v2829
    %v2831 = vadd.f32 %v2827, %v2830
    %vm2832 = vweird.f32 %v2809
    %vm2833 = vweird.f32 %v2827
    %vm2834 = vmor %vm2832, %vm2833
    %v2835 = vsel %vm2834, %v2827, %v2831
    %v2836 = vand.u32 2147483647, %v2809
    %vm2837 = vcmp.eq.f32.partialorder %v2836, 8.507059e+37
    %v2838 = vand.u32 %v2809, 2147483648
    %v2839 = vor.u32 1.1754944e-38, %v2838
    %v2840 = vsel %vm2837, %v2839, %v2835
    %v2841 = vmul.f32 1.0, %v2840
    %v2842 = vrcp.pop %v2810
    %v2843 = vmul.f32 %v2810, %v2842
    %v2844 = vsub.f32 1.0, %v2843
    %v2845 = vmul.f32 %v2842, %v2844
    %v2846 = vadd.f32 %v2842, %v2845
    %vm2847 = vweird.f32 %v2810
    %vm2848 = vweird.f32 %v2842
    %vm2849 = vmor %vm2847, %vm2848
    %v2850 = vsel %vm2849, %v2842, %v2846
    %v2851 = vand.u32 2147483647, %v2810
    %vm2852 = vcmp.eq.f32.partialorder %v2851, 8.507059e+37
    %v2853 = vand.u32 %v2810, 2147483648
    %v2854 = vor.u32 1.1754944e-38, %v2853
    %v2855 = vsel %vm2852, %v2854, %v2850
    %v2856 = vmul.f32 1.0, %v2855
    %v2857 = vrcp.pop %v2811
    %v2858 = vmul.f32 %v2811, %v2857
    %v2859 = vsub.f32 1.0, %v2858
    %v2860 = vmul.f32 %v2857, %v2859
    %v2861 = vadd.f32 %v2857, %v2860
    %vm2862 = vweird.f32 %v2811
    %vm2863 = vweird.f32 %v2857
    %vm2864 = vmor %vm2862, %vm2863
    %v2865 = vsel %vm2864, %v2857, %v2861
    %v2866 = vand.u32 2147483647, %v2811
    %vm2867 = vcmp.eq.f32.partialorder %v2866, 8.507059e+37
    %v2868 = vand.u32 %v2811, 2147483648
    %v2869 = vor.u32 1.1754944e-38, %v2868
    %v2870 = vsel %vm2867, %v2869, %v2865
    %v2871 = vmul.f32 1.0, %v2870
    %v2872 = vadd.f32 %v2628, %v431
    %v2873 = vadd.f32 %v2629, %v432
    %v2874 = vadd.f32 %v2759, %v437
    %v2875 = vadd.f32 %v2785, %v438
    %v2876 = vmul.f32 %v2826, %v2874
    %v2877 = vmul.f32 %v2841, %v2875
    %v2878 = vadd.f32 %v2872, %v2876
    %v2879 = vadd.f32 %v2873, %v2877
    %v2880 = vtanh.pop %v2878
    %v2881 = vtanh.pop %v2879
    %v2882 = vsub.f32 %v2619, %v2880
    %v2883 = vsub.f32 %v2620, %v2881
    %v2884 = vmul.f32 %v2856, %v2882
    %v2885 = vmul.f32 %v2871, %v2883
    %v2886 = vadd.f32 %v2880, %v2884
    %v2887 = vadd.f32 %v2881, %v2885
    %s2888 = smul.u32 7, 6
    %s2889 = smul.addr %s2888, 8
    %s2890 = scalar_lea.vmem [#allocation2], %s2889
    %v2891 = vld [vmem:[%s2890] sm:$0xff]
    %v2892 = vld [vmem:[%s2890 + $0x8] sm:$0xff]
    %v2893 = vld [vmem:[%s2890 + $0x10] sm:$0xff]
    %v2894 = vld [vmem:[%s2890 + $0x18] sm:$0xff]
    %v2895 = vld [vmem:[%s2890 + $0x20] sm:$0xff]
    %v2896 = vld [vmem:[%s2890 + $0x28] sm:$0xff]
    %v2897 = vpack.c.bf16 %v2886, %v2886
    %v2898 = vpack.c.bf16 %v2887, %v2887
    %2899 = vmatpush.bf16.msra.mxu0 %v880
    %2900 = vmatpush.bf16.msra.mxu0 %v874
    %2901 = vmatpush.bf16.msra.mxu0 %v868
    %2902 = vmatpush.bf16.msra.mxu0 %v862
    %2903 = vmatpush.bf16.msra.mxu0 %v856
    %2904 = vmatpush.bf16.msra.mxu0 %v850
    %2905 = vmatpush.bf16.msra.mxu0 %v844
    %2906 = vmatpush.bf16.msra.mxu0 %v838
    %2907 = vmatmul.bf16.gmra.mxu0 %v2897
    %v2908 = vpop.f32.mrf.mxu0
    %v2909 = vadd.f32 0.0, %v2908
    %v2910 = vpop.f32.mrf.mxu0
    %2911 = vdwg.mxu0
    %2912 = vmatpush.bf16.msra.mxu0 %v928
    %2913 = vmatpush.bf16.msra.mxu0 %v922
    %2914 = vmatpush.bf16.msra.mxu0 %v916
    %2915 = vmatpush.bf16.msra.mxu0 %v910
    %2916 = vmatpush.bf16.msra.mxu0 %v904
    %2917 = vmatpush.bf16.msra.mxu0 %v898
    %2918 = vmatpush.bf16.msra.mxu0 %v892
    %2919 = vmatpush.bf16.msra.mxu0 %v886
    %2920 = vmatmul.bf16.gmra.mxu0 %v2898
    %v2921 = vpop.f32.mrf.mxu0
    %v2922 = vadd.f32 %v2909, %v2921
    %v2923 = vpop.f32.mrf.mxu0
    %2924 = vdwg.mxu0
    %2925 = vmatpush.bf16.msra.mxu0 %v881
    %2926 = vmatpush.bf16.msra.mxu0 %v875
    %2927 = vmatpush.bf16.msra.mxu0 %v869
    %2928 = vmatpush.bf16.msra.mxu0 %v863
    %2929 = vmatpush.bf16.msra.mxu0 %v857
    %2930 = vmatpush.bf16.msra.mxu0 %v851
    %2931 = vmatpush.bf16.msra.mxu0 %v845
    %2932 = vmatpush.bf16.msra.mxu0 %v839
    %2933 = vmatmul.bf16.gmra.mxu0 %v2897
    %v2934 = vpop.f32.mrf.mxu0
    %v2935 = vadd.f32 0.0, %v2934
    %v2936 = vpop.f32.mrf.mxu0
    %2937 = vdwg.mxu0
    %2938 = vmatpush.bf16.msra.mxu0 %v929
    %2939 = vmatpush.bf16.msra.mxu0 %v923
    %2940 = vmatpush.bf16.msra.mxu0 %v917
    %2941 = vmatpush.bf16.msra.mxu0 %v911
    %2942 = vmatpush.bf16.msra.mxu0 %v905
    %2943 = vmatpush.bf16.msra.mxu0 %v899
    %2944 = vmatpush.bf16.msra.mxu0 %v893
    %2945 = vmatpush.bf16.msra.mxu0 %v887
    %2946 = vmatmul.bf16.gmra.mxu0 %v2898
    %v2947 = vpop.f32.mrf.mxu0
    %v2948 = vadd.f32 %v2935, %v2947
    %v2949 = vpop.f32.mrf.mxu0
    %2950 = vdwg.mxu0
    %2951 = vmatpush.bf16.msra.mxu0 %v882
    %2952 = vmatpush.bf16.msra.mxu0 %v876
    %2953 = vmatpush.bf16.msra.mxu0 %v870
    %2954 = vmatpush.bf16.msra.mxu0 %v864
    %2955 = vmatpush.bf16.msra.mxu0 %v858
    %2956 = vmatpush.bf16.msra.mxu0 %v852
    %2957 = vmatpush.bf16.msra.mxu0 %v846
    %2958 = vmatpush.bf16.msra.mxu0 %v840
    %2959 = vmatmul.bf16.gmra.mxu0 %v2897
    %v2960 = vpop.f32.mrf.mxu0
    %v2961 = vadd.f32 0.0, %v2960
    %v2962 = vpop.f32.mrf.mxu0
    %2963 = vdwg.mxu0
    %2964 = vmatpush.bf16.msra.mxu0 %v930
    %2965 = vmatpush.bf16.msra.mxu0 %v924
    %2966 = vmatpush.bf16.msra.mxu0 %v918
    %2967 = vmatpush.bf16.msra.mxu0 %v912
    %2968 = vmatpush.bf16.msra.mxu0 %v906
    %2969 = vmatpush.bf16.msra.mxu0 %v900
    %2970 = vmatpush.bf16.msra.mxu0 %v894
    %2971 = vmatpush.bf16.msra.mxu0 %v888
    %2972 = vmatmul.bf16.gmra.mxu0 %v2898
    %v2973 = vpop.f32.mrf.mxu0
    %v2974 = vadd.f32 %v2961, %v2973
    %v2975 = vpop.f32.mrf.mxu0
    %2976 = vdwg.mxu0
    %2977 = vmatpush.bf16.msra.mxu0 %v883
    %2978 = vmatpush.bf16.msra.mxu0 %v877
    %2979 = vmatpush.bf16.msra.mxu0 %v871
    %2980 = vmatpush.bf16.msra.mxu0 %v865
    %2981 = vmatpush.bf16.msra.mxu0 %v859
    %2982 = vmatpush.bf16.msra.mxu0 %v853
    %2983 = vmatpush.bf16.msra.mxu0 %v847
    %2984 = vmatpush.bf16.msra.mxu0 %v841
    %2985 = vmatmul.bf16.gmra.mxu0 %v2897
    %v2986 = vpop.f32.mrf.mxu0
    %v2987 = vadd.f32 0.0, %v2986
    %v2988 = vpop.f32.mrf.mxu0
    %2989 = vdwg.mxu0
    %2990 = vmatpush.bf16.msra.mxu0 %v931
    %2991 = vmatpush.bf16.msra.mxu0 %v925
    %2992 = vmatpush.bf16.msra.mxu0 %v919
    %2993 = vmatpush.bf16.msra.mxu0 %v913
    %2994 = vmatpush.bf16.msra.mxu0 %v907
    %2995 = vmatpush.bf16.msra.mxu0 %v901
    %2996 = vmatpush.bf16.msra.mxu0 %v895
    %2997 = vmatpush.bf16.msra.mxu0 %v889
    %2998 = vmatmul.bf16.gmra.mxu0 %v2898
    %v2999 = vpop.f32.mrf.mxu0
    %v3000 = vadd.f32 %v2987, %v2999
    %v3001 = vpop.f32.mrf.mxu0
    %3002 = vdwg.mxu0
    %3003 = vmatpush.bf16.msra.mxu0 %v884
    %3004 = vmatpush.bf16.msra.mxu0 %v878
    %3005 = vmatpush.bf16.msra.mxu0 %v872
    %3006 = vmatpush.bf16.msra.mxu0 %v866
    %3007 = vmatpush.bf16.msra.mxu0 %v860
    %3008 = vmatpush.bf16.msra.mxu0 %v854
    %3009 = vmatpush.bf16.msra.mxu0 %v848
    %3010 = vmatpush.bf16.msra.mxu0 %v842
    %3011 = vmatmul.bf16.gmra.mxu0 %v2897
    %v3012 = vpop.f32.mrf.mxu0
    %v3013 = vadd.f32 0.0, %v3012
    %v3014 = vpop.f32.mrf.mxu0
    %3015 = vdwg.mxu0
    %3016 = vmatpush.bf16.msra.mxu0 %v932
    %3017 = vmatpush.bf16.msra.mxu0 %v926
    %3018 = vmatpush.bf16.msra.mxu0 %v920
    %3019 = vmatpush.bf16.msra.mxu0 %v914
    %3020 = vmatpush.bf16.msra.mxu0 %v908
    %3021 = vmatpush.bf16.msra.mxu0 %v902
    %3022 = vmatpush.bf16.msra.mxu0 %v896
    %3023 = vmatpush.bf16.msra.mxu0 %v890
    %3024 = vmatmul.bf16.gmra.mxu0 %v2898
    %v3025 = vpop.f32.mrf.mxu0
    %v3026 = vadd.f32 %v3013, %v3025
    %v3027 = vpop.f32.mrf.mxu0
    %3028 = vdwg.mxu0
    %3029 = vmatpush.bf16.msra.mxu0 %v885
    %3030 = vmatpush.bf16.msra.mxu0 %v879
    %3031 = vmatpush.bf16.msra.mxu0 %v873
    %3032 = vmatpush.bf16.msra.mxu0 %v867
    %3033 = vmatpush.bf16.msra.mxu0 %v861
    %3034 = vmatpush.bf16.msra.mxu0 %v855
    %3035 = vmatpush.bf16.msra.mxu0 %v849
    %3036 = vmatpush.bf16.msra.mxu0 %v843
    %3037 = vmatmul.bf16.gmra.mxu0 %v2897
    %v3038 = vpop.f32.mrf.mxu0
    %v3039 = vadd.f32 0.0, %v3038
    %v3040 = vpop.f32.mrf.mxu0
    %3041 = vdwg.mxu0
    %3042 = vmatpush.bf16.msra.mxu0 %v933
    %3043 = vmatpush.bf16.msra.mxu0 %v927
    %3044 = vmatpush.bf16.msra.mxu0 %v921
    %3045 = vmatpush.bf16.msra.mxu0 %v915
    %3046 = vmatpush.bf16.msra.mxu0 %v909
    %3047 = vmatpush.bf16.msra.mxu0 %v903
    %3048 = vmatpush.bf16.msra.mxu0 %v897
    %3049 = vmatpush.bf16.msra.mxu0 %v891
    %3050 = vmatmul.bf16.gmra.mxu0 %v2898
    %v3051 = vpop.f32.mrf.mxu0
    %v3052 = vadd.f32 %v3039, %v3051
    %v3053 = vpop.f32.mrf.mxu0
    %3054 = vdwg.mxu0
    %v3055 = vadd.f32 %v2891, %v2922
    %v3056 = vadd.f32 %v2892, %v2948
    %v3057 = vadd.f32 %v2893, %v2974
    %v3058 = vadd.f32 %v2894, %v3000
    %v3059 = vadd.f32 %v3055, %v421
    %v3060 = vadd.f32 %v3056, %v422
    %v3061 = vadd.f32 %v3057, %v423
    %v3062 = vadd.f32 %v3058, %v424
    %v3063 = vxor.u32 %v3059, 2147483648
    %v3064 = vxor.u32 %v3060, 2147483648
    %v3065 = vxor.u32 %v3061, 2147483648
    %v3066 = vxor.u32 %v3062, 2147483648
    %v3067 = vmul.f32 %v3063, 1.442695
    %v3068 = vpow.pop %v3067
    %v3069 = vmul.f32 %v3064, 1.442695
    %v3070 = vpow.pop %v3069
    %v3071 = vmul.f32 %v3065, 1.442695
    %v3072 = vpow.pop %v3071
    %v3073 = vmul.f32 %v3066, 1.442695
    %v3074 = vpow.pop %v3073
    %v3075 = vadd.f32 %v3068, 1.0
    %v3076 = vadd.f32 %v3070, 1.0
    %v3077 = vadd.f32 %v3072, 1.0
    %v3078 = vadd.f32 %v3074, 1.0
    %v3079 = vrcp.pop %v3075
    %v3080 = vmul.f32 %v3075, %v3079
    %v3081 = vsub.f32 1.0, %v3080
    %v3082 = vmul.f32 %v3079, %v3081
    %v3083 = vadd.f32 %v3079, %v3082
    %vm3084 = vweird.f32 %v3075
    %vm3085 = vweird.f32 %v3079
    %vm3086 = vmor %vm3084, %vm3085
    %v3087 = vsel %vm3086, %v3079, %v3083
    %v3088 = vand.u32 2147483647, %v3075
    %vm3089 = vcmp.eq.f32.partialorder %v3088, 8.507059e+37
    %v3090 = vand.u32 %v3075, 2147483648
    %v3091 = vor.u32 1.1754944e-38, %v3090
    %v3092 = vsel %vm3089, %v3091, %v3087
    %v3093 = vmul.f32 1.0, %v3092
    %v3094 = vrcp.pop %v3076
    %v3095 = vmul.f32 %v3076, %v3094
    %v3096 = vsub.f32 1.0, %v3095
    %v3097 = vmul.f32 %v3094, %v3096
    %v3098 = vadd.f32 %v3094, %v3097
    %vm3099 = vweird.f32 %v3076
    %vm3100 = vweird.f32 %v3094
    %vm3101 = vmor %vm3099, %vm3100
    %v3102 = vsel %vm3101, %v3094, %v3098
    %v3103 = vand.u32 2147483647, %v3076
    %vm3104 = vcmp.eq.f32.partialorder %v3103, 8.507059e+37
    %v3105 = vand.u32 %v3076, 2147483648
    %v3106 = vor.u32 1.1754944e-38, %v3105
    %v3107 = vsel %vm3104, %v3106, %v3102
    %v3108 = vmul.f32 1.0, %v3107
    %v3109 = vrcp.pop %v3077
    %v3110 = vmul.f32 %v3077, %v3109
    %v3111 = vsub.f32 1.0, %v3110
    %v3112 = vmul.f32 %v3109, %v3111
    %v3113 = vadd.f32 %v3109, %v3112
    %vm3114 = vweird.f32 %v3077
    %vm3115 = vweird.f32 %v3109
    %vm3116 = vmor %vm3114, %vm3115
    %v3117 = vsel %vm3116, %v3109, %v3113
    %v3118 = vand.u32 2147483647, %v3077
    %vm3119 = vcmp.eq.f32.partialorder %v3118, 8.507059e+37
    %v3120 = vand.u32 %v3077, 2147483648
    %v3121 = vor.u32 1.1754944e-38, %v3120
    %v3122 = vsel %vm3119, %v3121, %v3117
    %v3123 = vmul.f32 1.0, %v3122
    %v3124 = vrcp.pop %v3078
    %v3125 = vmul.f32 %v3078, %v3124
    %v3126 = vsub.f32 1.0, %v3125
    %v3127 = vmul.f32 %v3124, %v3126
    %v3128 = vadd.f32 %v3124, %v3127
    %vm3129 = vweird.f32 %v3078
    %vm3130 = vweird.f32 %v3124
    %vm3131 = vmor %vm3129, %vm3130
    %v3132 = vsel %vm3131, %v3124, %v3128
    %v3133 = vand.u32 2147483647, %v3078
    %vm3134 = vcmp.eq.f32.partialorder %v3133, 8.507059e+37
    %v3135 = vand.u32 %v3078, 2147483648
    %v3136 = vor.u32 1.1754944e-38, %v3135
    %v3137 = vsel %vm3134, %v3136, %v3132
    %v3138 = vmul.f32 1.0, %v3137
    %v3139 = vadd.f32 %v2895, %v431
    %v3140 = vadd.f32 %v2896, %v432
    %v3141 = vadd.f32 %v3026, %v437
    %v3142 = vadd.f32 %v3052, %v438
    %v3143 = vmul.f32 %v3093, %v3141
    %v3144 = vmul.f32 %v3108, %v3142
    %v3145 = vadd.f32 %v3139, %v3143
    %v3146 = vadd.f32 %v3140, %v3144
    %v3147 = vtanh.pop %v3145
    %v3148 = vtanh.pop %v3146
    %v3149 = vsub.f32 %v2886, %v3147
    %v3150 = vsub.f32 %v2887, %v3148
    %v3151 = vmul.f32 %v3123, %v3149
    %v3152 = vmul.f32 %v3138, %v3150
    %v3153 = vadd.f32 %v3147, %v3151
    %v3154 = vadd.f32 %v3148, %v3152
    %3155 = vst [vmem:[#allocation3] sm:$0xff] %v3153
    %3156 = vst [vmem:[#allocation3 + $0x8] sm:$0xff] %v3154
    // Predicated region
    $region50: #{tpu_custom_call.1} parent=1 // pred_check
      %p3157 = pneg %p78
    $region51: #{tpu_custom_call.1} parent=1 // pred_check_branch
      %3159 = sbr.rel (%p3157) target = $region53
    $region52: #{tpu_custom_call.1} parent=1 // pred_region
      %v3160 = vmax.f32 %v3153, 0.0
      %v3161 = vmax.f32 %v3154, 0.0
      %v3162 = vpack.c.bf16 %v3160, %v3160
      %v3163 = vpack.c.bf16 %v3161, %v3161
      %v3164 = vld [vmem:[#allocation9] sm:$0xf]
      %v3165 = vld [vmem:[#allocation9 + $0x4] sm:$0xf]
      %v3166 = vld [vmem:[#allocation9 + $0x8] sm:$0xf]
      %v3167 = vld [vmem:[#allocation9 + $0xc] sm:$0xf]
      %v3168 = vld [vmem:[#allocation9 + $0x10] sm:$0xf]
      %v3169 = vld [vmem:[#allocation9 + $0x14] sm:$0xf]
      %v3170 = vld [vmem:[#allocation9 + $0x18] sm:$0xf]
      %v3171 = vld [vmem:[#allocation9 + $0x1c] sm:$0xf]
      %v3172 = vld [vmem:[#allocation9 + $0x20] sm:$0xf]
      %v3173 = vld [vmem:[#allocation9 + $0x24] sm:$0xf]
      %v3174 = vld [vmem:[#allocation9 + $0x28] sm:$0xf]
      %v3175 = vld [vmem:[#allocation9 + $0x2c] sm:$0xf]
      %v3176 = vld [vmem:[#allocation9 + $0x30] sm:$0xf]
      %v3177 = vld [vmem:[#allocation9 + $0x34] sm:$0xf]
      %v3178 = vld [vmem:[#allocation9 + $0x38] sm:$0xf]
      %v3179 = vld [vmem:[#allocation9 + $0x3c] sm:$0xf]
      %v3180 = vld [vmem:[#allocation9 + $0x40] sm:$0xf]
      %v3181 = vld [vmem:[#allocation9 + $0x44] sm:$0xf]
      %v3182 = vld [vmem:[#allocation9 + $0x48] sm:$0xf]
      %v3183 = vld [vmem:[#allocation9 + $0x4c] sm:$0xf]
      %v3184 = vld [vmem:[#allocation9 + $0x50] sm:$0xf]
      %v3185 = vld [vmem:[#allocation9 + $0x54] sm:$0xf]
      %v3186 = vld [vmem:[#allocation9 + $0x58] sm:$0xf]
      %v3187 = vld [vmem:[#allocation9 + $0x5c] sm:$0xf]
      %v3188 = vld [vmem:[#allocation9 + $0x60] sm:$0xf]
      %v3189 = vld [vmem:[#allocation9 + $0x64] sm:$0xf]
      %v3190 = vld [vmem:[#allocation9 + $0x68] sm:$0xf]
      %v3191 = vld [vmem:[#allocation9 + $0x6c] sm:$0xf]
      %v3192 = vld [vmem:[#allocation9 + $0x70] sm:$0xf]
      %v3193 = vld [vmem:[#allocation9 + $0x74] sm:$0xf]
      %v3194 = vld [vmem:[#allocation9 + $0x78] sm:$0xf]
      %v3195 = vld [vmem:[#allocation9 + $0x7c] sm:$0xf]
      %v3196 = vld [vmem:[%s7] sm:$0x1]
      %v3198 = vperm.slane %v3196, 0
      %v3232 = vunpack.c.l.b16 %v3164
      %v3233 = vunpack.c.l.b16 %v3165
      %v3234 = vunpack.c.l.b16 %v3166
      %v3235 = vunpack.c.l.b16 %v3167
      %v3236 = vunpack.c.l.b16 %v3168
      %v3237 = vunpack.c.l.b16 %v3169
      %v3238 = vunpack.c.l.b16 %v3170
      %v3239 = vunpack.c.l.b16 %v3171
      %v3240 = vunpack.c.l.b16 %v3172
      %v3241 = vunpack.c.l.b16 %v3173
      %v3242 = vunpack.c.l.b16 %v3174
      %v3243 = vunpack.c.l.b16 %v3175
      %v3244 = vunpack.c.l.b16 %v3176
      %v3245 = vunpack.c.l.b16 %v3177
      %v3246 = vunpack.c.l.b16 %v3178
      %v3247 = vunpack.c.l.b16 %v3179
      %v3248 = vunpack.c.l.b16 %v3180
      %v3249 = vunpack.c.l.b16 %v3181
      %v3250 = vunpack.c.l.b16 %v3182
      %v3251 = vunpack.c.l.b16 %v3183
      %v3252 = vunpack.c.l.b16 %v3184
      %v3253 = vunpack.c.l.b16 %v3185
      %v3254 = vunpack.c.l.b16 %v3186
      %v3255 = vunpack.c.l.b16 %v3187
      %v3256 = vunpack.c.l.b16 %v3188
      %v3257 = vunpack.c.l.b16 %v3189
      %v3258 = vunpack.c.l.b16 %v3190
      %v3259 = vunpack.c.l.b16 %v3191
      %v3260 = vunpack.c.l.b16 %v3192
      %v3261 = vunpack.c.l.b16 %v3193
      %v3262 = vunpack.c.l.b16 %v3194
      %v3263 = vunpack.c.l.b16 %v3195
      %v3264 = vpack.c.b16 %v3233, %v3232
      %v3265 = vpack.c.b16 %v3235, %v3234
      %v3266 = vpack.c.b16 %v3237, %v3236
      %v3267 = vpack.c.b16 %v3239, %v3238
      %v3268 = vpack.c.b16 %v3241, %v3240
      %v3269 = vpack.c.b16 %v3243, %v3242
      %v3270 = vpack.c.b16 %v3245, %v3244
      %v3271 = vpack.c.b16 %v3247, %v3246
      %v3272 = vpack.c.b16 %v3249, %v3248
      %v3273 = vpack.c.b16 %v3251, %v3250
      %v3274 = vpack.c.b16 %v3253, %v3252
      %v3275 = vpack.c.b16 %v3255, %v3254
      %v3276 = vpack.c.b16 %v3257, %v3256
      %v3277 = vpack.c.b16 %v3259, %v3258
      %v3278 = vpack.c.b16 %v3261, %v3260
      %v3279 = vpack.c.b16 %v3263, %v3262
      %3296 = vmatpush.bf16.msra.mxu0 %v3271
      %3297 = vmatpush.bf16.msra.mxu0 %v3270
      %3298 = vmatpush.bf16.msra.mxu0 %v3269
      %3299 = vmatpush.bf16.msra.mxu0 %v3268
      %3300 = vmatpush.bf16.msra.mxu0 %v3267
      %3301 = vmatpush.bf16.msra.mxu0 %v3266
      %3302 = vmatpush.bf16.msra.mxu0 %v3265
      %3303 = vmatpush.bf16.msra.mxu0 %v3264
      %3304 = vmatmul.bf16.gmra.mxu0 %v3162
      %v3305 = vpop.f32.mrf.mxu0
      %v3306 = vadd.f32 %v3198, %v3305
      %v3307 = vpop.f32.mrf.mxu0
      %3308 = vdwg.mxu0
      %3309 = vmatpush.bf16.msra.mxu0 %v3279
      %3310 = vmatpush.bf16.msra.mxu0 %v3278
      %3311 = vmatpush.bf16.msra.mxu0 %v3277
      %3312 = vmatpush.bf16.msra.mxu0 %v3276
      %3313 = vmatpush.bf16.msra.mxu0 %v3275
      %3314 = vmatpush.bf16.msra.mxu0 %v3274
      %3315 = vmatpush.bf16.msra.mxu0 %v3273
      %3316 = vmatpush.bf16.msra.mxu0 %v3272
      %3317 = vmatmul.bf16.gmra.mxu0 %v3163
      %v3318 = vpop.f32.mrf.mxu0
      %v3319 = vadd.f32 %v3306, %v3318
      %v3320 = vpop.f32.mrf.mxu0
      %3321 = vdwg.mxu0
      %3322 = vst [vmem:[#allocation10] sm:$0xff] %v3319
    $region53: #{tpu_custom_call.1} parent=1 // pred_fallthru
      _
    // Predicated region
    $region54: #{tpu_custom_call.1} parent=1 // pred_check
      _
    $region55: #{tpu_custom_call.1} parent=1 // pred_check_branch
      %3324 = sbr.rel (0) target = $region57
    $region56: #{tpu_custom_call.1} parent=1 // pred_region
      %3326 = vsyncadd [#allocation6], 0
      %s3328 = sshll.u32 [#allocation10], 4
      %s3329 = int_to_ptr.vmem [resolvable:$true] %s3328
      %s3330 = sshll.u32 %s8, 4
      %s3331 = int_to_ptr.hbm [resolvable:$true] %s3330
      %3333 = dma.vmem_to_hbm [thread:$0]  %s3329, 128, %s3331, [#allocation6]
    $region57: #{tpu_custom_call.1} parent=1 // pred_fallthru
      _
    // Predicated region
    $region58: #{tpu_custom_call.1} parent=1 // pred_check
      _
    $region59: #{tpu_custom_call.1} parent=1 // pred_check_branch
      %3335 = sbr.rel (0) target = $region61
    $region60: #{tpu_custom_call.1} parent=1 // pred_region
      %3337 = dma.done [#allocation6], 128
    $region61: #{tpu_custom_call.1} parent=1 // pred_fallthru
      _
    %3338 = vsyncpa [#allocation5], 1
    %3339 = vsyncpa [#allocation8], 1
    %3340 = vsyncpa [#allocation6], 1

</llo_original>
